<compile_context>
chip_gen: v7x
topology: tpu7x:2x2x1
jax: 0.10.0
libtpu: 0.0.40
codegen_flags: <defaults>
</compile_context>

<pallas_src>
import math
from functools import partial

import jax
import jax.numpy as jnp
from jax import lax
from jax.experimental import pallas as pl
from jax.experimental.pallas import tpu as pltpu

BN_EPS = 1e-5
_VMEM_TILE_BUDGET = 20 * 1024 * 1024   # conservative; fits v5e/v6e/v7x scoped VMEM


def _round_up(v, m):
    return (v + m - 1) // m * m


# ----------------------------------------------------------------------------
# Pallas GEMM kernels (bf16 inputs/outputs, f32 accumulation, fused epilogues)
# ----------------------------------------------------------------------------
def _gemm_kernel(a_ref, b_ref, bias_ref, o_ref, acc_ref, *, relu):
    @pl.when(pl.program_id(2) == 0)
    def _():
        acc_ref[...] = jnp.zeros_like(acc_ref)

    acc_ref[...] += jnp.dot(a_ref[...], b_ref[...],
                            preferred_element_type=jnp.float32)

    @pl.when(pl.program_id(2) == pl.num_programs(2) - 1)
    def _():
        r = acc_ref[...] + bias_ref[...]
        if relu:
            r = jnp.maximum(r, 0.0)
        o_ref[...] = r.astype(o_ref.dtype)


def _gemm_tail_kernel(a_ref, b_ref, bias_ref, s2_ref, b2_ref, res_ref,
                      o_ref, acc_ref):
    """GEMM + [relu -> bn2 affine -> residual add -> relu] fused epilogue."""
    @pl.when(pl.program_id(2) == 0)
    def _():
        acc_ref[...] = jnp.zeros_like(acc_ref)

    acc_ref[...] += jnp.dot(a_ref[...], b_ref[...],
                            preferred_element_type=jnp.float32)

    @pl.when(pl.program_id(2) == pl.num_programs(2) - 1)
    def _():
        r = jnp.maximum(acc_ref[...] + bias_ref[...], 0.0)          # project BN+ReLU
        r = r * s2_ref[...] + b2_ref[...] + res_ref[...].astype(jnp.float32)
        o_ref[...] = jnp.maximum(r, 0.0).astype(o_ref.dtype)        # final ReLU


def _pick_tiles(M, Kp, Np):
    # bf16 A/out: pad M to a multiple of 16 so tiles are whole packed sublane
    # tiles (no masked partial stores).  Large-M deployments use TM=512 so the
    # weight matrix is re-streamed half as often.
    if M > 512:
        TM = 512
        Mp = _round_up(M, TM)
    else:
        Mp = _round_up(M, 16)
        TM = Mp
    TN = 256 if Np % 256 == 0 else 128

    def footprint(tm, tk, tn):
        # double-buffered bf16 A/B inputs + double-buffered bf16 output
        # + f32 accumulator scratch.
        return 2 * (tm * tk + tk * tn) * 2 + 2 * tm * tn * 2 + tm * tn * 4

    # Collapse the K reduction into a single grid step whenever it fits VMEM
    # (removes ~0.35us per extra grid step — dominant for small-M GEMMs).
    if footprint(TM, Kp, TN) <= _VMEM_TILE_BUDGET:
        TK = Kp
    else:
        TK = 128
        for t in (2048, 1536, 1024, 768, 512, 384, 256):
            if Kp % t == 0 and footprint(TM, t, TN) <= _VMEM_TILE_BUDGET:
                TK = t
                break

    # v7x shards the parallel grid axes over 2 TensorCores: guarantee >= 2
    # parallel blocks so neither core idles (no effect on v5e/v6e).
    if (Mp // TM) * (Np // TN) < 2:
        if TM % 32 == 0:
            TM //= 2
        elif TN == 256:
            TN = 128
    return Mp, TM, TN, TK


def pallas_gemm(a, w, bias, *, relu=False, tail=None):
    """out = act(a @ w + bias); optional fused BasicBlock tail.

    a: (M, Kp) bf16 activations (K already zero-padded); w: (Kp, Np) bf16
    (pre-padded, BN-folded); bias: (1, Np) f32.  Returns (Mp, Np) bf16.
    """
    M, Kp = a.shape
    _, Np = w.shape
    Mp, TM, TN, TK = _pick_tiles(M, Kp, Np)
    a_p = a if Mp == M else jnp.pad(a, ((0, Mp - M), (0, 0)))

    vec_spec = pl.BlockSpec((1, TN), lambda i, j, k: (0, j))
    in_specs = [pl.BlockSpec((TM, TK), lambda i, j, k: (i, k)),
                pl.BlockSpec((TK, TN), lambda i, j, k: (k, j)),
                vec_spec]
    args = [a_p, w, bias]
    res_bytes = 0

    if tail is None:
        kernel = partial(_gemm_kernel, relu=relu)
    else:
        s2, b2, res = tail                    # s2/b2: (1,Np) f32, res: (M, OC) bf16
        res_p = jnp.pad(res, ((0, Mp - M), (0, Np - res.shape[1])))
        in_specs += [vec_spec, vec_spec,
                     pl.BlockSpec((TM, TN), lambda i, j, k: (i, j))]
        args += [s2, b2, res_p]
        kernel = _gemm_tail_kernel
        res_bytes = Mp * Np * 2

    # TODO(synk): drive the K reduction over the kh*kw taps inside the kernel
    # (per-tap index_map offsets on the NHWC activation) so the im2col-inflated
    # A matrix never exists in HBM at all.
    flops = 2 * Mp * Np * Kp
    bytes_accessed = a_p.size * 2 + w.size * 2 + Mp * Np * 2 + res_bytes
    out = pl.pallas_call(
        kernel,
        out_shape=jax.ShapeDtypeStruct((Mp, Np), jnp.bfloat16),
        grid_spec=pltpu.PrefetchScalarGridSpec(
            num_scalar_prefetch=0,
            grid=(Mp // TM, Np // TN, Kp // TK),
            in_specs=in_specs,
            out_specs=pl.BlockSpec((TM, TN), lambda i, j, k: (i, j)),
            scratch_shapes=[pltpu.VMEM((TM, TN), jnp.float32)],
        ),
        compiler_params=pltpu.CompilerParams(
            dimension_semantics=("parallel", "parallel", "arbitrary"),
            vmem_limit_bytes=32 * 1024 * 1024),
        cost_estimate=pl.CostEstimate(flops=flops, transcendentals=0,
                                      bytes_accessed=bytes_accessed),
    )(*args)
    return out


def gemm_bias_act(a, cp, *, relu=False, tail=None):
    """Dispatch: Pallas MXU kernel for real GEMMs, jnp.dot for degenerate ones."""
    M = a.shape[0]
    OC = cp['oc']
    w, bias = cp['w'], cp['bias']
    if M >= 64 and OC >= 64:
        return pallas_gemm(a, w, bias, relu=relu, tail=tail)[:M, :OC]
    # Tiny / launch-bound GEMM (SE, CBAM MLP, SK fc, spatial attn, and all convs
    # with tiny M): let XLA fuse it instead of padding to a full MXU tile.
    r = jnp.dot(a, w[:, :OC], preferred_element_type=jnp.float32) + bias[:, :OC]
    if relu or tail is not None:
        r = jnp.maximum(r, 0.0)
    if tail is not None:
        s2, b2, res = tail
        r = jnp.maximum(r * s2[:, :OC] + b2[:, :OC] + res.astype(jnp.float32), 0.0)
    return r.astype(jnp.bfloat16)


# ----------------------------------------------------------------------------
# Convolution as NHWC im2col + GEMM (patches built directly in bf16, K-padded)
# ----------------------------------------------------------------------------
def _extract_patches_nhwc(x, kh, kw, stride, padding, dilation, Kp):
    x = x.astype(jnp.bfloat16)
    N, H, W, C = x.shape
    OH = (H + 2 * padding - dilation * (kh - 1) - 1) // stride + 1
    OW = (W + 2 * padding - dilation * (kw - 1) - 1) // stride + 1
    K = kh * kw * C
    if kh == 1 and kw == 1 and padding == 0:
        xs = x if stride == 1 else x[:, ::stride, ::stride, :]
        a = xs.reshape(N * OH * OW, C)
        if Kp > K:
            a = jnp.pad(a, ((0, 0), (0, Kp - K)))
        return a, OH, OW
    xp = x if padding == 0 else jnp.pad(
        x, ((0, 0), (padding, padding), (padding, padding), (0, 0)))
    cols = []
    for i in range(kh):
        for j in range(kw):
            hs, ws = i * dilation, j * dilation
            cols.append(xp[:, hs:hs + stride * (OH - 1) + 1:stride,
                           ws:ws + stride * (OW - 1) + 1:stride, :])
    # Fold the K pad into the same concat so only ONE bf16 tensor materializes.
    if Kp > K:
        cols.append(jnp.zeros((N, OH, OW, Kp - K), jnp.bfloat16))
    patches = jnp.concatenate(cols, axis=-1)          # lane-dense (channels last)
    return patches.reshape(N * OH * OW, Kp), OH, OW


def conv_apply(x, cp, *, stride=1, padding=0, dilation=1, relu=False, tail=None):
    N = x.shape[0]
    patches, OH, OW = _extract_patches_nhwc(x, cp['kh'], cp['kw'],
                                            stride, padding, dilation,
                                            cp['w'].shape[0])
    tail2d = None
    if tail is not None:
        s2, b2, identity = tail
        tail2d = (s2, b2,
                  identity.reshape(-1, identity.shape[-1]).astype(jnp.bfloat16))
    out = gemm_bias_act(patches, cp, relu=relu, tail=tail2d)
    return out.reshape(N, OH, OW, cp['oc'])


# ----------------------------------------------------------------------------
# Parameter construction: BN folding / weight flattening done ONCE here.
# ----------------------------------------------------------------------------
def prepare_conv(w, conv_bias=None, bn=None, eps=BN_EPS):
    """Fold BN into conv weight/bias and pre-layout for the Pallas GEMM."""
    oc, ic, kh, kw = w.shape
    b = conv_bias if conv_bias is not None else jnp.zeros((oc,), jnp.float32)
    if bn is not None:
        gamma, beta, mean, var = bn
        s = gamma / jnp.sqrt(var + eps)
        w = w * s[:, None, None, None]
        b = beta + (b - mean) * s
    K = ic * kh * kw
    Kp, Np = _round_up(K, 128), _round_up(oc, 128)
    w_mat = jnp.transpose(w, (2, 3, 1, 0)).reshape(K, oc)    # (kh,kw,ic) major
    w_mat = jnp.pad(w_mat, ((0, Kp - K), (0, Np - oc))).astype(jnp.bfloat16)
    bias = jnp.pad(b, (0, Np - oc)).reshape(1, Np).astype(jnp.float32)
    return {'w': w_mat, 'bias': bias, 'kh': kh, 'kw': kw, 'oc': oc}


def prepare_bn(gamma, beta, mean, var, eps=BN_EPS):
    # TODO(synk): eval-mode BatchNorm only (running stats); train-mode batch
    # statistics are not implemented.
    c = gamma.shape[0]
    s = gamma / jnp.sqrt(var + eps)
    b = beta - mean * s
    Np = _round_up(c, 128)
    return {'s': jnp.pad(s, (0, Np - c)).reshape(1, Np),
            'b': jnp.pad(b, (0, Np - c)).reshape(1, Np), 'c': c}


class ParamFactory:
    """Mirrors the PyTorch __init__ (kaiming conv weights, identity-init BN)."""

    def __init__(self, key):
        self.key = key
        self.count = 0

    def _next(self):
        self.count += 1
        return jax.random.fold_in(self.key, self.count)

    def _raw_conv(self, ic, oc, kh, kw, bias):
        fan_out = oc * kh * kw
        std = math.sqrt(2.0 / fan_out)             # kaiming_normal_, fan_out, relu
        w = std * jax.random.normal(self._next(), (oc, ic, kh, kw), jnp.float32)
        b = None
        if bias:
            bound = 1.0 / math.sqrt(ic * kh * kw)
            b = jax.random.uniform(self._next(), (oc,), jnp.float32, -bound, bound)
        return w, b

    def conv(self, ic, oc, kh, kw, bias=False):
        w, b = self._raw_conv(ic, oc, kh, kw, bias)
        return prepare_conv(w, b, None)

    def conv_bn(self, ic, oc, kh, kw, bias=False):
        w, b = self._raw_conv(ic, oc, kh, kw, bias)
        bn = (jnp.ones((oc,), jnp.float32), jnp.zeros((oc,), jnp.float32),
              jnp.zeros((oc,), jnp.float32), jnp.ones((oc,), jnp.float32))
        return prepare_conv(w, b, bn)

    def bn(self, c):
        return prepare_bn(jnp.ones((c,), jnp.float32), jnp.zeros((c,), jnp.float32),
                          jnp.zeros((c,), jnp.float32), jnp.ones((c,), jnp.float32))


def make_msfe(pf, c, rates):
    return {'rates': rates,
            'layer1': pf.conv_bn(c, c, 3, 3),
            'layer2': pf.conv_bn(c, c, 3, 3),
            'layer3': pf.conv_bn(c, c, 3, 3),
            'layer4': pf.conv_bn(c, c, 3, 3),
            'project': pf.conv_bn(c, c, 1, 1),
            'SE1': pf.conv(c, c, 1, 1), 'SE2': pf.conv(c, c, 1, 1),
            'SE3': pf.conv(c, c, 1, 1), 'SE4': pf.conv(c, c, 1, 1)}


def make_basicblock(pf, inplanes, planes, stride, has_down):
    p = {'stride': stride,
         'conv1': pf.conv_bn(inplanes, planes, 3, 3),
         'msfe': make_msfe(pf, planes, [2, 4, 8]),
         'bn2': pf.bn(planes)}
    if has_down:
        p['down'] = pf.conv_bn(inplanes, planes, 1, 1)
    return p


def make_cbam(pf, c, ratio=16):
    return {'fc1': pf.conv(c, c // ratio, 1, 1),
            'fc2': pf.conv(c // ratio, c, 1, 1),
            'sa_conv': pf.conv(2, 1, 3, 3)}


def make_ds(pf, c):
    return {'conv': pf.conv_bn(c, 2 * c, 1, 1, bias=True)}


def make_skconv(pf, features, M=2, r=16, L=32):
    d = int(max(features / r, L))
    return {'M': M,
            'fc': pf.conv_bn(features, d, 1, 1),
            'fcs': [pf.conv(d, features, 1, 1, bias=True) for _ in range(M)]}


def make_resnet(pf, layers=(2, 2, 2, 2)):
    params = {'conv1': pf.conv_bn(3, 64, 7, 7)}
    inplanes = [64]

    def make_layer(planes, blocks, stride):
        bl = []
        has_down = (stride != 1 or inplanes[0] != planes)
        bl.append(make_basicblock(pf, inplanes[0], planes, stride, has_down))
        inplanes[0] = planes
        for _ in range(1, blocks):
            bl.append(make_basicblock(pf, inplanes[0], planes, 1, False))
        return bl

    params['layer1'] = make_layer(64, layers[0], 1)
    params['layer2'] = make_layer(128, layers[1], 2)
    params['layer3'] = make_layer(256, layers[2], 2)
    params['layer4'] = make_layer(512, layers[3], 2)
    params['CBAM1'] = make_cbam(pf, 64)
    params['CBAM2'] = make_cbam(pf, 128)
    params['CBAM3'] = make_cbam(pf, 256)
    params['CBAM4'] = make_cbam(pf, 512)
    params['DS1'] = make_ds(pf, 64)
    params['DS2'] = make_ds(pf, 128)
    params['DS3'] = make_ds(pf, 256)
    params['SK1'] = make_skconv(pf, 128)
    params['SK2'] = make_skconv(pf, 256)
    params['SK3'] = make_skconv(pf, 512)
    return params


# ----------------------------------------------------------------------------
# Forward passes (NHWC, bf16 activations internally)
# ----------------------------------------------------------------------------
def maxpool3x3_s2(x):
    return lax.reduce_window(x, jnp.asarray(-jnp.inf, x.dtype), lax.max,
                             (1, 3, 3, 1), (1, 2, 2, 1),
                             [(0, 0), (1, 1), (1, 1), (0, 0)])


def avgpool3x3_s2(x):
    s = lax.reduce_window(x, jnp.asarray(0.0, x.dtype), lax.add,
                          (1, 3, 3, 1), (1, 2, 2, 1),
                          [(0, 0), (1, 1), (1, 1), (0, 0)])
    return s / 9.0          # count_include_pad=True (PyTorch default)


def _gap(y):
    return jnp.mean(y.astype(jnp.float32), axis=(1, 2), keepdims=True)


def msfe_forward(p, x, tail):
    r1, r2, r3 = p['rates']
    y0 = conv_apply(x, p['layer1'], padding=1, dilation=1, relu=True)
    y1 = conv_apply(y0 + x, p['layer2'], padding=r1, dilation=r1, relu=True)
    y2 = conv_apply(y1 + x, p['layer3'], padding=r2, dilation=r2, relu=True)
    y3 = conv_apply(y2 + x, p['layer4'], padding=r3, dilation=r3, relu=True)

    def se(cp, y):
        return conv_apply(_gap(y), cp)                 # tiny 1x1 -> jnp path

    w = jnp.stack([se(p['SE1'], y0), se(p['SE2'], y1),
                   se(p['SE3'], y2), se(p['SE4'], y3)], axis=1)   # (N,4,1,1,C)
    # Matches the reference: Softmax(over the 4 gates)(Sigmoid(w)).
    w = jax.nn.softmax(jax.nn.sigmoid(w.astype(jnp.float32)), axis=1)
    w = w.astype(jnp.bfloat16)
    x_att = w[:, 0] * y0 + w[:, 1] * y1 + w[:, 2] * y2 + w[:, 3] * y3
    # project conv + its BN/ReLU + (bn2 + residual + ReLU) all in one GEMM epilogue.
    return conv_apply(x_att + x, p['project'], relu=True, tail=tail)


def basicblock_forward(p, x):
    out = conv_apply(x, p['conv1'], stride=p['stride'], padding=1, relu=True)
    if 'down' in p:
        identity = conv_apply(x, p['down'], stride=p['stride'])
    else:
        identity = x
    return msfe_forward(p['msfe'], out,
                        (p['bn2']['s'], p['bn2']['b'], identity))


def cbam_forward(p, x):
    avg = _gap(x)
    mx = jnp.max(x, axis=(1, 2), keepdims=True)

    def mlp(v):
        h = conv_apply(v, p['fc1'], relu=True)
        return conv_apply(h, p['fc2'])

    act = jax.nn.sigmoid((mlp(avg) + mlp(mx)).astype(jnp.float32)).astype(jnp.bfloat16)
    ca_out = x * act            # ChannelAttention output (= x * act)
    out = x * ca_out            # NOTE: reference CBAM multiplies x twice (kept as-is)
    avgout = jnp.mean(out.astype(jnp.float32), axis=-1,
                      keepdims=True).astype(jnp.bfloat16)
    maxout = jnp.max(out, axis=-1, keepdims=True)
    x1 = jnp.concatenate([avgout, maxout], axis=-1)
    x1 = jax.nn.sigmoid(conv_apply(x1, p['sa_conv'], padding=1))
    sa_out = out * x1           # SpatialAttention output
    result = out * sa_out       # reference multiplies `out` twice as well
    return x + result


def ds_forward(p, x):
    return conv_apply(avgpool3x3_s2(x), p['conv'], relu=True)


def skconv_forward(p, x, y):
    feats = jnp.stack([x, y], axis=1)                   # (B, M=2, H, W, C)
    feats_u = feats.sum(axis=1)
    feats_s = _gap(feats_u)
    feats_z = conv_apply(feats_s, p['fc'], relu=True)
    attn = jnp.stack([conv_apply(feats_z, fc) for fc in p['fcs']], axis=1)
    attn = jax.nn.softmax(attn.astype(jnp.float32), axis=1).astype(jnp.bfloat16)
    return (feats * attn).sum(axis=1)


def resnet_forward(params, x_nchw):
    # NCHW -> NHWC (lane-dense channels), bf16 internal activations.
    x = jnp.transpose(x_nchw, (0, 2, 3, 1)).astype(jnp.bfloat16)
    x = conv_apply(x, params['conv1'], stride=2, padding=3, relu=True)
    x = maxpool3x3_s2(x)

    def run_layer(blocks, h):
        for b in blocks:
            h = basicblock_forward(b, h)
        return h

    x1 = run_layer(params['layer1'], x)
    m1 = cbam_forward(params['CBAM1'], x1)
    f1 = ds_forward(params['DS1'], m1)
    x2 = run_layer(params['layer2'], x1)
    m2 = cbam_forward(params['CBAM2'], x2)
    sk1 = skconv_forward(params['SK1'], f1, m2)
    f2 = ds_forward(params['DS2'], sk1)
    x3 = run_layer(params['layer3'], x2)
    m3 = cbam_forward(params['CBAM3'], x3)
    sk2 = skconv_forward(params['SK2'], f2, m3)
    f3 = ds_forward(params['DS3'], sk2)
    x4 = run_layer(params['layer4'], x3)
    m4 = cbam_forward(params['CBAM4'], x4)
    out = skconv_forward(params['SK3'], f3, m4)
    # Back to NCHW, f32, at the boundary.
    return jnp.transpose(out, (0, 3, 1, 2)).astype(jnp.float32)


if __name__ == "__main__":
    key = jax.random.PRNGKey(0)
    pkey, xkey = jax.random.split(key)
    # Weight prep (BN fold, flatten, pad, bf16 cast) happens once here, outside jit.
    params = make_resnet(ParamFactory(pkey), layers=(2, 2, 2, 2))   # ResNet-18-style
    x = jax.random.normal(xkey, (2, 3, 32, 32), jnp.float32)        # NCHW input
    fwd = jax.jit(partial(resnet_forward, params))
    out = jax.block_until_ready(fwd(x))
    assert out.shape == (2, 512, 1, 1)
    assert bool(jnp.all(jnp.isfinite(out)))
    print("KERNEL_OK")
</pallas_src>

<mosaic_0001>
module attributes {stable_mosaic.version = 11 : i64} {
  func.func @_gemm_kernel(%arg0: i32, %arg1: i32, %arg2: i32, %arg3: memref<256x256xbf16, #tpu.memory_space<vmem>>, %arg4: memref<256x128xbf16, #tpu.memory_space<vmem>>, %arg5: memref<1x128xf32, #tpu.memory_space<vmem>>, %arg6: memref<256x128xbf16, #tpu.memory_space<vmem>>, %arg7: memref<256x128xf32, #tpu.memory_space<vmem>>) attributes {dimension_semantics = [#tpu.dimension_semantics<parallel>, #tpu.dimension_semantics<parallel>, #tpu.dimension_semantics<arbitrary>], iteration_bounds = array<i64: 2, 1, 1>, scalar_prefetch = 0 : i64, scratch_operands = 1 : i64, tpu.core_type = #tpu.core_type<tc>, window_params = [{transform_indices = @transform_0, window_bounds = array<i64: 256, 256>}, {transform_indices = @transform_1, window_bounds = array<i64: 256, 128>}, {transform_indices = @transform_2, window_bounds = array<i64: 1, 128>}, {transform_indices = @transform_3, window_bounds = array<i64: 256, 128>}]} {
    %c0_i32 = arith.constant 0 : i32
    %0 = arith.cmpi eq, %arg2, %c0_i32 : i32
    %1 = arith.extui %0 : i1 to i32
    %c0_i32_0 = arith.constant 0 : i32
    %2 = arith.cmpi ne, %1, %c0_i32_0 : i32
    scf.if %2 {
      %cst_10 = arith.constant 0.000000e+00 : f32
      %12 = vector.broadcast %cst_10 : f32 to vector<256x128xf32>
      %c0_11 = arith.constant 0 : index
      %c0_12 = arith.constant 0 : index
      %13 = vector.load %arg7[%c0_11, %c0_12] : memref<256x128xf32, #tpu.memory_space<vmem>>, vector<256x128xf32>
      tpu.vector_store %arg7[%c0_11, %c0_12], %12 {strides = array<i32>} : memref<256x128xf32, #tpu.memory_space<vmem>>, vector<256x128xf32>,
    } else {
    }
    %c0 = arith.constant 0 : index
    %c0_1 = arith.constant 0 : index
    %3 = vector.load %arg7[%c0, %c0_1] : memref<256x128xf32, #tpu.memory_space<vmem>>, vector<256x128xf32>
    %c0_2 = arith.constant 0 : index
    %c0_3 = arith.constant 0 : index
    %4 = vector.load %arg3[%c0_2, %c0_3] : memref<256x256xbf16, #tpu.memory_space<vmem>>, vector<256x256xbf16>
    %c0_4 = arith.constant 0 : index
    %c0_5 = arith.constant 0 : index
    %5 = vector.load %arg4[%c0_4, %c0_5] : memref<256x128xbf16, #tpu.memory_space<vmem>>, vector<256x128xbf16>
    %cst = arith.constant dense<0.000000e+00> : vector<256x128xf32>
    %6 = tpu.matmul %4, %5, %cst {dimension_numbers = #tpu.dot_dimension_numbers<[1], [0], [0], [1], [0, 0, 1, 1], [], []>} : vector<256x256xbf16>, vector<256x128xbf16>, vector<256x128xf32> -> vector<256x128xf32>
    %7 = arith.addf %3, %6 : vector<256x128xf32>
    %c0_6 = arith.constant 0 : index
    %c0_7 = arith.constant 0 : index
    %8 = vector.load %arg7[%c0_6, %c0_7] : memref<256x128xf32, #tpu.memory_space<vmem>>, vector<256x128xf32>
    tpu.vector_store %arg7[%c0_6, %c0_7], %7 {strides = array<i32>} : memref<256x128xf32, #tpu.memory_space<vmem>>, vector<256x128xf32>,
    %c0_i32_8 = arith.constant 0 : i32
    %9 = arith.cmpi eq, %arg2, %c0_i32_8 : i32
    %10 = arith.extui %9 : i1 to i32
    %c0_i32_9 = arith.constant 0 : i32
    %11 = arith.cmpi ne, %10, %c0_i32_9 : i32
    scf.if %11 {
      %c0_10 = arith.constant 0 : index
      %c0_11 = arith.constant 0 : index
      %12 = vector.load %arg7[%c0_10, %c0_11] : memref<256x128xf32, #tpu.memory_space<vmem>>, vector<256x128xf32>
      %c0_12 = arith.constant 0 : index
      %c0_13 = arith.constant 0 : index
      %13 = vector.load %arg5[%c0_12, %c0_13] : memref<1x128xf32, #tpu.memory_space<vmem>>, vector<1x128xf32>
      %14 = vector.broadcast %13 : vector<1x128xf32> to vector<256x128xf32>
      %15 = arith.addf %12, %14 : vector<256x128xf32>
      %cst_14 = arith.constant 0.000000e+00 : f32
      %16 = vector.broadcast %cst_14 : f32 to vector<256x128xf32>
      %17 = arith.maximumf %15, %16 : vector<256x128xf32>
      %18 = arith.truncf %17 : vector<256x128xf32> to vector<256x128xbf16>
      %c0_15 = arith.constant 0 : index
      %c0_16 = arith.constant 0 : index
      %19 = vector.load %arg6[%c0_15, %c0_16] : memref<256x128xbf16, #tpu.memory_space<vmem>>, vector<256x128xbf16>
      tpu.vector_store %arg6[%c0_15, %c0_16], %18 {strides = array<i32>} : memref<256x128xbf16, #tpu.memory_space<vmem>>, vector<256x128xbf16>,
    } else {
    }
    return
  }
  func.func @transform_0(%arg0: i32, %arg1: i32, %arg2: i32) -> (i32, i32) {
    %c0_i32 = arith.constant 0 : i32
    return %arg0, %arg2 : i32, i32
  }
  func.func @transform_1(%arg0: i32, %arg1: i32, %arg2: i32) -> (i32, i32) {
    %c0_i32 = arith.constant 0 : i32
    return %arg2, %arg1 : i32, i32
  }
  func.func @transform_2(%arg0: i32, %arg1: i32, %arg2: i32) -> (i32, i32) {
    %c0_i32 = arith.constant 0 : i32
    %c0_i32_0 = arith.constant 0 : i32
    return %c0_i32, %arg1 : i32, i32
  }
  func.func @transform_3(%arg0: i32, %arg1: i32, %arg2: i32) -> (i32, i32) {
    %c0_i32 = arith.constant 0 : i32
    return %arg0, %arg1 : i32, i32
  }
}

module attributes {stable_mosaic.version = 11 : i64} {
  func.func @_gemm_kernel(%arg0: i32, %arg1: i32, %arg2: i32, %arg3: memref<64x640xbf16, #tpu.memory_space<vmem>>, %arg4: memref<640x128xbf16, #tpu.memory_space<vmem>>, %arg5: memref<1x128xf32, #tpu.memory_space<vmem>>, %arg6: memref<64x128xbf16, #tpu.memory_space<vmem>>, %arg7: memref<64x128xf32, #tpu.memory_space<vmem>>) attributes {dimension_semantics = [#tpu.dimension_semantics<parallel>, #tpu.dimension_semantics<parallel>, #tpu.dimension_semantics<arbitrary>], iteration_bounds = array<i64: 2, 1, 1>, scalar_prefetch = 0 : i64, scratch_operands = 1 : i64, tpu.core_type = #tpu.core_type<tc>, window_params = [{transform_indices = @transform_0, window_bounds = array<i64: 64, 640>}, {transform_indices = @transform_1, window_bounds = array<i64: 640, 128>}, {transform_indices = @transform_2, window_bounds = array<i64: 1, 128>}, {transform_indices = @transform_3, window_bounds = array<i64: 64, 128>}]} {
    %c0_i32 = arith.constant 0 : i32
    %0 = arith.cmpi eq, %arg2, %c0_i32 : i32
    %1 = arith.extui %0 : i1 to i32
    %c0_i32_0 = arith.constant 0 : i32
    %2 = arith.cmpi ne, %1, %c0_i32_0 : i32
    scf.if %2 {
      %cst_10 = arith.constant 0.000000e+00 : f32
      %12 = vector.broadcast %cst_10 : f32 to vector<64x128xf32>
      %c0_11 = arith.constant 0 : index
      %c0_12 = arith.constant 0 : index
      %13 = vector.load %arg7[%c0_11, %c0_12] : memref<64x128xf32, #tpu.memory_space<vmem>>, vector<64x128xf32>
      tpu.vector_store %arg7[%c0_11, %c0_12], %12 {strides = array<i32>} : memref<64x128xf32, #tpu.memory_space<vmem>>, vector<64x128xf32>,
    } else {
    }
    %c0 = arith.constant 0 : index
    %c0_1 = arith.constant 0 : index
    %3 = vector.load %arg7[%c0, %c0_1] : memref<64x128xf32, #tpu.memory_space<vmem>>, vector<64x128xf32>
    %c0_2 = arith.constant 0 : index
    %c0_3 = arith.constant 0 : index
    %4 = vector.load %arg3[%c0_2, %c0_3] : memref<64x640xbf16, #tpu.memory_space<vmem>>, vector<64x640xbf16>
    %c0_4 = arith.constant 0 : index
    %c0_5 = arith.constant 0 : index
    %5 = vector.load %arg4[%c0_4, %c0_5] : memref<640x128xbf16, #tpu.memory_space<vmem>>, vector<640x128xbf16>
    %cst = arith.constant dense<0.000000e+00> : vector<64x128xf32>
    %6 = tpu.matmul %4, %5, %cst {dimension_numbers = #tpu.dot_dimension_numbers<[1], [0], [0], [1], [0, 0, 1, 1], [], []>} : vector<64x640xbf16>, vector<640x128xbf16>, vector<64x128xf32> -> vector<64x128xf32>
    %7 = arith.addf %3, %6 : vector<64x128xf32>
    %c0_6 = arith.constant 0 : index
    %c0_7 = arith.constant 0 : index
    %8 = vector.load %arg7[%c0_6, %c0_7] : memref<64x128xf32, #tpu.memory_space<vmem>>, vector<64x128xf32>
    tpu.vector_store %arg7[%c0_6, %c0_7], %7 {strides = array<i32>} : memref<64x128xf32, #tpu.memory_space<vmem>>, vector<64x128xf32>,
    %c0_i32_8 = arith.constant 0 : i32
    %9 = arith.cmpi eq, %arg2, %c0_i32_8 : i32
    %10 = arith.extui %9 : i1 to i32
    %c0_i32_9 = arith.constant 0 : i32
    %11 = arith.cmpi ne, %10, %c0_i32_9 : i32
    scf.if %11 {
      %c0_10 = arith.constant 0 : index
      %c0_11 = arith.constant 0 : index
      %12 = vector.load %arg7[%c0_10, %c0_11] : memref<64x128xf32, #tpu.memory_space<vmem>>, vector<64x128xf32>
      %c0_12 = arith.constant 0 : index
      %c0_13 = arith.constant 0 : index
      %13 = vector.load %arg5[%c0_12, %c0_13] : memref<1x128xf32, #tpu.memory_space<vmem>>, vector<1x128xf32>
      %14 = vector.broadcast %13 : vector<1x128xf32> to vector<64x128xf32>
      %15 = arith.addf %12, %14 : vector<64x128xf32>
      %cst_14 = arith.constant 0.000000e+00 : f32
      %16 = vector.broadcast %cst_14 : f32 to vector<64x128xf32>
      %17 = arith.maximumf %15, %16 : vector<64x128xf32>
      %18 = arith.truncf %17 : vector<64x128xf32> to vector<64x128xbf16>
      %c0_15 = arith.constant 0 : index
      %c0_16 = arith.constant 0 : index
      %19 = vector.load %arg6[%c0_15, %c0_16] : memref<64x128xbf16, #tpu.memory_space<vmem>>, vector<64x128xbf16>
      tpu.vector_store %arg6[%c0_15, %c0_16], %18 {strides = array<i32>} : memref<64x128xbf16, #tpu.memory_space<vmem>>, vector<64x128xbf16>,
    } else {
    }
    return
  }
  func.func @transform_0(%arg0: i32, %arg1: i32, %arg2: i32) -> (i32, i32) {
    %c0_i32 = arith.constant 0 : i32
    return %arg0, %arg2 : i32, i32
  }
  func.func @transform_1(%arg0: i32, %arg1: i32, %arg2: i32) -> (i32, i32) {
    %c0_i32 = arith.constant 0 : i32
    return %arg2, %arg1 : i32, i32
  }
  func.func @transform_2(%arg0: i32, %arg1: i32, %arg2: i32) -> (i32, i32) {
    %c0_i32 = arith.constant 0 : i32
    %c0_i32_0 = arith.constant 0 : i32
    return %c0_i32, %arg1 : i32, i32
  }
  func.func @transform_3(%arg0: i32, %arg1: i32, %arg2: i32) -> (i32, i32) {
    %c0_i32 = arith.constant 0 : i32
    return %arg0, %arg1 : i32, i32
  }
}

module attributes {stable_mosaic.version = 11 : i64} {
  func.func @_gemm_tail_kernel(%arg0: i32, %arg1: i32, %arg2: i32, %arg3: memref<64x128xbf16, #tpu.memory_space<vmem>>, %arg4: memref<128x128xbf16, #tpu.memory_space<vmem>>, %arg5: memref<1x128xf32, #tpu.memory_space<vmem>>, %arg6: memref<1x128xf32, #tpu.memory_space<vmem>>, %arg7: memref<1x128xf32, #tpu.memory_space<vmem>>, %arg8: memref<64x128xbf16, #tpu.memory_space<vmem>>, %arg9: memref<64x128xbf16, #tpu.memory_space<vmem>>, %arg10: memref<64x128xf32, #tpu.memory_space<vmem>>) attributes {dimension_semantics = [#tpu.dimension_semantics<parallel>, #tpu.dimension_semantics<parallel>, #tpu.dimension_semantics<arbitrary>], iteration_bounds = array<i64: 2, 1, 1>, scalar_prefetch = 0 : i64, scratch_operands = 1 : i64, tpu.core_type = #tpu.core_type<tc>, window_params = [{transform_indices = @transform_0, window_bounds = array<i64: 64, 128>}, {transform_indices = @transform_1, window_bounds = array<i64: 128, 128>}, {transform_indices = @transform_2, window_bounds = array<i64: 1, 128>}, {transform_indices = @transform_3, window_bounds = array<i64: 1, 128>}, {transform_indices = @transform_4, window_bounds = array<i64: 1, 128>}, {transform_indices = @transform_5, window_bounds = array<i64: 64, 128>}, {transform_indices = @transform_6, window_bounds = array<i64: 64, 128>}]} {
    %c0_i32 = arith.constant 0 : i32
    %0 = arith.cmpi eq, %arg2, %c0_i32 : i32
    %1 = arith.extui %0 : i1 to i32
    %c0_i32_0 = arith.constant 0 : i32
    %2 = arith.cmpi ne, %1, %c0_i32_0 : i32
    scf.if %2 {
      %cst_10 = arith.constant 0.000000e+00 : f32
      %12 = vector.broadcast %cst_10 : f32 to vector<64x128xf32>
      %c0_11 = arith.constant 0 : index
      %c0_12 = arith.constant 0 : index
      %13 = vector.load %arg10[%c0_11, %c0_12] : memref<64x128xf32, #tpu.memory_space<vmem>>, vector<64x128xf32>
      tpu.vector_store %arg10[%c0_11, %c0_12], %12 {strides = array<i32>} : memref<64x128xf32, #tpu.memory_space<vmem>>, vector<64x128xf32>,
    } else {
    }
    %c0 = arith.constant 0 : index
    %c0_1 = arith.constant 0 : index
    %3 = vector.load %arg10[%c0, %c0_1] : memref<64x128xf32, #tpu.memory_space<vmem>>, vector<64x128xf32>
    %c0_2 = arith.constant 0 : index
    %c0_3 = arith.constant 0 : index
    %4 = vector.load %arg3[%c0_2, %c0_3] : memref<64x128xbf16, #tpu.memory_space<vmem>>, vector<64x128xbf16>
    %c0_4 = arith.constant 0 : index
    %c0_5 = arith.constant 0 : index
    %5 = vector.load %arg4[%c0_4, %c0_5] : memref<128x128xbf16, #tpu.memory_space<vmem>>, vector<128x128xbf16>
    %cst = arith.constant dense<0.000000e+00> : vector<64x128xf32>
    %6 = tpu.matmul %4, %5, %cst {dimension_numbers = #tpu.dot_dimension_numbers<[1], [0], [0], [1], [0, 0, 1, 1], [], []>} : vector<64x128xbf16>, vector<128x128xbf16>, vector<64x128xf32> -> vector<64x128xf32>
    %7 = arith.addf %3, %6 : vector<64x128xf32>
    %c0_6 = arith.constant 0 : index
    %c0_7 = arith.constant 0 : index
    %8 = vector.load %arg10[%c0_6, %c0_7] : memref<64x128xf32, #tpu.memory_space<vmem>>, vector<64x128xf32>
    tpu.vector_store %arg10[%c0_6, %c0_7], %7 {strides = array<i32>} : memref<64x128xf32, #tpu.memory_space<vmem>>, vector<64x128xf32>,
    %c0_i32_8 = arith.constant 0 : i32
    %9 = arith.cmpi eq, %arg2, %c0_i32_8 : i32
    %10 = arith.extui %9 : i1 to i32
    %c0_i32_9 = arith.constant 0 : i32
    %11 = arith.cmpi ne, %10, %c0_i32_9 : i32
    scf.if %11 {
      %c0_10 = arith.constant 0 : index
      %c0_11 = arith.constant 0 : index
      %12 = vector.load %arg10[%c0_10, %c0_11] : memref<64x128xf32, #tpu.memory_space<vmem>>, vector<64x128xf32>
      %c0_12 = arith.constant 0 : index
      %c0_13 = arith.constant 0 : index
      %13 = vector.load %arg5[%c0_12, %c0_13] : memref<1x128xf32, #tpu.memory_space<vmem>>, vector<1x128xf32>
      %14 = vector.broadcast %13 : vector<1x128xf32> to vector<64x128xf32>
      %15 = arith.addf %12, %14 : vector<64x128xf32>
      %cst_14 = arith.constant 0.000000e+00 : f32
      %16 = vector.broadcast %cst_14 : f32 to vector<64x128xf32>
      %17 = arith.maximumf %15, %16 : vector<64x128xf32>
      %c0_15 = arith.constant 0 : index
      %c0_16 = arith.constant 0 : index
      %18 = vector.load %arg6[%c0_15, %c0_16] : memref<1x128xf32, #tpu.memory_space<vmem>>, vector<1x128xf32>
      %19 = vector.broadcast %18 : vector<1x128xf32> to vector<64x128xf32>
      %20 = arith.mulf %17, %19 : vector<64x128xf32>
      %c0_17 = arith.constant 0 : index
      %c0_18 = arith.constant 0 : index
      %21 = vector.load %arg7[%c0_17, %c0_18] : memref<1x128xf32, #tpu.memory_space<vmem>>, vector<1x128xf32>
      %22 = vector.broadcast %21 : vector<1x128xf32> to vector<64x128xf32>
      %23 = arith.addf %20, %22 : vector<64x128xf32>
      %c0_19 = arith.constant 0 : index
      %c0_20 = arith.constant 0 : index
      %24 = vector.load %arg8[%c0_19, %c0_20] : memref<64x128xbf16, #tpu.memory_space<vmem>>, vector<64x128xbf16>
      %25 = arith.extf %24 : vector<64x128xbf16> to vector<64x128xf32>
      %26 = arith.addf %23, %25 : vector<64x128xf32>
      %cst_21 = arith.constant 0.000000e+00 : f32
      %27 = vector.broadcast %cst_21 : f32 to vector<64x128xf32>
      %28 = arith.maximumf %26, %27 : vector<64x128xf32>
      %29 = arith.truncf %28 : vector<64x128xf32> to vector<64x128xbf16>
      %c0_22 = arith.constant 0 : index
      %c0_23 = arith.constant 0 : index
      %30 = vector.load %arg9[%c0_22, %c0_23] : memref<64x128xbf16, #tpu.memory_space<vmem>>, vector<64x128xbf16>
      tpu.vector_store %arg9[%c0_22, %c0_23], %29 {strides = array<i32>} : memref<64x128xbf16, #tpu.memory_space<vmem>>, vector<64x128xbf16>,
    } else {
    }
    return
  }
  func.func @transform_0(%arg0: i32, %arg1: i32, %arg2: i32) -> (i32, i32) {
    %c0_i32 = arith.constant 0 : i32
    return %arg0, %arg2 : i32, i32
  }
  func.func @transform_1(%arg0: i32, %arg1: i32, %arg2: i32) -> (i32, i32) {
    %c0_i32 = arith.constant 0 : i32
    return %arg2, %arg1 : i32, i32
  }
  func.func @transform_2(%arg0: i32, %arg1: i32, %arg2: i32) -> (i32, i32) {
    %c0_i32 = arith.constant 0 : i32
    %c0_i32_0 = arith.constant 0 : i32
    return %c0_i32, %arg1 : i32, i32
  }
  func.func @transform_3(%arg0: i32, %arg1: i32, %arg2: i32) -> (i32, i32) {
    %c0_i32 = arith.constant 0 : i32
    %c0_i32_0 = arith.constant 0 : i32
    return %c0_i32, %arg1 : i32, i32
  }
  func.func @transform_4(%arg0: i32, %arg1: i32, %arg2: i32) -> (i32, i32) {
    %c0_i32 = arith.constant 0 : i32
    %c0_i32_0 = arith.constant 0 : i32
    return %c0_i32, %arg1 : i32, i32
  }
  func.func @transform_5(%arg0: i32, %arg1: i32, %arg2: i32) -> (i32, i32) {
    %c0_i32 = arith.constant 0 : i32
    return %arg0, %arg1 : i32, i32
  }
  func.func @transform_6(%arg0: i32, %arg1: i32, %arg2: i32) -> (i32, i32) {
    %c0_i32 = arith.constant 0 : i32
    return %arg0, %arg1 : i32, i32
  }
}

</mosaic_0001>

<llo_original>
// kernel: resnet_forward.13
$region0: #{resnet_forward.13}
  #allocation0 [shape = 'u32[]', space=smem, size = 0x4, offset = 0x4, fixed_abs, tag = 'smem constant byte address 0x4 - core index']
  #allocation1 [shape = 'u32[144,128]{1,0:T(1,128)}', space=vmem, size = 0x12000, scoped, tag = 'internal scratch']
  #allocation2 [shape = 'f32[256,128]{1,0:T(8,128)}', space=vmem, size = 0x20000, scoped, tag = 'scratch operand']
  %s0 = inlined_call_operand.vmem [shape: bf16[512,256], index: 0, kind: input, shape index: {}]
  %s1 = inlined_call_operand.vmem [shape: bf16[256,128], index: 1, kind: input, shape index: {}]
  %s2 = inlined_call_operand.vmem [shape: f32[1,128], index: 2, kind: input, shape index: {}]
  %s3 = inlined_call_operand.vmem [shape: bf16[512,128], index: 3, kind: output, shape index: {}]
  %s4 = sld [smem:[#allocation0]]
  $region53: #{resnet_forward.13} parent=0
    _
  %s6 = ssub.s32 1, %s4
  %s7 = scalar_select 0, %s6, %s4
  loop: start=0, step=1, limit=4
  $region2: #{resnet_forward.13} parent=0 // loop_pre_header
    _
  $region3: #{resnet_forward.13} parent=0 // loop_header
    %s9 = sphi 0, %s13
    %p10 = scmp.ge.s32.totalorder %s9, 4
    %s16 = sphi 0, %s35
    %s17 = sphi 0, %s31
    %s18 = sphi 0, %s27
    %s19 = sphi 0, %s16
    %s20 = sphi 0, %s17
    %s21 = sphi 0, %s18
    %s22 = sphi 0, %s19
    %s23 = sphi 0, %s20
    %s24 = sphi 0, %s21
    %s40 = sphi 0, %s42
    %s43 = sphi 0, %s40
    %s44 = sphi 0, %s43
    %s60 = sphi 0, %s44
    %s68 = sphi 0, %s70
    %s71 = sphi 0, %s68
    %s72 = sphi 0, %s71
    %s88 = sphi 0, %s72
    %s94 = sphi 0, %s96
    %s97 = sphi 0, %s94
    %s98 = sphi 0, %s97
    %s114 = sphi 0, %s98
    %s122 = sphi 0, %s124
    %s125 = sphi 0, %s122
    %s126 = sphi 0, %s125
    %s142 = sphi 0, %s126
  $region4: #{resnet_forward.13} parent=0 // loop_header_branch
    %12 = sbr.rel (%p10) target = $region8
  $region5: #{resnet_forward.13} parent=0 // loop_body
    %s14 = ssub.s32 %s9, 1
    %s15 = ssub.s32 %s9, 2
    %s25 = sadd.s32 1, %s18
    %p26 = scmp.ge.s32.totalorder %s25, 1
    %s27 = scalar_select %p26, 0, %s25
    %s28 = sadd.s32 1, %s17
    %s29 = scalar_select %p26, %s28, %s17
    %p30 = scmp.ge.s32.totalorder %s29, 1
    %s31 = scalar_select %p30, 0, %s29
    %s32 = sadd.s32 1, %s16
    %s33 = scalar_select %p30, %s32, %s16
    %p34 = scmp.ge.s32.totalorder %s33, 2
    %s35 = scalar_select %p34, 0, %s33
    %s36 = ssub.s32 %s16, %s35
    %s37 = ssub.s32 %s18, %s27
    %s38 = sor.u32 %s36, %s37
    %p39 = scmp.eq.s32.totalorder %s38, 0
    %s41 = sadd.s32 %s40, 1
    %s42 = scalar_select %p39, %s40, %s41
    %p45 = pneg %p39
    %p46 = scmp.eq.s32.totalorder %s9, 1
    %p47 = por %p45, %p46
    %p48 = scmp.ne.s32.totalorder %s40, %s43
    %p49 = scmp.eq.s32.totalorder %s9, 0
    %p50 = por %p48, %p49
    %p51 = scmp.ne.s32.totalorder %s40, %s43
    %p52 = scmp.eq.s32.totalorder %s14, 1
    %p53 = por %p51, %p52
    %p54 = scmp.ne.s32.totalorder %s43, %s44
    %p55 = scmp.eq.s32.totalorder %s14, 0
    %p56 = por %p54, %p55
    %p57 = scmp.ne.s32.totalorder %s43, %s44
    %p58 = scmp.eq.s32.totalorder %s15, 1
    %p59 = por %p57, %p58
    %p61 = scmp.ne.s32.totalorder %s44, %s60
    %p62 = scmp.eq.s32.totalorder %s15, 0
    %p63 = por %p61, %p62
    %s64 = ssub.s32 %s18, %s27
    %s65 = ssub.s32 %s17, %s31
    %s66 = sor.u32 %s64, %s65
    %p67 = scmp.eq.s32.totalorder %s66, 0
    %s69 = sadd.s32 %s68, 1
    %s70 = scalar_select %p67, %s68, %s69
    %p73 = pneg %p67
    %p74 = scmp.eq.s32.totalorder %s9, 1
    %p75 = por %p73, %p74
    %p76 = scmp.ne.s32.totalorder %s68, %s71
    %p77 = scmp.eq.s32.totalorder %s9, 0
    %p78 = por %p76, %p77
    %p79 = scmp.ne.s32.totalorder %s68, %s71
    %p80 = scmp.eq.s32.totalorder %s14, 1
    %p81 = por %p79, %p80
    %p82 = scmp.ne.s32.totalorder %s71, %s72
    %p83 = scmp.eq.s32.totalorder %s14, 0
    %p84 = por %p82, %p83
    %p85 = scmp.ne.s32.totalorder %s71, %s72
    %p86 = scmp.eq.s32.totalorder %s15, 1
    %p87 = por %p85, %p86
    %p89 = scmp.ne.s32.totalorder %s72, %s88
    %p90 = scmp.eq.s32.totalorder %s15, 0
    %p91 = por %p89, %p90
    %s92 = ssub.s32 %s17, %s31
    %p93 = scmp.eq.s32.totalorder %s92, 0
    %s95 = sadd.s32 %s94, 1
    %s96 = scalar_select %p93, %s94, %s95
    %p99 = pneg %p93
    %p100 = scmp.eq.s32.totalorder %s9, 1
    %p101 = por %p99, %p100
    %p102 = scmp.ne.s32.totalorder %s94, %s97
    %p103 = scmp.eq.s32.totalorder %s9, 0
    %p104 = por %p102, %p103
    %p105 = scmp.ne.s32.totalorder %s94, %s97
    %p106 = scmp.eq.s32.totalorder %s14, 1
    %p107 = por %p105, %p106
    %p108 = scmp.ne.s32.totalorder %s97, %s98
    %p109 = scmp.eq.s32.totalorder %s14, 0
    %p110 = por %p108, %p109
    %p111 = scmp.ne.s32.totalorder %s97, %s98
    %p112 = scmp.eq.s32.totalorder %s15, 1
    %p113 = por %p111, %p112
    %p115 = scmp.ne.s32.totalorder %s98, %s114
    %p116 = scmp.eq.s32.totalorder %s15, 0
    %p117 = por %p115, %p116
    %s118 = ssub.s32 %s16, %s35
    %s119 = ssub.s32 %s17, %s31
    %s120 = sor.u32 %s118, %s119
    %p121 = scmp.eq.s32.totalorder %s120, 0
    %s123 = sadd.s32 %s122, 1
    %s124 = scalar_select %p121, %s122, %s123
    %p127 = pneg %p121
    %p128 = scmp.eq.s32.totalorder %s9, 1
    %p129 = por %p127, %p128
    %p130 = scmp.ne.s32.totalorder %s122, %s125
    %p131 = scmp.eq.s32.totalorder %s9, 0
    %p132 = por %p130, %p131
    %p133 = scmp.ne.s32.totalorder %s122, %s125
    %p134 = scmp.eq.s32.totalorder %s14, 1
    %p135 = por %p133, %p134
    %p136 = scmp.ne.s32.totalorder %s125, %s126
    %p137 = scmp.eq.s32.totalorder %s14, 0
    %p138 = por %p136, %p137
    %p139 = scmp.ne.s32.totalorder %s125, %s126
    %p140 = scmp.eq.s32.totalorder %s15, 1
    %p141 = por %p139, %p140
    %p143 = scmp.ne.s32.totalorder %s126, %s142
    %p144 = scmp.eq.s32.totalorder %s15, 0
    %p145 = por %p143, %p144
    %p146 = scmp.le.s32.totalorder 1, %s9
    %p147 = scmp.lt.s32.totalorder %s9, 3
    %p148 = pnand %p146, %p147
    %p149 = pneg %p148
    // Predicated region
    $region9: #{resnet_forward.13} parent=5 // pred_check
      _
    $region10: #{resnet_forward.13} parent=5 // pred_check_branch
      %151 = sbr.rel (%p148) target = $region12
    $region11: #{resnet_forward.13} parent=5 // pred_region
      %s152 = ssub.s32 %s9, 1
      // Predicated region
      $region13: #{resnet_forward.13} parent=11 // pred_check
        %p153 = pneg %p84
      $region14: #{resnet_forward.13} parent=11 // pred_check_branch
        %155 = sbr.rel (%p153) target = $region16
      $region15: #{resnet_forward.13} parent=11 // pred_region
        %s156 = smul.u32 32, %s21
        %p157 = scmp.lt.s32.totalorder %s156, 31
        %s158 = scalar_select %p157, %s156, 31
        %p159 = scmp.lt.s32.totalorder %s20, 0
        %s160 = scalar_select %p159, %s20, 0
        %s161 = sadd.s32 %s160, %s158
        %s162 = smul.addr %s161, 4
        %s163 = scalar_lea.vmem %s1, %s162
        %s164 = smul.u32 32, %s21
      $region16: #{resnet_forward.13} parent=11 // pred_fallthru
        _
      // Predicated region
      $region17: #{resnet_forward.13} parent=11 // pred_check
        %p165 = pneg %p110
      $region18: #{resnet_forward.13} parent=11 // pred_check_branch
        %167 = sbr.rel (%p165) target = $region20
      $region19: #{resnet_forward.13} parent=11 // pred_region
        %p168 = scmp.lt.s32.totalorder %s20, 0
        %s169 = scalar_select %p168, %s20, 0
        %s170 = scalar_lea.vmem %s2, %s169
      $region20: #{resnet_forward.13} parent=11 // pred_fallthru
        _
    $region12: #{resnet_forward.13} parent=5 // pred_fallthru
      _
    %p171 = scmp.lt.s32.totalorder %s9, 2
    // Predicated region
    $region21: #{resnet_forward.13} parent=5 // pred_check
      %p172 = pneg %p171
    $region22: #{resnet_forward.13} parent=5 // pred_check_branch
      %174 = sbr.rel (%p172) target = $region24
    $region23: #{resnet_forward.13} parent=5 // pred_region
      // Predicated region
      $region25: #{resnet_forward.13} parent=23 // pred_check
        %p175 = pneg %p50
      $region26: #{resnet_forward.13} parent=23 // pred_check_branch
        %177 = sbr.rel (%p175) target = $region28
      $region27: #{resnet_forward.13} parent=23 // pred_region
        %s178 = smul.u32 32, %s16
        %s179 = smul.u32 2, %s18
        %p180 = scmp.lt.s32.totalorder %s178, 63
        %s181 = scalar_select %p180, %s178, 63
        %p182 = scmp.lt.s32.totalorder %s179, 1
        %s183 = scalar_select %p182, %s179, 1
        %s184 = smul.addr %s181, 2
        %s185 = sadd.s32 %s183, %s184
        %s186 = smul.addr %s185, 4
        %s187 = scalar_lea.vmem %s0, %s186
        %s188 = smul.u32 32, %s16
        %s189 = smul.u32 2, %s18
      $region28: #{resnet_forward.13} parent=23 // pred_fallthru
        _
    $region24: #{resnet_forward.13} parent=5 // pred_fallthru
      _
    %p190 = scmp.le.s32.totalorder 1, %s9
    %p191 = scmp.lt.s32.totalorder %s9, 3
    %p192 = pnand %p190, %p191
    %p193 = pneg %p192
    // Predicated region
    $region29: #{resnet_forward.13} parent=5 // pred_check
      _
    $region30: #{resnet_forward.13} parent=5 // pred_check_branch
      %195 = sbr.rel (%p192) target = $region32
    $region31: #{resnet_forward.13} parent=5 // pred_region
      %s196 = ssub.s32 %s9, 1
      %s197 = smul.u32 32, %s19
      %s198 = smul.u32 2, %s21
      %p199 = scmp.lt.s32.totalorder %s197, 63
      %s200 = scalar_select %p199, %s197, 63
      %p201 = scmp.lt.s32.totalorder %s198, 1
      %s202 = scalar_select %p201, %s198, 1
      %s203 = smul.addr %s200, 2
      %s204 = sadd.s32 %s202, %s203
      %s205 = smul.addr %s204, 4
      %s206 = scalar_lea.vmem %s0, %s205
      %p207 = pneg %p56
      %p208 = pneg %p53
      %s209 = smul.u32 32, %s21
      %p210 = scmp.lt.s32.totalorder %s209, 31
      %s211 = scalar_select %p210, %s209, 31
      %p212 = scmp.lt.s32.totalorder %s20, 0
      %s213 = scalar_select %p212, %s20, 0
      %s214 = sadd.s32 %s213, %s211
      %s215 = smul.addr %s214, 4
      %s216 = scalar_lea.vmem %s1, %s215
      %p217 = pneg %p84
      %p218 = pneg %p81
      %p219 = scmp.lt.s32.totalorder %s20, 0
      %s220 = scalar_select %p219, %s20, 0
      %s221 = scalar_lea.vmem %s2, %s220
      %p222 = pneg %p110
      %p223 = pneg %p107
      %p224 = pneg %p138
      %p225 = pneg %p135
      %s226 = smul.u32 32, %s19
      %p227 = scmp.lt.s32.totalorder %s226, 63
      %s228 = scalar_select %p227, %s226, 63
      %p229 = scmp.lt.s32.totalorder %s20, 0
      %s230 = scalar_select %p229, %s20, 0
      %s231 = sadd.s32 %s230, %s228
      %s232 = smul.addr %s231, 4
      %s233 = scalar_lea.vmem %s3, %s232
      %s234 = smul.u32 32, %s19
      %s235 = smul.u32 2, %s21
      %p236 = scmp.lt.s32.totalorder %s234, 63
      %s237 = scalar_select %p236, %s234, 63
      %p238 = scmp.lt.s32.totalorder %s235, 1
      %s239 = scalar_select %p238, %s235, 1
      %s240 = smul.addr %s237, 2
      %s241 = sadd.s32 %s239, %s240
      %s242 = smul.addr %s241, 4
      %s243 = scalar_lea.vmem %s0, %s242
      %s244 = smul.u32 32, %s19
      %s245 = smul.u32 2, %s21
      %s246 = smul.u32 32, %s21
      %p247 = scmp.lt.s32.totalorder %s246, 31
      %s248 = scalar_select %p247, %s246, 31
      %p249 = scmp.lt.s32.totalorder %s20, 0
      %s250 = scalar_select %p249, %s20, 0
      %s251 = sadd.s32 %s250, %s248
      %s252 = smul.addr %s251, 4
      %s253 = scalar_lea.vmem %s1, %s252
      %s254 = smul.u32 32, %s21
      %p255 = scmp.lt.s32.totalorder %s20, 0
      %s256 = scalar_select %p255, %s20, 0
      %s257 = scalar_lea.vmem %s2, %s256
      %s258 = smul.u32 32, %s19
      %p259 = scmp.lt.s32.totalorder %s258, 63
      %s260 = scalar_select %p259, %s258, 63
      %p261 = scmp.lt.s32.totalorder %s20, 0
      %s262 = scalar_select %p261, %s20, 0
      %s263 = sadd.s32 %s262, %s260
      %s264 = smul.addr %s263, 4
      %s265 = scalar_lea.vmem %s3, %s264
      %s266 = smul.u32 32, %s19
      %p268 = scmp.eq.s32.totalorder %s21, 0
      // Predicated region
      $region33: #{resnet_forward.13} parent=31 // pred_check
        %p269 = pneg %p268
      $region34: #{resnet_forward.13} parent=31 // pred_check_branch
        %271 = sbr.rel (%p269) target = $region36
      $region35: #{resnet_forward.13} parent=31 // pred_region
        %272 = vst [vmem:[#allocation2] sm:$0xff] 0.0
        %273 = vst [vmem:[#allocation2 + $0x8] sm:$0xff] 0.0
        %274 = vst [vmem:[#allocation2 + $0x10] sm:$0xff] 0.0
        %275 = vst [vmem:[#allocation2 + $0x18] sm:$0xff] 0.0
        %276 = vst [vmem:[#allocation2 + $0x20] sm:$0xff] 0.0
        %277 = vst [vmem:[#allocation2 + $0x28] sm:$0xff] 0.0
        %278 = vst [vmem:[#allocation2 + $0x30] sm:$0xff] 0.0
        %279 = vst [vmem:[#allocation2 + $0x38] sm:$0xff] 0.0
        %280 = vst [vmem:[#allocation2 + $0x40] sm:$0xff] 0.0
        %281 = vst [vmem:[#allocation2 + $0x48] sm:$0xff] 0.0
        %282 = vst [vmem:[#allocation2 + $0x50] sm:$0xff] 0.0
        %283 = vst [vmem:[#allocation2 + $0x58] sm:$0xff] 0.0
        %284 = vst [vmem:[#allocation2 + $0x60] sm:$0xff] 0.0
        %285 = vst [vmem:[#allocation2 + $0x68] sm:$0xff] 0.0
        %286 = vst [vmem:[#allocation2 + $0x70] sm:$0xff] 0.0
        %287 = vst [vmem:[#allocation2 + $0x78] sm:$0xff] 0.0
        %288 = vst [vmem:[#allocation2 + $0x80] sm:$0xff] 0.0
        %289 = vst [vmem:[#allocation2 + $0x88] sm:$0xff] 0.0
        %290 = vst [vmem:[#allocation2 + $0x90] sm:$0xff] 0.0
        %291 = vst [vmem:[#allocation2 + $0x98] sm:$0xff] 0.0
        %292 = vst [vmem:[#allocation2 + $0xa0] sm:$0xff] 0.0
        %293 = vst [vmem:[#allocation2 + $0xa8] sm:$0xff] 0.0
        %294 = vst [vmem:[#allocation2 + $0xb0] sm:$0xff] 0.0
        %295 = vst [vmem:[#allocation2 + $0xb8] sm:$0xff] 0.0
        %296 = vst [vmem:[#allocation2 + $0xc0] sm:$0xff] 0.0
        %297 = vst [vmem:[#allocation2 + $0xc8] sm:$0xff] 0.0
        %298 = vst [vmem:[#allocation2 + $0xd0] sm:$0xff] 0.0
        %299 = vst [vmem:[#allocation2 + $0xd8] sm:$0xff] 0.0
        %300 = vst [vmem:[#allocation2 + $0xe0] sm:$0xff] 0.0
        %301 = vst [vmem:[#allocation2 + $0xe8] sm:$0xff] 0.0
        %302 = vst [vmem:[#allocation2 + $0xf0] sm:$0xff] 0.0
        %303 = vst [vmem:[#allocation2 + $0xf8] sm:$0xff] 0.0
      $region36: #{resnet_forward.13} parent=31 // pred_fallthru
        _
      %v304 = vld [vmem:[#allocation2] sm:$0xff]
      %v305 = vld [vmem:[#allocation2 + $0x8] sm:$0xff]
      %v306 = vld [vmem:[#allocation2 + $0x10] sm:$0xff]
      %v307 = vld [vmem:[#allocation2 + $0x18] sm:$0xff]
      %v308 = vld [vmem:[#allocation2 + $0x20] sm:$0xff]
      %v309 = vld [vmem:[#allocation2 + $0x28] sm:$0xff]
      %v310 = vld [vmem:[#allocation2 + $0x30] sm:$0xff]
      %v311 = vld [vmem:[#allocation2 + $0x38] sm:$0xff]
      %v312 = vld [vmem:[#allocation2 + $0x40] sm:$0xff]
      %v313 = vld [vmem:[#allocation2 + $0x48] sm:$0xff]
      %v314 = vld [vmem:[#allocation2 + $0x50] sm:$0xff]
      %v315 = vld [vmem:[#allocation2 + $0x58] sm:$0xff]
      %v316 = vld [vmem:[#allocation2 + $0x60] sm:$0xff]
      %v317 = vld [vmem:[#allocation2 + $0x68] sm:$0xff]
      %v318 = vld [vmem:[#allocation2 + $0x70] sm:$0xff]
      %v319 = vld [vmem:[#allocation2 + $0x78] sm:$0xff]
      %v320 = vld [vmem:[#allocation2 + $0x80] sm:$0xff]
      %v321 = vld [vmem:[#allocation2 + $0x88] sm:$0xff]
      %v322 = vld [vmem:[#allocation2 + $0x90] sm:$0xff]
      %v323 = vld [vmem:[#allocation2 + $0x98] sm:$0xff]
      %v324 = vld [vmem:[#allocation2 + $0xa0] sm:$0xff]
      %v325 = vld [vmem:[#allocation2 + $0xa8] sm:$0xff]
      %v326 = vld [vmem:[#allocation2 + $0xb0] sm:$0xff]
      %v327 = vld [vmem:[#allocation2 + $0xb8] sm:$0xff]
      %v328 = vld [vmem:[#allocation2 + $0xc0] sm:$0xff]
      %v329 = vld [vmem:[#allocation2 + $0xc8] sm:$0xff]
      %v330 = vld [vmem:[#allocation2 + $0xd0] sm:$0xff]
      %v331 = vld [vmem:[#allocation2 + $0xd8] sm:$0xff]
      %v332 = vld [vmem:[#allocation2 + $0xe0] sm:$0xff]
      %v333 = vld [vmem:[#allocation2 + $0xe8] sm:$0xff]
      %v334 = vld [vmem:[#allocation2 + $0xf0] sm:$0xff]
      %v335 = vld [vmem:[#allocation2 + $0xf8] sm:$0xff]
      %v336 = vld [vmem:[%s243] sm:$0xff]
      %v337 = vld [vmem:[%s243 + $0x8] sm:$0xff]
      %v338 = vld [vmem:[%s243 + $0x10] sm:$0xff]
      %v339 = vld [vmem:[%s243 + $0x18] sm:$0xff]
      %v340 = vld [vmem:[%s243 + $0x20] sm:$0xff]
      %v341 = vld [vmem:[%s243 + $0x28] sm:$0xff]
      %v342 = vld [vmem:[%s243 + $0x30] sm:$0xff]
      %v343 = vld [vmem:[%s243 + $0x38] sm:$0xff]
      %v344 = vld [vmem:[%s243 + $0x40] sm:$0xff]
      %v345 = vld [vmem:[%s243 + $0x48] sm:$0xff]
      %v346 = vld [vmem:[%s243 + $0x50] sm:$0xff]
      %v347 = vld [vmem:[%s243 + $0x58] sm:$0xff]
      %v348 = vld [vmem:[%s243 + $0x60] sm:$0xff]
      %v349 = vld [vmem:[%s243 + $0x68] sm:$0xff]
      %v350 = vld [vmem:[%s243 + $0x70] sm:$0xff]
      %v351 = vld [vmem:[%s243 + $0x78] sm:$0xff]
      %v352 = vld [vmem:[%s243 + $0x80] sm:$0xff]
      %v353 = vld [vmem:[%s243 + $0x88] sm:$0xff]
      %v354 = vld [vmem:[%s243 + $0x90] sm:$0xff]
      %v355 = vld [vmem:[%s243 + $0x98] sm:$0xff]
      %v356 = vld [vmem:[%s243 + $0xa0] sm:$0xff]
      %v357 = vld [vmem:[%s243 + $0xa8] sm:$0xff]
      %v358 = vld [vmem:[%s243 + $0xb0] sm:$0xff]
      %v359 = vld [vmem:[%s243 + $0xb8] sm:$0xff]
      %v360 = vld [vmem:[%s243 + $0xc0] sm:$0xff]
      %v361 = vld [vmem:[%s243 + $0xc8] sm:$0xff]
      %v362 = vld [vmem:[%s243 + $0xd0] sm:$0xff]
      %v363 = vld [vmem:[%s243 + $0xd8] sm:$0xff]
      %v364 = vld [vmem:[%s243 + $0xe0] sm:$0xff]
      %v365 = vld [vmem:[%s243 + $0xe8] sm:$0xff]
      %v366 = vld [vmem:[%s243 + $0xf0] sm:$0xff]
      %v367 = vld [vmem:[%s243 + $0xf8] sm:$0xff]
      %v368 = vld [vmem:[%s253] sm:$0xf]
      %v369 = vld [vmem:[%s253 + $0x4] sm:$0xf]
      %v370 = vld [vmem:[%s253 + $0x8] sm:$0xf]
      %v371 = vld [vmem:[%s253 + $0xc] sm:$0xf]
      %v372 = vld [vmem:[%s253 + $0x10] sm:$0xf]
      %v373 = vld [vmem:[%s253 + $0x14] sm:$0xf]
      %v374 = vld [vmem:[%s253 + $0x18] sm:$0xf]
      %v375 = vld [vmem:[%s253 + $0x1c] sm:$0xf]
      %v376 = vld [vmem:[%s253 + $0x20] sm:$0xf]
      %v377 = vld [vmem:[%s253 + $0x24] sm:$0xf]
      %v378 = vld [vmem:[%s253 + $0x28] sm:$0xf]
      %v379 = vld [vmem:[%s253 + $0x2c] sm:$0xf]
      %v380 = vld [vmem:[%s253 + $0x30] sm:$0xf]
      %v381 = vld [vmem:[%s253 + $0x34] sm:$0xf]
      %v382 = vld [vmem:[%s253 + $0x38] sm:$0xf]
      %v383 = vld [vmem:[%s253 + $0x3c] sm:$0xf]
      %v384 = vld [vmem:[%s253 + $0x40] sm:$0xf]
      %v385 = vld [vmem:[%s253 + $0x44] sm:$0xf]
      %v386 = vld [vmem:[%s253 + $0x48] sm:$0xf]
      %v387 = vld [vmem:[%s253 + $0x4c] sm:$0xf]
      %v388 = vld [vmem:[%s253 + $0x50] sm:$0xf]
      %v389 = vld [vmem:[%s253 + $0x54] sm:$0xf]
      %v390 = vld [vmem:[%s253 + $0x58] sm:$0xf]
      %v391 = vld [vmem:[%s253 + $0x5c] sm:$0xf]
      %v392 = vld [vmem:[%s253 + $0x60] sm:$0xf]
      %v393 = vld [vmem:[%s253 + $0x64] sm:$0xf]
      %v394 = vld [vmem:[%s253 + $0x68] sm:$0xf]
      %v395 = vld [vmem:[%s253 + $0x6c] sm:$0xf]
      %v396 = vld [vmem:[%s253 + $0x70] sm:$0xf]
      %v397 = vld [vmem:[%s253 + $0x74] sm:$0xf]
      %v398 = vld [vmem:[%s253 + $0x78] sm:$0xf]
      %v399 = vld [vmem:[%s253 + $0x7c] sm:$0xf]
      %v432 = vunpack.c.l.b16 %v336
      %v433 = vunpack.c.h.b16 %v336
      %v434 = vunpack.c.l.b16 %v337
      %v435 = vunpack.c.h.b16 %v337
      %v436 = vunpack.c.l.b16 %v338
      %v437 = vunpack.c.h.b16 %v338
      %v438 = vunpack.c.l.b16 %v339
      %v439 = vunpack.c.h.b16 %v339
      %v440 = vunpack.c.l.b16 %v340
      %v441 = vunpack.c.h.b16 %v340
      %v442 = vunpack.c.l.b16 %v341
      %v443 = vunpack.c.h.b16 %v341
      %v444 = vunpack.c.l.b16 %v342
      %v445 = vunpack.c.h.b16 %v342
      %v446 = vunpack.c.l.b16 %v343
      %v447 = vunpack.c.h.b16 %v343
      %v448 = vunpack.c.l.b16 %v344
      %v449 = vunpack.c.h.b16 %v344
      %v450 = vunpack.c.l.b16 %v345
      %v451 = vunpack.c.h.b16 %v345
      %v452 = vunpack.c.l.b16 %v346
      %v453 = vunpack.c.h.b16 %v346
      %v454 = vunpack.c.l.b16 %v347
      %v455 = vunpack.c.h.b16 %v347
      %v456 = vunpack.c.l.b16 %v348
      %v457 = vunpack.c.h.b16 %v348
      %v458 = vunpack.c.l.b16 %v349
      %v459 = vunpack.c.h.b16 %v349
      %v460 = vunpack.c.l.b16 %v350
      %v461 = vunpack.c.h.b16 %v350
      %v462 = vunpack.c.l.b16 %v351
      %v463 = vunpack.c.h.b16 %v351
      %v464 = vunpack.c.l.b16 %v352
      %v465 = vunpack.c.h.b16 %v352
      %v466 = vunpack.c.l.b16 %v353
      %v467 = vunpack.c.h.b16 %v353
      %v468 = vunpack.c.l.b16 %v354
      %v469 = vunpack.c.h.b16 %v354
      %v470 = vunpack.c.l.b16 %v355
      %v471 = vunpack.c.h.b16 %v355
      %v472 = vunpack.c.l.b16 %v356
      %v473 = vunpack.c.h.b16 %v356
      %v474 = vunpack.c.l.b16 %v357
      %v475 = vunpack.c.h.b16 %v357
      %v476 = vunpack.c.l.b16 %v358
      %v477 = vunpack.c.h.b16 %v358
      %v478 = vunpack.c.l.b16 %v359
      %v479 = vunpack.c.h.b16 %v359
      %v480 = vunpack.c.l.b16 %v360
      %v481 = vunpack.c.h.b16 %v360
      %v482 = vunpack.c.l.b16 %v361
      %v483 = vunpack.c.h.b16 %v361
      %v484 = vunpack.c.l.b16 %v362
      %v485 = vunpack.c.h.b16 %v362
      %v486 = vunpack.c.l.b16 %v363
      %v487 = vunpack.c.h.b16 %v363
      %v488 = vunpack.c.l.b16 %v364
      %v489 = vunpack.c.h.b16 %v364
      %v490 = vunpack.c.l.b16 %v365
      %v491 = vunpack.c.h.b16 %v365
      %v492 = vunpack.c.l.b16 %v366
      %v493 = vunpack.c.h.b16 %v366
      %v494 = vunpack.c.l.b16 %v367
      %v495 = vunpack.c.h.b16 %v367
      %v496 = vpack.c.b16 %v434, %v432
      %v497 = vpack.c.b16 %v435, %v433
      %v498 = vpack.c.b16 %v438, %v436
      %v499 = vpack.c.b16 %v439, %v437
      %v500 = vpack.c.b16 %v442, %v440
      %v501 = vpack.c.b16 %v443, %v441
      %v502 = vpack.c.b16 %v446, %v444
      %v503 = vpack.c.b16 %v447, %v445
      %v504 = vpack.c.b16 %v450, %v448
      %v505 = vpack.c.b16 %v451, %v449
      %v506 = vpack.c.b16 %v454, %v452
      %v507 = vpack.c.b16 %v455, %v453
      %v508 = vpack.c.b16 %v458, %v456
      %v509 = vpack.c.b16 %v459, %v457
      %v510 = vpack.c.b16 %v462, %v460
      %v511 = vpack.c.b16 %v463, %v461
      %v512 = vpack.c.b16 %v466, %v464
      %v513 = vpack.c.b16 %v467, %v465
      %v514 = vpack.c.b16 %v470, %v468
      %v515 = vpack.c.b16 %v471, %v469
      %v516 = vpack.c.b16 %v474, %v472
      %v517 = vpack.c.b16 %v475, %v473
      %v518 = vpack.c.b16 %v478, %v476
      %v519 = vpack.c.b16 %v479, %v477
      %v520 = vpack.c.b16 %v482, %v480
      %v521 = vpack.c.b16 %v483, %v481
      %v522 = vpack.c.b16 %v486, %v484
      %v523 = vpack.c.b16 %v487, %v485
      %v524 = vpack.c.b16 %v490, %v488
      %v525 = vpack.c.b16 %v491, %v489
      %v526 = vpack.c.b16 %v494, %v492
      %v527 = vpack.c.b16 %v495, %v493
      %v592 = vunpack.c.l.b16 %v368
      %v593 = vunpack.c.l.b16 %v369
      %v594 = vunpack.c.l.b16 %v370
      %v595 = vunpack.c.l.b16 %v371
      %v596 = vunpack.c.l.b16 %v372
      %v597 = vunpack.c.l.b16 %v373
      %v598 = vunpack.c.l.b16 %v374
      %v599 = vunpack.c.l.b16 %v375
      %v600 = vunpack.c.l.b16 %v376
      %v601 = vunpack.c.l.b16 %v377
      %v602 = vunpack.c.l.b16 %v378
      %v603 = vunpack.c.l.b16 %v379
      %v604 = vunpack.c.l.b16 %v380
      %v605 = vunpack.c.l.b16 %v381
      %v606 = vunpack.c.l.b16 %v382
      %v607 = vunpack.c.l.b16 %v383
      %v608 = vunpack.c.l.b16 %v384
      %v609 = vunpack.c.l.b16 %v385
      %v610 = vunpack.c.l.b16 %v386
      %v611 = vunpack.c.l.b16 %v387
      %v612 = vunpack.c.l.b16 %v388
      %v613 = vunpack.c.l.b16 %v389
      %v614 = vunpack.c.l.b16 %v390
      %v615 = vunpack.c.l.b16 %v391
      %v616 = vunpack.c.l.b16 %v392
      %v617 = vunpack.c.l.b16 %v393
      %v618 = vunpack.c.l.b16 %v394
      %v619 = vunpack.c.l.b16 %v395
      %v620 = vunpack.c.l.b16 %v396
      %v621 = vunpack.c.l.b16 %v397
      %v622 = vunpack.c.l.b16 %v398
      %v623 = vunpack.c.l.b16 %v399
      %v624 = vpack.c.b16 %v593, %v592
      %v625 = vpack.c.b16 %v595, %v594
      %v626 = vpack.c.b16 %v597, %v596
      %v627 = vpack.c.b16 %v599, %v598
      %v628 = vpack.c.b16 %v601, %v600
      %v629 = vpack.c.b16 %v603, %v602
      %v630 = vpack.c.b16 %v605, %v604
      %v631 = vpack.c.b16 %v607, %v606
      %v632 = vpack.c.b16 %v609, %v608
      %v633 = vpack.c.b16 %v611, %v610
      %v634 = vpack.c.b16 %v613, %v612
      %v635 = vpack.c.b16 %v615, %v614
      %v636 = vpack.c.b16 %v617, %v616
      %v637 = vpack.c.b16 %v619, %v618
      %v638 = vpack.c.b16 %v621, %v620
      %v639 = vpack.c.b16 %v623, %v622
      %656 = vmatprep.subr.bf16.mxu0 0
      %657 = vmatpush1.bf16.msra.mxu0 %v624
      %658 = vmatprep.subr.bf16.mxu0 0
      %659 = vmatpush1.bf16.msra.mxu0 %v625
      %660 = vmatprep.subr.bf16.mxu0 0
      %661 = vmatpush1.bf16.msra.mxu0 %v626
      %662 = vmatprep.subr.bf16.mxu0 0
      %663 = vmatpush1.bf16.msra.mxu0 %v627
      %664 = vmatprep.subr.bf16.mxu0 0
      %665 = vmatpush1.bf16.msra.mxu0 %v628
      %666 = vmatprep.subr.bf16.mxu0 0
      %667 = vmatpush1.bf16.msra.mxu0 %v629
      %668 = vmatprep.subr.bf16.mxu0 0
      %669 = vmatpush1.bf16.msra.mxu0 %v630
      %670 = vmatprep.subr.bf16.mxu0 0
      %671 = vmatpush1.bf16.msra.mxu0 %v631
      %672 = vmatprep.subr.bf16.mxu0 0
      %673 = vmatpush1.bf16.msra.mxu0 %v632
      %674 = vmatprep.subr.bf16.mxu0 0
      %675 = vmatpush1.bf16.msra.mxu0 %v633
      %676 = vmatprep.subr.bf16.mxu0 0
      %677 = vmatpush1.bf16.msra.mxu0 %v634
      %678 = vmatprep.subr.bf16.mxu0 0
      %679 = vmatpush1.bf16.msra.mxu0 %v635
      %680 = vmatprep.subr.bf16.mxu0 0
      %681 = vmatpush1.bf16.msra.mxu0 %v636
      %682 = vmatprep.subr.bf16.mxu0 0
      %683 = vmatpush1.bf16.msra.mxu0 %v637
      %684 = vmatprep.subr.bf16.mxu0 0
      %685 = vmatpush1.bf16.msra.mxu0 %v638
      %686 = vmatprep.subr.bf16.mxu0 0
      %687 = vmatpush1.bf16.msra.mxu0 %v639
      %688 = vmatprep.mubr.bf16.mxu0 %v497
      %689 = vmatmul.mubr.bf16.gmra.mrb[0].mxu0 %v496
      %v690 = vpop.f32.mrb[0].mxu0
      %v691 = vadd.f32 0.0, %v690
      %v692 = vpop.f32.mrb[0].mxu0
      %v693 = vpop.f32.mrb[0].mxu0
      %v694 = vadd.f32 0.0, %v693
      %v695 = vpop.f32.mrb[0].mxu0
      %696 = vmatprep.mubr.bf16.mxu0 %v499
      %697 = vmatmul.mubr.bf16.gmra.mrb[0].mxu0 %v498
      %v698 = vpop.f32.mrb[0].mxu0
      %v699 = vadd.f32 0.0, %v698
      %v700 = vpop.f32.mrb[0].mxu0
      %v701 = vpop.f32.mrb[0].mxu0
      %v702 = vadd.f32 0.0, %v701
      %v703 = vpop.f32.mrb[0].mxu0
      %704 = vmatprep.mubr.bf16.mxu0 %v501
      %705 = vmatmul.mubr.bf16.gmra.mrb[0].mxu0 %v500
      %v706 = vpop.f32.mrb[0].mxu0
      %v707 = vadd.f32 0.0, %v706
      %v708 = vpop.f32.mrb[0].mxu0
      %v709 = vpop.f32.mrb[0].mxu0
      %v710 = vadd.f32 0.0, %v709
      %v711 = vpop.f32.mrb[0].mxu0
      %712 = vmatprep.mubr.bf16.mxu0 %v503
      %713 = vmatmul.mubr.bf16.gmra.mrb[0].mxu0 %v502
      %v714 = vpop.f32.mrb[0].mxu0
      %v715 = vadd.f32 0.0, %v714
      %v716 = vpop.f32.mrb[0].mxu0
      %v717 = vpop.f32.mrb[0].mxu0
      %v718 = vadd.f32 0.0, %v717
      %v719 = vpop.f32.mrb[0].mxu0
      %720 = vmatprep.mubr.bf16.mxu0 %v505
      %721 = vmatmul.mubr.bf16.gmra.mrb[0].mxu0 %v504
      %v722 = vpop.f32.mrb[0].mxu0
      %v723 = vadd.f32 0.0, %v722
      %v724 = vpop.f32.mrb[0].mxu0
      %v725 = vpop.f32.mrb[0].mxu0
      %v726 = vadd.f32 0.0, %v725
      %v727 = vpop.f32.mrb[0].mxu0
      %728 = vmatprep.mubr.bf16.mxu0 %v507
      %729 = vmatmul.mubr.bf16.gmra.mrb[0].mxu0 %v506
      %v730 = vpop.f32.mrb[0].mxu0
      %v731 = vadd.f32 0.0, %v730
      %v732 = vpop.f32.mrb[0].mxu0
      %v733 = vpop.f32.mrb[0].mxu0
      %v734 = vadd.f32 0.0, %v733
      %v735 = vpop.f32.mrb[0].mxu0
      %736 = vmatprep.mubr.bf16.mxu0 %v509
      %737 = vmatmul.mubr.bf16.gmra.mrb[0].mxu0 %v508
      %v738 = vpop.f32.mrb[0].mxu0
      %v739 = vadd.f32 0.0, %v738
      %v740 = vpop.f32.mrb[0].mxu0
      %v741 = vpop.f32.mrb[0].mxu0
      %v742 = vadd.f32 0.0, %v741
      %v743 = vpop.f32.mrb[0].mxu0
      %744 = vmatprep.mubr.bf16.mxu0 %v511
      %745 = vmatmul.mubr.bf16.gmra.mrb[0].mxu0 %v510
      %v746 = vpop.f32.mrb[0].mxu0
      %v747 = vadd.f32 0.0, %v746
      %v748 = vpop.f32.mrb[0].mxu0
      %v749 = vpop.f32.mrb[0].mxu0
      %v750 = vadd.f32 0.0, %v749
      %v751 = vpop.f32.mrb[0].mxu0
      %752 = vmatprep.mubr.bf16.mxu0 %v513
      %753 = vmatmul.mubr.bf16.gmra.mrb[0].mxu0 %v512
      %v754 = vpop.f32.mrb[0].mxu0
      %v755 = vadd.f32 0.0, %v754
      %v756 = vpop.f32.mrb[0].mxu0
      %v757 = vpop.f32.mrb[0].mxu0
      %v758 = vadd.f32 0.0, %v757
      %v759 = vpop.f32.mrb[0].mxu0
      %760 = vmatprep.mubr.bf16.mxu0 %v515
      %761 = vmatmul.mubr.bf16.gmra.mrb[0].mxu0 %v514
      %v762 = vpop.f32.mrb[0].mxu0
      %v763 = vadd.f32 0.0, %v762
      %v764 = vpop.f32.mrb[0].mxu0
      %v765 = vpop.f32.mrb[0].mxu0
      %v766 = vadd.f32 0.0, %v765
      %v767 = vpop.f32.mrb[0].mxu0
      %768 = vmatprep.mubr.bf16.mxu0 %v517
      %769 = vmatmul.mubr.bf16.gmra.mrb[0].mxu0 %v516
      %v770 = vpop.f32.mrb[0].mxu0
      %v771 = vadd.f32 0.0, %v770
      %v772 = vpop.f32.mrb[0].mxu0
      %v773 = vpop.f32.mrb[0].mxu0
      %v774 = vadd.f32 0.0, %v773
      %v775 = vpop.f32.mrb[0].mxu0
      %776 = vmatprep.mubr.bf16.mxu0 %v519
      %777 = vmatmul.mubr.bf16.gmra.mrb[0].mxu0 %v518
      %v778 = vpop.f32.mrb[0].mxu0
      %v779 = vadd.f32 0.0, %v778
      %v780 = vpop.f32.mrb[0].mxu0
      %v781 = vpop.f32.mrb[0].mxu0
      %v782 = vadd.f32 0.0, %v781
      %v783 = vpop.f32.mrb[0].mxu0
      %784 = vmatprep.mubr.bf16.mxu0 %v521
      %785 = vmatmul.mubr.bf16.gmra.mrb[0].mxu0 %v520
      %v786 = vpop.f32.mrb[0].mxu0
      %v787 = vadd.f32 0.0, %v786
      %v788 = vpop.f32.mrb[0].mxu0
      %v789 = vpop.f32.mrb[0].mxu0
      %v790 = vadd.f32 0.0, %v789
      %v791 = vpop.f32.mrb[0].mxu0
      %792 = vmatprep.mubr.bf16.mxu0 %v523
      %793 = vmatmul.mubr.bf16.gmra.mrb[0].mxu0 %v522
      %v794 = vpop.f32.mrb[0].mxu0
      %v795 = vadd.f32 0.0, %v794
      %v796 = vpop.f32.mrb[0].mxu0
      %v797 = vpop.f32.mrb[0].mxu0
      %v798 = vadd.f32 0.0, %v797
      %v799 = vpop.f32.mrb[0].mxu0
      %800 = vmatprep.mubr.bf16.mxu0 %v525
      %801 = vmatmul.mubr.bf16.gmra.mrb[0].mxu0 %v524
      %v802 = vpop.f32.mrb[0].mxu0
      %v803 = vadd.f32 0.0, %v802
      %v804 = vpop.f32.mrb[0].mxu0
      %v805 = vpop.f32.mrb[0].mxu0
      %v806 = vadd.f32 0.0, %v805
      %v807 = vpop.f32.mrb[0].mxu0
      %808 = vmatprep.mubr.bf16.mxu0 %v527
      %809 = vmatmul.mubr.bf16.gmra.mrb[0].mxu0 %v526
      %v810 = vpop.f32.mrb[0].mxu0
      %v811 = vadd.f32 0.0, %v810
      %v812 = vpop.f32.mrb[0].mxu0
      %v813 = vpop.f32.mrb[0].mxu0
      %v814 = vadd.f32 0.0, %v813
      %v815 = vpop.f32.mrb[0].mxu0
      %816 = vdwg.mxu0
      %v817 = vadd.f32 %v304, %v691
      %v818 = vadd.f32 %v305, %v694
      %v819 = vadd.f32 %v306, %v699
      %v820 = vadd.f32 %v307, %v702
      %v821 = vadd.f32 %v308, %v707
      %v822 = vadd.f32 %v309, %v710
      %v823 = vadd.f32 %v310, %v715
      %v824 = vadd.f32 %v311, %v718
      %v825 = vadd.f32 %v312, %v723
      %v826 = vadd.f32 %v313, %v726
      %v827 = vadd.f32 %v314, %v731
      %v828 = vadd.f32 %v315, %v734
      %v829 = vadd.f32 %v316, %v739
      %v830 = vadd.f32 %v317, %v742
      %v831 = vadd.f32 %v318, %v747
      %v832 = vadd.f32 %v319, %v750
      %v833 = vadd.f32 %v320, %v755
      %v834 = vadd.f32 %v321, %v758
      %v835 = vadd.f32 %v322, %v763
      %v836 = vadd.f32 %v323, %v766
      %v837 = vadd.f32 %v324, %v771
      %v838 = vadd.f32 %v325, %v774
      %v839 = vadd.f32 %v326, %v779
      %v840 = vadd.f32 %v327, %v782
      %v841 = vadd.f32 %v328, %v787
      %v842 = vadd.f32 %v329, %v790
      %v843 = vadd.f32 %v330, %v795
      %v844 = vadd.f32 %v331, %v798
      %v845 = vadd.f32 %v332, %v803
      %v846 = vadd.f32 %v333, %v806
      %v847 = vadd.f32 %v334, %v811
      %v848 = vadd.f32 %v335, %v814
      %849 = vst [vmem:[#allocation2] sm:$0xff] %v817
      %850 = vst [vmem:[#allocation2 + $0x8] sm:$0xff] %v818
      %851 = vst [vmem:[#allocation2 + $0x10] sm:$0xff] %v819
      %852 = vst [vmem:[#allocation2 + $0x18] sm:$0xff] %v820
      %853 = vst [vmem:[#allocation2 + $0x20] sm:$0xff] %v821
      %854 = vst [vmem:[#allocation2 + $0x28] sm:$0xff] %v822
      %855 = vst [vmem:[#allocation2 + $0x30] sm:$0xff] %v823
      %856 = vst [vmem:[#allocation2 + $0x38] sm:$0xff] %v824
      %857 = vst [vmem:[#allocation2 + $0x40] sm:$0xff] %v825
      %858 = vst [vmem:[#allocation2 + $0x48] sm:$0xff] %v826
      %859 = vst [vmem:[#allocation2 + $0x50] sm:$0xff] %v827
      %860 = vst [vmem:[#allocation2 + $0x58] sm:$0xff] %v828
      %861 = vst [vmem:[#allocation2 + $0x60] sm:$0xff] %v829
      %862 = vst [vmem:[#allocation2 + $0x68] sm:$0xff] %v830
      %863 = vst [vmem:[#allocation2 + $0x70] sm:$0xff] %v831
      %864 = vst [vmem:[#allocation2 + $0x78] sm:$0xff] %v832
      %865 = vst [vmem:[#allocation2 + $0x80] sm:$0xff] %v833
      %866 = vst [vmem:[#allocation2 + $0x88] sm:$0xff] %v834
      %867 = vst [vmem:[#allocation2 + $0x90] sm:$0xff] %v835
      %868 = vst [vmem:[#allocation2 + $0x98] sm:$0xff] %v836
      %869 = vst [vmem:[#allocation2 + $0xa0] sm:$0xff] %v837
      %870 = vst [vmem:[#allocation2 + $0xa8] sm:$0xff] %v838
      %871 = vst [vmem:[#allocation2 + $0xb0] sm:$0xff] %v839
      %872 = vst [vmem:[#allocation2 + $0xb8] sm:$0xff] %v840
      %873 = vst [vmem:[#allocation2 + $0xc0] sm:$0xff] %v841
      %874 = vst [vmem:[#allocation2 + $0xc8] sm:$0xff] %v842
      %875 = vst [vmem:[#allocation2 + $0xd0] sm:$0xff] %v843
      %876 = vst [vmem:[#allocation2 + $0xd8] sm:$0xff] %v844
      %877 = vst [vmem:[#allocation2 + $0xe0] sm:$0xff] %v845
      %878 = vst [vmem:[#allocation2 + $0xe8] sm:$0xff] %v846
      %879 = vst [vmem:[#allocation2 + $0xf0] sm:$0xff] %v847
      %880 = vst [vmem:[#allocation2 + $0xf8] sm:$0xff] %v848
      // Predicated region
      $region37: #{resnet_forward.13} parent=31 // pred_check
        %p881 = pneg %p268
      $region38: #{resnet_forward.13} parent=31 // pred_check_branch
        %883 = sbr.rel (%p881) target = $region40
      $region39: #{resnet_forward.13} parent=31 // pred_region
        %v884 = vld [vmem:[#allocation2] sm:$0xff]
        %v885 = vld [vmem:[#allocation2 + $0x8] sm:$0xff]
        %v886 = vld [vmem:[#allocation2 + $0x10] sm:$0xff]
        %v887 = vld [vmem:[#allocation2 + $0x18] sm:$0xff]
        %v888 = vld [vmem:[#allocation2 + $0x20] sm:$0xff]
        %v889 = vld [vmem:[#allocation2 + $0x28] sm:$0xff]
        %v890 = vld [vmem:[#allocation2 + $0x30] sm:$0xff]
        %v891 = vld [vmem:[#allocation2 + $0x38] sm:$0xff]
        %v892 = vld [vmem:[#allocation2 + $0x40] sm:$0xff]
        %v893 = vld [vmem:[#allocation2 + $0x48] sm:$0xff]
        %v894 = vld [vmem:[#allocation2 + $0x50] sm:$0xff]
        %v895 = vld [vmem:[#allocation2 + $0x58] sm:$0xff]
        %v896 = vld [vmem:[#allocation2 + $0x60] sm:$0xff]
        %v897 = vld [vmem:[#allocation2 + $0x68] sm:$0xff]
        %v898 = vld [vmem:[#allocation2 + $0x70] sm:$0xff]
        %v899 = vld [vmem:[#allocation2 + $0x78] sm:$0xff]
        %v900 = vld [vmem:[#allocation2 + $0x80] sm:$0xff]
        %v901 = vld [vmem:[#allocation2 + $0x88] sm:$0xff]
        %v902 = vld [vmem:[#allocation2 + $0x90] sm:$0xff]
        %v903 = vld [vmem:[#allocation2 + $0x98] sm:$0xff]
        %v904 = vld [vmem:[#allocation2 + $0xa0] sm:$0xff]
        %v905 = vld [vmem:[#allocation2 + $0xa8] sm:$0xff]
        %v906 = vld [vmem:[#allocation2 + $0xb0] sm:$0xff]
        %v907 = vld [vmem:[#allocation2 + $0xb8] sm:$0xff]
        %v908 = vld [vmem:[#allocation2 + $0xc0] sm:$0xff]
        %v909 = vld [vmem:[#allocation2 + $0xc8] sm:$0xff]
        %v910 = vld [vmem:[#allocation2 + $0xd0] sm:$0xff]
        %v911 = vld [vmem:[#allocation2 + $0xd8] sm:$0xff]
        %v912 = vld [vmem:[#allocation2 + $0xe0] sm:$0xff]
        %v913 = vld [vmem:[#allocation2 + $0xe8] sm:$0xff]
        %v914 = vld [vmem:[#allocation2 + $0xf0] sm:$0xff]
        %v915 = vld [vmem:[#allocation2 + $0xf8] sm:$0xff]
        %v916 = vld [vmem:[%s257] sm:$0x1]
        %v918 = vlaneseq
        %v919 = vshrl.u32 %v918, 7
        %v920 = vsub.s32 0, %v919
        %v921 = vrot.slane %v916, %v920
        %v923 = vadd.f32 %v884, %v921
        %v924 = vadd.f32 %v885, %v921
        %v925 = vadd.f32 %v886, %v921
        %v926 = vadd.f32 %v887, %v921
        %v927 = vadd.f32 %v888, %v921
        %v928 = vadd.f32 %v889, %v921
        %v929 = vadd.f32 %v890, %v921
        %v930 = vadd.f32 %v891, %v921
        %v931 = vadd.f32 %v892, %v921
        %v932 = vadd.f32 %v893, %v921
        %v933 = vadd.f32 %v894, %v921
        %v934 = vadd.f32 %v895, %v921
        %v935 = vadd.f32 %v896, %v921
        %v936 = vadd.f32 %v897, %v921
        %v937 = vadd.f32 %v898, %v921
        %v938 = vadd.f32 %v899, %v921
        %v939 = vadd.f32 %v900, %v921
        %v940 = vadd.f32 %v901, %v921
        %v941 = vadd.f32 %v902, %v921
        %v942 = vadd.f32 %v903, %v921
        %v943 = vadd.f32 %v904, %v921
        %v944 = vadd.f32 %v905, %v921
        %v945 = vadd.f32 %v906, %v921
        %v946 = vadd.f32 %v907, %v921
        %v947 = vadd.f32 %v908, %v921
        %v948 = vadd.f32 %v909, %v921
        %v949 = vadd.f32 %v910, %v921
        %v950 = vadd.f32 %v911, %v921
        %v951 = vadd.f32 %v912, %v921
        %v952 = vadd.f32 %v913, %v921
        %v953 = vadd.f32 %v914, %v921
        %v954 = vadd.f32 %v915, %v921
        %v955 = vmax.f32 %v923, 0.0
        %v956 = vmax.f32 %v924, 0.0
        %v957 = vmax.f32 %v925, 0.0
        %v958 = vmax.f32 %v926, 0.0
        %v959 = vmax.f32 %v927, 0.0
        %v960 = vmax.f32 %v928, 0.0
        %v961 = vmax.f32 %v929, 0.0
        %v962 = vmax.f32 %v930, 0.0
        %v963 = vmax.f32 %v931, 0.0
        %v964 = vmax.f32 %v932, 0.0
        %v965 = vmax.f32 %v933, 0.0
        %v966 = vmax.f32 %v934, 0.0
        %v967 = vmax.f32 %v935, 0.0
        %v968 = vmax.f32 %v936, 0.0
        %v969 = vmax.f32 %v937, 0.0
        %v970 = vmax.f32 %v938, 0.0
        %v971 = vmax.f32 %v939, 0.0
        %v972 = vmax.f32 %v940, 0.0
        %v973 = vmax.f32 %v941, 0.0
        %v974 = vmax.f32 %v942, 0.0
        %v975 = vmax.f32 %v943, 0.0
        %v976 = vmax.f32 %v944, 0.0
        %v977 = vmax.f32 %v945, 0.0
        %v978 = vmax.f32 %v946, 0.0
        %v979 = vmax.f32 %v947, 0.0
        %v980 = vmax.f32 %v948, 0.0
        %v981 = vmax.f32 %v949, 0.0
        %v982 = vmax.f32 %v950, 0.0
        %v983 = vmax.f32 %v951, 0.0
        %v984 = vmax.f32 %v952, 0.0
        %v985 = vmax.f32 %v953, 0.0
        %v986 = vmax.f32 %v954, 0.0
        %v987 = vpack.c.bf16 %v956, %v955
        %v988 = vpack.c.bf16 %v958, %v957
        %v989 = vpack.c.bf16 %v960, %v959
        %v990 = vpack.c.bf16 %v962, %v961
        %v991 = vpack.c.bf16 %v964, %v963
        %v992 = vpack.c.bf16 %v966, %v965
        %v993 = vpack.c.bf16 %v968, %v967
        %v994 = vpack.c.bf16 %v970, %v969
        %v995 = vpack.c.bf16 %v972, %v971
        %v996 = vpack.c.bf16 %v974, %v973
        %v997 = vpack.c.bf16 %v976, %v975
        %v998 = vpack.c.bf16 %v978, %v977
        %v999 = vpack.c.bf16 %v980, %v979
        %v1000 = vpack.c.bf16 %v982, %v981
        %v1001 = vpack.c.bf16 %v984, %v983
        %v1002 = vpack.c.bf16 %v986, %v985
        %v1019 = vunpack.c.l.b16 %v987
        %v1020 = vunpack.c.h.b16 %v987
        %v1021 = vunpack.c.l.b16 %v988
        %v1022 = vunpack.c.h.b16 %v988
        %v1023 = vunpack.c.l.b16 %v989
        %v1024 = vunpack.c.h.b16 %v989
        %v1025 = vunpack.c.l.b16 %v990
        %v1026 = vunpack.c.h.b16 %v990
        %v1027 = vunpack.c.l.b16 %v991
        %v1028 = vunpack.c.h.b16 %v991
        %v1029 = vunpack.c.l.b16 %v992
        %v1030 = vunpack.c.h.b16 %v992
        %v1031 = vunpack.c.l.b16 %v993
        %v1032 = vunpack.c.h.b16 %v993
        %v1033 = vunpack.c.l.b16 %v994
        %v1034 = vunpack.c.h.b16 %v994
        %v1035 = vunpack.c.l.b16 %v995
        %v1036 = vunpack.c.h.b16 %v995
        %v1037 = vunpack.c.l.b16 %v996
        %v1038 = vunpack.c.h.b16 %v996
        %v1039 = vunpack.c.l.b16 %v997
        %v1040 = vunpack.c.h.b16 %v997
        %v1041 = vunpack.c.l.b16 %v998
        %v1042 = vunpack.c.h.b16 %v998
        %v1043 = vunpack.c.l.b16 %v999
        %v1044 = vunpack.c.h.b16 %v999
        %v1045 = vunpack.c.l.b16 %v1000
        %v1046 = vunpack.c.h.b16 %v1000
        %v1047 = vunpack.c.l.b16 %v1001
        %v1048 = vunpack.c.h.b16 %v1001
        %v1049 = vunpack.c.l.b16 %v1002
        %v1050 = vunpack.c.h.b16 %v1002
        %v1051 = vpack.c.b16 %v1019, %v1019
        %v1052 = vpack.c.b16 %v1020, %v1020
        %v1053 = vpack.c.b16 %v1021, %v1021
        %v1054 = vpack.c.b16 %v1022, %v1022
        %v1055 = vpack.c.b16 %v1023, %v1023
        %v1056 = vpack.c.b16 %v1024, %v1024
        %v1057 = vpack.c.b16 %v1025, %v1025
        %v1058 = vpack.c.b16 %v1026, %v1026
        %v1059 = vpack.c.b16 %v1027, %v1027
        %v1060 = vpack.c.b16 %v1028, %v1028
        %v1061 = vpack.c.b16 %v1029, %v1029
        %v1062 = vpack.c.b16 %v1030, %v1030
        %v1063 = vpack.c.b16 %v1031, %v1031
        %v1064 = vpack.c.b16 %v1032, %v1032
        %v1065 = vpack.c.b16 %v1033, %v1033
        %v1066 = vpack.c.b16 %v1034, %v1034
        %v1067 = vpack.c.b16 %v1035, %v1035
        %v1068 = vpack.c.b16 %v1036, %v1036
        %v1069 = vpack.c.b16 %v1037, %v1037
        %v1070 = vpack.c.b16 %v1038, %v1038
        %v1071 = vpack.c.b16 %v1039, %v1039
        %v1072 = vpack.c.b16 %v1040, %v1040
        %v1073 = vpack.c.b16 %v1041, %v1041
        %v1074 = vpack.c.b16 %v1042, %v1042
        %v1075 = vpack.c.b16 %v1043, %v1043
        %v1076 = vpack.c.b16 %v1044, %v1044
        %v1077 = vpack.c.b16 %v1045, %v1045
        %v1078 = vpack.c.b16 %v1046, %v1046
        %v1079 = vpack.c.b16 %v1047, %v1047
        %v1080 = vpack.c.b16 %v1048, %v1048
        %v1081 = vpack.c.b16 %v1049, %v1049
        %v1082 = vpack.c.b16 %v1050, %v1050
        %1115 = vst [vmem:[%s265] sm:$0xf] %v1051
        %1116 = vst [vmem:[%s265 + $0x4] sm:$0xf] %v1052
        %1117 = vst [vmem:[%s265 + $0x8] sm:$0xf] %v1053
        %1118 = vst [vmem:[%s265 + $0xc] sm:$0xf] %v1054
        %1119 = vst [vmem:[%s265 + $0x10] sm:$0xf] %v1055
        %1120 = vst [vmem:[%s265 + $0x14] sm:$0xf] %v1056
        %1121 = vst [vmem:[%s265 + $0x18] sm:$0xf] %v1057
        %1122 = vst [vmem:[%s265 + $0x1c] sm:$0xf] %v1058
        %1123 = vst [vmem:[%s265 + $0x20] sm:$0xf] %v1059
        %1124 = vst [vmem:[%s265 + $0x24] sm:$0xf] %v1060
        %1125 = vst [vmem:[%s265 + $0x28] sm:$0xf] %v1061
        %1126 = vst [vmem:[%s265 + $0x2c] sm:$0xf] %v1062
        %1127 = vst [vmem:[%s265 + $0x30] sm:$0xf] %v1063
        %1128 = vst [vmem:[%s265 + $0x34] sm:$0xf] %v1064
        %1129 = vst [vmem:[%s265 + $0x38] sm:$0xf] %v1065
        %1130 = vst [vmem:[%s265 + $0x3c] sm:$0xf] %v1066
        %1131 = vst [vmem:[%s265 + $0x40] sm:$0xf] %v1067
        %1132 = vst [vmem:[%s265 + $0x44] sm:$0xf] %v1068
        %1133 = vst [vmem:[%s265 + $0x48] sm:$0xf] %v1069
        %1134 = vst [vmem:[%s265 + $0x4c] sm:$0xf] %v1070
        %1135 = vst [vmem:[%s265 + $0x50] sm:$0xf] %v1071
        %1136 = vst [vmem:[%s265 + $0x54] sm:$0xf] %v1072
        %1137 = vst [vmem:[%s265 + $0x58] sm:$0xf] %v1073
        %1138 = vst [vmem:[%s265 + $0x5c] sm:$0xf] %v1074
        %1139 = vst [vmem:[%s265 + $0x60] sm:$0xf] %v1075
        %1140 = vst [vmem:[%s265 + $0x64] sm:$0xf] %v1076
        %1141 = vst [vmem:[%s265 + $0x68] sm:$0xf] %v1077
        %1142 = vst [vmem:[%s265 + $0x6c] sm:$0xf] %v1078
        %1143 = vst [vmem:[%s265 + $0x70] sm:$0xf] %v1079
        %1144 = vst [vmem:[%s265 + $0x74] sm:$0xf] %v1080
        %1145 = vst [vmem:[%s265 + $0x78] sm:$0xf] %v1081
        %1146 = vst [vmem:[%s265 + $0x7c] sm:$0xf] %v1082
      $region40: #{resnet_forward.13} parent=31 // pred_fallthru
        _
      %s1147 = smul.u32 32, %s19
      %p1148 = scmp.lt.s32.totalorder %s1147, 63
      %s1149 = scalar_select %p1148, %s1147, 63
      %p1150 = scmp.lt.s32.totalorder %s20, 0
      %s1151 = scalar_select %p1150, %s20, 0
      %s1152 = sadd.s32 %s1151, %s1149
      %s1153 = smul.addr %s1152, 4
      %s1154 = scalar_lea.vmem %s3, %s1153
      // Predicated region
      $region41: #{resnet_forward.13} parent=31 // pred_check
        %p1155 = pneg %p135
      $region42: #{resnet_forward.13} parent=31 // pred_check_branch
        %1157 = sbr.rel (%p1155) target = $region44
      $region43: #{resnet_forward.13} parent=31 // pred_region
        %s1158 = smul.u32 32, %s19
      $region44: #{resnet_forward.13} parent=31 // pred_fallthru
        _
    $region32: #{resnet_forward.13} parent=5 // pred_fallthru
      _
    %p1159 = scmp.le.s32.totalorder 2, %s9
    // Predicated region
    $region45: #{resnet_forward.13} parent=5 // pred_check
      %p1160 = pneg %p1159
    $region46: #{resnet_forward.13} parent=5 // pred_check_branch
      %1162 = sbr.rel (%p1160) target = $region48
    $region47: #{resnet_forward.13} parent=5 // pred_region
      %s1163 = ssub.s32 %s9, 2
      // Predicated region
      $region49: #{resnet_forward.13} parent=47 // pred_check
        %p1164 = pneg %p141
      $region50: #{resnet_forward.13} parent=47 // pred_check_branch
        %1166 = sbr.rel (%p1164) target = $region52
      $region51: #{resnet_forward.13} parent=47 // pred_region
        %s1167 = smul.u32 32, %s22
        %p1168 = scmp.lt.s32.totalorder %s1167, 63
        %s1169 = scalar_select %p1168, %s1167, 63
        %p1170 = scmp.lt.s32.totalorder %s23, 0
        %s1171 = scalar_select %p1170, %s23, 0
        %s1172 = sadd.s32 %s1171, %s1169
        %s1173 = smul.addr %s1172, 4
        %s1174 = scalar_lea.vmem %s3, %s1173
      $region52: #{resnet_forward.13} parent=47 // pred_fallthru
        _
    $region48: #{resnet_forward.13} parent=5 // pred_fallthru
      _
  $region6: #{resnet_forward.13} parent=0 // loop_footer
    %s13 = sadd.s32 1, %s9
  $region7: #{resnet_forward.13} parent=0 // loop_footer_branch
    %8 = sbr.rel target = $region3
  $region8: #{resnet_forward.13} parent=0 // loop_exit
    _

// kernel: resnet_forward.14
$region0: #{resnet_forward.14}
  #allocation0 [shape = 'u32[]', space=smem, size = 0x4, offset = 0x4, fixed_abs, tag = 'smem constant byte address 0x4 - core index']
  #allocation1 [shape = 'u32[144,128]{1,0:T(1,128)}', space=vmem, size = 0x12000, scoped, tag = 'internal scratch']
  #allocation2 [shape = 'f32[64,128]{1,0:T(8,128)}', space=vmem, size = 0x8000, scoped, tag = 'scratch operand']
  %s0 = inlined_call_operand.vmem [shape: bf16[128,640], index: 0, kind: input, shape index: {}]
  %s1 = inlined_call_operand.vmem [shape: bf16[640,128], index: 1, kind: input, shape index: {}]
  %s2 = inlined_call_operand.vmem [shape: f32[1,128], index: 2, kind: input, shape index: {}]
  %s3 = inlined_call_operand.vmem [shape: bf16[128,128], index: 3, kind: output, shape index: {}]
  %s4 = sld [smem:[#allocation0]]
  $region53: #{resnet_forward.14} parent=0
    _
  %s6 = ssub.s32 1, %s4
  %s7 = scalar_select 0, %s6, %s4
  loop: start=0, step=1, limit=4
  $region2: #{resnet_forward.14} parent=0 // loop_pre_header
    _
  $region3: #{resnet_forward.14} parent=0 // loop_header
    %s9 = sphi 0, %s13
    %p10 = scmp.ge.s32.totalorder %s9, 4
    %s16 = sphi 0, %s35
    %s17 = sphi 0, %s31
    %s18 = sphi 0, %s27
    %s19 = sphi 0, %s16
    %s20 = sphi 0, %s17
    %s21 = sphi 0, %s18
    %s22 = sphi 0, %s19
    %s23 = sphi 0, %s20
    %s24 = sphi 0, %s21
    %s40 = sphi 0, %s42
    %s43 = sphi 0, %s40
    %s44 = sphi 0, %s43
    %s60 = sphi 0, %s44
    %s68 = sphi 0, %s70
    %s71 = sphi 0, %s68
    %s72 = sphi 0, %s71
    %s88 = sphi 0, %s72
    %s94 = sphi 0, %s96
    %s97 = sphi 0, %s94
    %s98 = sphi 0, %s97
    %s114 = sphi 0, %s98
    %s122 = sphi 0, %s124
    %s125 = sphi 0, %s122
    %s126 = sphi 0, %s125
    %s142 = sphi 0, %s126
  $region4: #{resnet_forward.14} parent=0 // loop_header_branch
    %12 = sbr.rel (%p10) target = $region8
  $region5: #{resnet_forward.14} parent=0 // loop_body
    %s14 = ssub.s32 %s9, 1
    %s15 = ssub.s32 %s9, 2
    %s25 = sadd.s32 1, %s18
    %p26 = scmp.ge.s32.totalorder %s25, 1
    %s27 = scalar_select %p26, 0, %s25
    %s28 = sadd.s32 1, %s17
    %s29 = scalar_select %p26, %s28, %s17
    %p30 = scmp.ge.s32.totalorder %s29, 1
    %s31 = scalar_select %p30, 0, %s29
    %s32 = sadd.s32 1, %s16
    %s33 = scalar_select %p30, %s32, %s16
    %p34 = scmp.ge.s32.totalorder %s33, 2
    %s35 = scalar_select %p34, 0, %s33
    %s36 = ssub.s32 %s16, %s35
    %s37 = ssub.s32 %s18, %s27
    %s38 = sor.u32 %s36, %s37
    %p39 = scmp.eq.s32.totalorder %s38, 0
    %s41 = sadd.s32 %s40, 1
    %s42 = scalar_select %p39, %s40, %s41
    %p45 = pneg %p39
    %p46 = scmp.eq.s32.totalorder %s9, 1
    %p47 = por %p45, %p46
    %p48 = scmp.ne.s32.totalorder %s40, %s43
    %p49 = scmp.eq.s32.totalorder %s9, 0
    %p50 = por %p48, %p49
    %p51 = scmp.ne.s32.totalorder %s40, %s43
    %p52 = scmp.eq.s32.totalorder %s14, 1
    %p53 = por %p51, %p52
    %p54 = scmp.ne.s32.totalorder %s43, %s44
    %p55 = scmp.eq.s32.totalorder %s14, 0
    %p56 = por %p54, %p55
    %p57 = scmp.ne.s32.totalorder %s43, %s44
    %p58 = scmp.eq.s32.totalorder %s15, 1
    %p59 = por %p57, %p58
    %p61 = scmp.ne.s32.totalorder %s44, %s60
    %p62 = scmp.eq.s32.totalorder %s15, 0
    %p63 = por %p61, %p62
    %s64 = ssub.s32 %s18, %s27
    %s65 = ssub.s32 %s17, %s31
    %s66 = sor.u32 %s64, %s65
    %p67 = scmp.eq.s32.totalorder %s66, 0
    %s69 = sadd.s32 %s68, 1
    %s70 = scalar_select %p67, %s68, %s69
    %p73 = pneg %p67
    %p74 = scmp.eq.s32.totalorder %s9, 1
    %p75 = por %p73, %p74
    %p76 = scmp.ne.s32.totalorder %s68, %s71
    %p77 = scmp.eq.s32.totalorder %s9, 0
    %p78 = por %p76, %p77
    %p79 = scmp.ne.s32.totalorder %s68, %s71
    %p80 = scmp.eq.s32.totalorder %s14, 1
    %p81 = por %p79, %p80
    %p82 = scmp.ne.s32.totalorder %s71, %s72
    %p83 = scmp.eq.s32.totalorder %s14, 0
    %p84 = por %p82, %p83
    %p85 = scmp.ne.s32.totalorder %s71, %s72
    %p86 = scmp.eq.s32.totalorder %s15, 1
    %p87 = por %p85, %p86
    %p89 = scmp.ne.s32.totalorder %s72, %s88
    %p90 = scmp.eq.s32.totalorder %s15, 0
    %p91 = por %p89, %p90
    %s92 = ssub.s32 %s17, %s31
    %p93 = scmp.eq.s32.totalorder %s92, 0
    %s95 = sadd.s32 %s94, 1
    %s96 = scalar_select %p93, %s94, %s95
    %p99 = pneg %p93
    %p100 = scmp.eq.s32.totalorder %s9, 1
    %p101 = por %p99, %p100
    %p102 = scmp.ne.s32.totalorder %s94, %s97
    %p103 = scmp.eq.s32.totalorder %s9, 0
    %p104 = por %p102, %p103
    %p105 = scmp.ne.s32.totalorder %s94, %s97
    %p106 = scmp.eq.s32.totalorder %s14, 1
    %p107 = por %p105, %p106
    %p108 = scmp.ne.s32.totalorder %s97, %s98
    %p109 = scmp.eq.s32.totalorder %s14, 0
    %p110 = por %p108, %p109
    %p111 = scmp.ne.s32.totalorder %s97, %s98
    %p112 = scmp.eq.s32.totalorder %s15, 1
    %p113 = por %p111, %p112
    %p115 = scmp.ne.s32.totalorder %s98, %s114
    %p116 = scmp.eq.s32.totalorder %s15, 0
    %p117 = por %p115, %p116
    %s118 = ssub.s32 %s16, %s35
    %s119 = ssub.s32 %s17, %s31
    %s120 = sor.u32 %s118, %s119
    %p121 = scmp.eq.s32.totalorder %s120, 0
    %s123 = sadd.s32 %s122, 1
    %s124 = scalar_select %p121, %s122, %s123
    %p127 = pneg %p121
    %p128 = scmp.eq.s32.totalorder %s9, 1
    %p129 = por %p127, %p128
    %p130 = scmp.ne.s32.totalorder %s122, %s125
    %p131 = scmp.eq.s32.totalorder %s9, 0
    %p132 = por %p130, %p131
    %p133 = scmp.ne.s32.totalorder %s122, %s125
    %p134 = scmp.eq.s32.totalorder %s14, 1
    %p135 = por %p133, %p134
    %p136 = scmp.ne.s32.totalorder %s125, %s126
    %p137 = scmp.eq.s32.totalorder %s14, 0
    %p138 = por %p136, %p137
    %p139 = scmp.ne.s32.totalorder %s125, %s126
    %p140 = scmp.eq.s32.totalorder %s15, 1
    %p141 = por %p139, %p140
    %p143 = scmp.ne.s32.totalorder %s126, %s142
    %p144 = scmp.eq.s32.totalorder %s15, 0
    %p145 = por %p143, %p144
    %p146 = scmp.le.s32.totalorder 1, %s9
    %p147 = scmp.lt.s32.totalorder %s9, 3
    %p148 = pnand %p146, %p147
    %p149 = pneg %p148
    // Predicated region
    $region9: #{resnet_forward.14} parent=5 // pred_check
      _
    $region10: #{resnet_forward.14} parent=5 // pred_check_branch
      %151 = sbr.rel (%p148) target = $region12
    $region11: #{resnet_forward.14} parent=5 // pred_region
      %s152 = ssub.s32 %s9, 1
      // Predicated region
      $region13: #{resnet_forward.14} parent=11 // pred_check
        %p153 = pneg %p84
      $region14: #{resnet_forward.14} parent=11 // pred_check_branch
        %155 = sbr.rel (%p153) target = $region16
      $region15: #{resnet_forward.14} parent=11 // pred_region
        %s156 = smul.u32 80, %s21
        %p157 = scmp.lt.s32.totalorder %s156, 79
        %s158 = scalar_select %p157, %s156, 79
        %p159 = scmp.lt.s32.totalorder %s20, 0
        %s160 = scalar_select %p159, %s20, 0
        %s161 = sadd.s32 %s160, %s158
        %s162 = smul.addr %s161, 4
        %s163 = scalar_lea.vmem %s1, %s162
        %s164 = smul.u32 80, %s21
      $region16: #{resnet_forward.14} parent=11 // pred_fallthru
        _
      // Predicated region
      $region17: #{resnet_forward.14} parent=11 // pred_check
        %p165 = pneg %p110
      $region18: #{resnet_forward.14} parent=11 // pred_check_branch
        %167 = sbr.rel (%p165) target = $region20
      $region19: #{resnet_forward.14} parent=11 // pred_region
        %p168 = scmp.lt.s32.totalorder %s20, 0
        %s169 = scalar_select %p168, %s20, 0
        %s170 = scalar_lea.vmem %s2, %s169
      $region20: #{resnet_forward.14} parent=11 // pred_fallthru
        _
    $region12: #{resnet_forward.14} parent=5 // pred_fallthru
      _
    %p171 = scmp.lt.s32.totalorder %s9, 2
    // Predicated region
    $region21: #{resnet_forward.14} parent=5 // pred_check
      %p172 = pneg %p171
    $region22: #{resnet_forward.14} parent=5 // pred_check_branch
      %174 = sbr.rel (%p172) target = $region24
    $region23: #{resnet_forward.14} parent=5 // pred_region
      // Predicated region
      $region25: #{resnet_forward.14} parent=23 // pred_check
        %p175 = pneg %p50
      $region26: #{resnet_forward.14} parent=23 // pred_check_branch
        %177 = sbr.rel (%p175) target = $region28
      $region27: #{resnet_forward.14} parent=23 // pred_region
        %s178 = smul.u32 8, %s16
        %s179 = smul.u32 5, %s18
        %p180 = scmp.lt.s32.totalorder %s178, 15
        %s181 = scalar_select %p180, %s178, 15
        %p182 = scmp.lt.s32.totalorder %s179, 4
        %s183 = scalar_select %p182, %s179, 4
        %s184 = smul.addr %s181, 5
        %s185 = sadd.s32 %s183, %s184
        %s186 = smul.addr %s185, 4
        %s187 = scalar_lea.vmem %s0, %s186
        %s188 = smul.u32 8, %s16
        %s189 = smul.u32 5, %s18
      $region28: #{resnet_forward.14} parent=23 // pred_fallthru
        _
    $region24: #{resnet_forward.14} parent=5 // pred_fallthru
      _
    %p190 = scmp.le.s32.totalorder 1, %s9
    %p191 = scmp.lt.s32.totalorder %s9, 3
    %p192 = pnand %p190, %p191
    %p193 = pneg %p192
    // Predicated region
    $region29: #{resnet_forward.14} parent=5 // pred_check
      _
    $region30: #{resnet_forward.14} parent=5 // pred_check_branch
      %195 = sbr.rel (%p192) target = $region32
    $region31: #{resnet_forward.14} parent=5 // pred_region
      %s196 = ssub.s32 %s9, 1
      %s197 = smul.u32 8, %s19
      %s198 = smul.u32 5, %s21
      %p199 = scmp.lt.s32.totalorder %s197, 15
      %s200 = scalar_select %p199, %s197, 15
      %p201 = scmp.lt.s32.totalorder %s198, 4
      %s202 = scalar_select %p201, %s198, 4
      %s203 = smul.addr %s200, 5
      %s204 = sadd.s32 %s202, %s203
      %s205 = smul.addr %s204, 4
      %s206 = scalar_lea.vmem %s0, %s205
      %p207 = pneg %p56
      %p208 = pneg %p53
      %s209 = smul.u32 80, %s21
      %p210 = scmp.lt.s32.totalorder %s209, 79
      %s211 = scalar_select %p210, %s209, 79
      %p212 = scmp.lt.s32.totalorder %s20, 0
      %s213 = scalar_select %p212, %s20, 0
      %s214 = sadd.s32 %s213, %s211
      %s215 = smul.addr %s214, 4
      %s216 = scalar_lea.vmem %s1, %s215
      %p217 = pneg %p84
      %p218 = pneg %p81
      %p219 = scmp.lt.s32.totalorder %s20, 0
      %s220 = scalar_select %p219, %s20, 0
      %s221 = scalar_lea.vmem %s2, %s220
      %p222 = pneg %p110
      %p223 = pneg %p107
      %p224 = pneg %p138
      %p225 = pneg %p135
      %s226 = smul.u32 8, %s19
      %p227 = scmp.lt.s32.totalorder %s226, 15
      %s228 = scalar_select %p227, %s226, 15
      %p229 = scmp.lt.s32.totalorder %s20, 0
      %s230 = scalar_select %p229, %s20, 0
      %s231 = sadd.s32 %s230, %s228
      %s232 = smul.addr %s231, 4
      %s233 = scalar_lea.vmem %s3, %s232
      %s234 = smul.u32 8, %s19
      %s235 = smul.u32 5, %s21
      %p236 = scmp.lt.s32.totalorder %s234, 15
      %s237 = scalar_select %p236, %s234, 15
      %p238 = scmp.lt.s32.totalorder %s235, 4
      %s239 = scalar_select %p238, %s235, 4
      %s240 = smul.addr %s237, 5
      %s241 = sadd.s32 %s239, %s240
      %s242 = smul.addr %s241, 4
      %s243 = scalar_lea.vmem %s0, %s242
      %s244 = smul.u32 8, %s19
      %s245 = smul.u32 5, %s21
      %s246 = smul.u32 80, %s21
      %p247 = scmp.lt.s32.totalorder %s246, 79
      %s248 = scalar_select %p247, %s246, 79
      %p249 = scmp.lt.s32.totalorder %s20, 0
      %s250 = scalar_select %p249, %s20, 0
      %s251 = sadd.s32 %s250, %s248
      %s252 = smul.addr %s251, 4
      %s253 = scalar_lea.vmem %s1, %s252
      %s254 = smul.u32 80, %s21
      %p255 = scmp.lt.s32.totalorder %s20, 0
      %s256 = scalar_select %p255, %s20, 0
      %s257 = scalar_lea.vmem %s2, %s256
      %s258 = smul.u32 8, %s19
      %p259 = scmp.lt.s32.totalorder %s258, 15
      %s260 = scalar_select %p259, %s258, 15
      %p261 = scmp.lt.s32.totalorder %s20, 0
      %s262 = scalar_select %p261, %s20, 0
      %s263 = sadd.s32 %s262, %s260
      %s264 = smul.addr %s263, 4
      %s265 = scalar_lea.vmem %s3, %s264
      %s266 = smul.u32 8, %s19
      %p268 = scmp.eq.s32.totalorder %s21, 0
      // Predicated region
      $region33: #{resnet_forward.14} parent=31 // pred_check
        %p269 = pneg %p268
      $region34: #{resnet_forward.14} parent=31 // pred_check_branch
        %271 = sbr.rel (%p269) target = $region36
      $region35: #{resnet_forward.14} parent=31 // pred_region
        %272 = vst [vmem:[#allocation2] sm:$0xff] 0.0
        %273 = vst [vmem:[#allocation2 + $0x8] sm:$0xff] 0.0
        %274 = vst [vmem:[#allocation2 + $0x10] sm:$0xff] 0.0
        %275 = vst [vmem:[#allocation2 + $0x18] sm:$0xff] 0.0
        %276 = vst [vmem:[#allocation2 + $0x20] sm:$0xff] 0.0
        %277 = vst [vmem:[#allocation2 + $0x28] sm:$0xff] 0.0
        %278 = vst [vmem:[#allocation2 + $0x30] sm:$0xff] 0.0
        %279 = vst [vmem:[#allocation2 + $0x38] sm:$0xff] 0.0
      $region36: #{resnet_forward.14} parent=31 // pred_fallthru
        _
      %v280 = vld [vmem:[#allocation2] sm:$0xff]
      %v281 = vld [vmem:[#allocation2 + $0x8] sm:$0xff]
      %v282 = vld [vmem:[#allocation2 + $0x10] sm:$0xff]
      %v283 = vld [vmem:[#allocation2 + $0x18] sm:$0xff]
      %v284 = vld [vmem:[#allocation2 + $0x20] sm:$0xff]
      %v285 = vld [vmem:[#allocation2 + $0x28] sm:$0xff]
      %v286 = vld [vmem:[#allocation2 + $0x30] sm:$0xff]
      %v287 = vld [vmem:[#allocation2 + $0x38] sm:$0xff]
      %v288 = vld [vmem:[%s243] sm:$0xff]
      %v289 = vld [vmem:[%s243 + $0x8] sm:$0xff]
      %v290 = vld [vmem:[%s243 + $0x10] sm:$0xf]
      %v291 = vld [vmem:[%s243 + $0x14] sm:$0xff]
      %v292 = vld [vmem:[%s243 + $0x1c] sm:$0xff]
      %v293 = vld [vmem:[%s243 + $0x24] sm:$0xf]
      %v294 = vld [vmem:[%s243 + $0x28] sm:$0xff]
      %v295 = vld [vmem:[%s243 + $0x30] sm:$0xff]
      %v296 = vld [vmem:[%s243 + $0x38] sm:$0xf]
      %v297 = vld [vmem:[%s243 + $0x3c] sm:$0xff]
      %v298 = vld [vmem:[%s243 + $0x44] sm:$0xff]
      %v299 = vld [vmem:[%s243 + $0x4c] sm:$0xf]
      %v300 = vld [vmem:[%s243 + $0x50] sm:$0xff]
      %v301 = vld [vmem:[%s243 + $0x58] sm:$0xff]
      %v302 = vld [vmem:[%s243 + $0x60] sm:$0xf]
      %v303 = vld [vmem:[%s243 + $0x64] sm:$0xff]
      %v304 = vld [vmem:[%s243 + $0x6c] sm:$0xff]
      %v305 = vld [vmem:[%s243 + $0x74] sm:$0xf]
      %v306 = vld [vmem:[%s243 + $0x78] sm:$0xff]
      %v307 = vld [vmem:[%s243 + $0x80] sm:$0xff]
      %v308 = vld [vmem:[%s243 + $0x88] sm:$0xf]
      %v309 = vld [vmem:[%s243 + $0x8c] sm:$0xff]
      %v310 = vld [vmem:[%s243 + $0x94] sm:$0xff]
      %v311 = vld [vmem:[%s243 + $0x9c] sm:$0xf]
      %v312 = vld [vmem:[%s253] sm:$0xf]
      %v313 = vld [vmem:[%s253 + $0x4] sm:$0xf]
      %v314 = vld [vmem:[%s253 + $0x8] sm:$0xf]
      %v315 = vld [vmem:[%s253 + $0xc] sm:$0xf]
      %v316 = vld [vmem:[%s253 + $0x10] sm:$0xf]
      %v317 = vld [vmem:[%s253 + $0x14] sm:$0xf]
      %v318 = vld [vmem:[%s253 + $0x18] sm:$0xf]
      %v319 = vld [vmem:[%s253 + $0x1c] sm:$0xf]
      %v320 = vld [vmem:[%s253 + $0x20] sm:$0xf]
      %v321 = vld [vmem:[%s253 + $0x24] sm:$0xf]
      %v322 = vld [vmem:[%s253 + $0x28] sm:$0xf]
      %v323 = vld [vmem:[%s253 + $0x2c] sm:$0xf]
      %v324 = vld [vmem:[%s253 + $0x30] sm:$0xf]
      %v325 = vld [vmem:[%s253 + $0x34] sm:$0xf]
      %v326 = vld [vmem:[%s253 + $0x38] sm:$0xf]
      %v327 = vld [vmem:[%s253 + $0x3c] sm:$0xf]
      %v328 = vld [vmem:[%s253 + $0x40] sm:$0xf]
      %v329 = vld [vmem:[%s253 + $0x44] sm:$0xf]
      %v330 = vld [vmem:[%s253 + $0x48] sm:$0xf]
      %v331 = vld [vmem:[%s253 + $0x4c] sm:$0xf]
      %v332 = vld [vmem:[%s253 + $0x50] sm:$0xf]
      %v333 = vld [vmem:[%s253 + $0x54] sm:$0xf]
      %v334 = vld [vmem:[%s253 + $0x58] sm:$0xf]
      %v335 = vld [vmem:[%s253 + $0x5c] sm:$0xf]
      %v336 = vld [vmem:[%s253 + $0x60] sm:$0xf]
      %v337 = vld [vmem:[%s253 + $0x64] sm:$0xf]
      %v338 = vld [vmem:[%s253 + $0x68] sm:$0xf]
      %v339 = vld [vmem:[%s253 + $0x6c] sm:$0xf]
      %v340 = vld [vmem:[%s253 + $0x70] sm:$0xf]
      %v341 = vld [vmem:[%s253 + $0x74] sm:$0xf]
      %v342 = vld [vmem:[%s253 + $0x78] sm:$0xf]
      %v343 = vld [vmem:[%s253 + $0x7c] sm:$0xf]
      %v344 = vld [vmem:[%s253 + $0x80] sm:$0xf]
      %v345 = vld [vmem:[%s253 + $0x84] sm:$0xf]
      %v346 = vld [vmem:[%s253 + $0x88] sm:$0xf]
      %v347 = vld [vmem:[%s253 + $0x8c] sm:$0xf]
      %v348 = vld [vmem:[%s253 + $0x90] sm:$0xf]
      %v349 = vld [vmem:[%s253 + $0x94] sm:$0xf]
      %v350 = vld [vmem:[%s253 + $0x98] sm:$0xf]
      %v351 = vld [vmem:[%s253 + $0x9c] sm:$0xf]
      %v352 = vld [vmem:[%s253 + $0xa0] sm:$0xf]
      %v353 = vld [vmem:[%s253 + $0xa4] sm:$0xf]
      %v354 = vld [vmem:[%s253 + $0xa8] sm:$0xf]
      %v355 = vld [vmem:[%s253 + $0xac] sm:$0xf]
      %v356 = vld [vmem:[%s253 + $0xb0] sm:$0xf]
      %v357 = vld [vmem:[%s253 + $0xb4] sm:$0xf]
      %v358 = vld [vmem:[%s253 + $0xb8] sm:$0xf]
      %v359 = vld [vmem:[%s253 + $0xbc] sm:$0xf]
      %v360 = vld [vmem:[%s253 + $0xc0] sm:$0xf]
      %v361 = vld [vmem:[%s253 + $0xc4] sm:$0xf]
      %v362 = vld [vmem:[%s253 + $0xc8] sm:$0xf]
      %v363 = vld [vmem:[%s253 + $0xcc] sm:$0xf]
      %v364 = vld [vmem:[%s253 + $0xd0] sm:$0xf]
      %v365 = vld [vmem:[%s253 + $0xd4] sm:$0xf]
      %v366 = vld [vmem:[%s253 + $0xd8] sm:$0xf]
      %v367 = vld [vmem:[%s253 + $0xdc] sm:$0xf]
      %v368 = vld [vmem:[%s253 + $0xe0] sm:$0xf]
      %v369 = vld [vmem:[%s253 + $0xe4] sm:$0xf]
      %v370 = vld [vmem:[%s253 + $0xe8] sm:$0xf]
      %v371 = vld [vmem:[%s253 + $0xec] sm:$0xf]
      %v372 = vld [vmem:[%s253 + $0xf0] sm:$0xf]
      %v373 = vld [vmem:[%s253 + $0xf4] sm:$0xf]
      %v374 = vld [vmem:[%s253 + $0xf8] sm:$0xf]
      %v375 = vld [vmem:[%s253 + $0xfc] sm:$0xf]
      %v376 = vld [vmem:[%s253 + $0x100] sm:$0xf]
      %v377 = vld [vmem:[%s253 + $0x104] sm:$0xf]
      %v378 = vld [vmem:[%s253 + $0x108] sm:$0xf]
      %v379 = vld [vmem:[%s253 + $0x10c] sm:$0xf]
      %v380 = vld [vmem:[%s253 + $0x110] sm:$0xf]
      %v381 = vld [vmem:[%s253 + $0x114] sm:$0xf]
      %v382 = vld [vmem:[%s253 + $0x118] sm:$0xf]
      %v383 = vld [vmem:[%s253 + $0x11c] sm:$0xf]
      %v384 = vld [vmem:[%s253 + $0x120] sm:$0xf]
      %v385 = vld [vmem:[%s253 + $0x124] sm:$0xf]
      %v386 = vld [vmem:[%s253 + $0x128] sm:$0xf]
      %v387 = vld [vmem:[%s253 + $0x12c] sm:$0xf]
      %v388 = vld [vmem:[%s253 + $0x130] sm:$0xf]
      %v389 = vld [vmem:[%s253 + $0x134] sm:$0xf]
      %v390 = vld [vmem:[%s253 + $0x138] sm:$0xf]
      %v391 = vld [vmem:[%s253 + $0x13c] sm:$0xf]
      %v416 = vunpack.c.l.b16 %v288
      %v417 = vunpack.c.h.b16 %v288
      %v418 = vunpack.c.l.b16 %v289
      %v419 = vunpack.c.h.b16 %v289
      %v420 = vunpack.c.l.b16 %v290
      %v421 = vunpack.c.l.b16 %v291
      %v422 = vunpack.c.h.b16 %v291
      %v423 = vunpack.c.l.b16 %v292
      %v424 = vunpack.c.h.b16 %v292
      %v425 = vunpack.c.l.b16 %v293
      %v426 = vunpack.c.l.b16 %v294
      %v427 = vunpack.c.h.b16 %v294
      %v428 = vunpack.c.l.b16 %v295
      %v429 = vunpack.c.h.b16 %v295
      %v430 = vunpack.c.l.b16 %v296
      %v431 = vunpack.c.l.b16 %v297
      %v432 = vunpack.c.h.b16 %v297
      %v433 = vunpack.c.l.b16 %v298
      %v434 = vunpack.c.h.b16 %v298
      %v435 = vunpack.c.l.b16 %v299
      %v436 = vunpack.c.l.b16 %v300
      %v437 = vunpack.c.h.b16 %v300
      %v438 = vunpack.c.l.b16 %v301
      %v439 = vunpack.c.h.b16 %v301
      %v440 = vunpack.c.l.b16 %v302
      %v441 = vunpack.c.l.b16 %v303
      %v442 = vunpack.c.h.b16 %v303
      %v443 = vunpack.c.l.b16 %v304
      %v444 = vunpack.c.h.b16 %v304
      %v445 = vunpack.c.l.b16 %v305
      %v446 = vunpack.c.l.b16 %v306
      %v447 = vunpack.c.h.b16 %v306
      %v448 = vunpack.c.l.b16 %v307
      %v449 = vunpack.c.h.b16 %v307
      %v450 = vunpack.c.l.b16 %v308
      %v451 = vunpack.c.l.b16 %v309
      %v452 = vunpack.c.h.b16 %v309
      %v453 = vunpack.c.l.b16 %v310
      %v454 = vunpack.c.h.b16 %v310
      %v455 = vunpack.c.l.b16 %v311
      %v456 = vpack.c.b16 %v421, %v416
      %v457 = vpack.c.b16 %v422, %v417
      %v458 = vpack.c.b16 %v423, %v418
      %v459 = vpack.c.b16 %v424, %v419
      %v460 = vpack.c.b16 %v425, %v420
      %v461 = vpack.c.b16 %v431, %v426
      %v462 = vpack.c.b16 %v432, %v427
      %v463 = vpack.c.b16 %v433, %v428
      %v464 = vpack.c.b16 %v434, %v429
      %v465 = vpack.c.b16 %v435, %v430
      %v466 = vpack.c.b16 %v441, %v436
      %v467 = vpack.c.b16 %v442, %v437
      %v468 = vpack.c.b16 %v443, %v438
      %v469 = vpack.c.b16 %v444, %v439
      %v470 = vpack.c.b16 %v445, %v440
      %v471 = vpack.c.b16 %v451, %v446
      %v472 = vpack.c.b16 %v452, %v447
      %v473 = vpack.c.b16 %v453, %v448
      %v474 = vpack.c.b16 %v454, %v449
      %v475 = vpack.c.b16 %v455, %v450
      %v576 = vunpack.c.l.b16 %v312
      %v577 = vunpack.c.l.b16 %v313
      %v578 = vunpack.c.l.b16 %v314
      %v579 = vunpack.c.l.b16 %v315
      %v580 = vunpack.c.l.b16 %v316
      %v581 = vunpack.c.l.b16 %v317
      %v582 = vunpack.c.l.b16 %v318
      %v583 = vunpack.c.l.b16 %v319
      %v584 = vunpack.c.l.b16 %v320
      %v585 = vunpack.c.l.b16 %v321
      %v586 = vunpack.c.l.b16 %v322
      %v587 = vunpack.c.l.b16 %v323
      %v588 = vunpack.c.l.b16 %v324
      %v589 = vunpack.c.l.b16 %v325
      %v590 = vunpack.c.l.b16 %v326
      %v591 = vunpack.c.l.b16 %v327
      %v592 = vunpack.c.l.b16 %v328
      %v593 = vunpack.c.l.b16 %v329
      %v594 = vunpack.c.l.b16 %v330
      %v595 = vunpack.c.l.b16 %v331
      %v596 = vunpack.c.l.b16 %v332
      %v597 = vunpack.c.l.b16 %v333
      %v598 = vunpack.c.l.b16 %v334
      %v599 = vunpack.c.l.b16 %v335
      %v600 = vunpack.c.l.b16 %v336
      %v601 = vunpack.c.l.b16 %v337
      %v602 = vunpack.c.l.b16 %v338
      %v603 = vunpack.c.l.b16 %v339
      %v604 = vunpack.c.l.b16 %v340
      %v605 = vunpack.c.l.b16 %v341
      %v606 = vunpack.c.l.b16 %v342
      %v607 = vunpack.c.l.b16 %v343
      %v608 = vunpack.c.l.b16 %v344
      %v609 = vunpack.c.l.b16 %v345
      %v610 = vunpack.c.l.b16 %v346
      %v611 = vunpack.c.l.b16 %v347
      %v612 = vunpack.c.l.b16 %v348
      %v613 = vunpack.c.l.b16 %v349
      %v614 = vunpack.c.l.b16 %v350
      %v615 = vunpack.c.l.b16 %v351
      %v616 = vunpack.c.l.b16 %v352
      %v617 = vunpack.c.l.b16 %v353
      %v618 = vunpack.c.l.b16 %v354
      %v619 = vunpack.c.l.b16 %v355
      %v620 = vunpack.c.l.b16 %v356
      %v621 = vunpack.c.l.b16 %v357
      %v622 = vunpack.c.l.b16 %v358
      %v623 = vunpack.c.l.b16 %v359
      %v624 = vunpack.c.l.b16 %v360
      %v625 = vunpack.c.l.b16 %v361
      %v626 = vunpack.c.l.b16 %v362
      %v627 = vunpack.c.l.b16 %v363
      %v628 = vunpack.c.l.b16 %v364
      %v629 = vunpack.c.l.b16 %v365
      %v630 = vunpack.c.l.b16 %v366
      %v631 = vunpack.c.l.b16 %v367
      %v632 = vunpack.c.l.b16 %v368
      %v633 = vunpack.c.l.b16 %v369
      %v634 = vunpack.c.l.b16 %v370
      %v635 = vunpack.c.l.b16 %v371
      %v636 = vunpack.c.l.b16 %v372
      %v637 = vunpack.c.l.b16 %v373
      %v638 = vunpack.c.l.b16 %v374
      %v639 = vunpack.c.l.b16 %v375
      %v640 = vunpack.c.l.b16 %v376
      %v641 = vunpack.c.l.b16 %v377
      %v642 = vunpack.c.l.b16 %v378
      %v643 = vunpack.c.l.b16 %v379
      %v644 = vunpack.c.l.b16 %v380
      %v645 = vunpack.c.l.b16 %v381
      %v646 = vunpack.c.l.b16 %v382
      %v647 = vunpack.c.l.b16 %v383
      %v648 = vunpack.c.l.b16 %v384
      %v649 = vunpack.c.l.b16 %v385
      %v650 = vunpack.c.l.b16 %v386
      %v651 = vunpack.c.l.b16 %v387
      %v652 = vunpack.c.l.b16 %v388
      %v653 = vunpack.c.l.b16 %v389
      %v654 = vunpack.c.l.b16 %v390
      %v655 = vunpack.c.l.b16 %v391
      %v656 = vpack.c.b16 %v577, %v576
      %v657 = vpack.c.b16 %v579, %v578
      %v658 = vpack.c.b16 %v581, %v580
      %v659 = vpack.c.b16 %v583, %v582
      %v660 = vpack.c.b16 %v585, %v584
      %v661 = vpack.c.b16 %v587, %v586
      %v662 = vpack.c.b16 %v589, %v588
      %v663 = vpack.c.b16 %v591, %v590
      %v664 = vpack.c.b16 %v593, %v592
      %v665 = vpack.c.b16 %v595, %v594
      %v666 = vpack.c.b16 %v597, %v596
      %v667 = vpack.c.b16 %v599, %v598
      %v668 = vpack.c.b16 %v601, %v600
      %v669 = vpack.c.b16 %v603, %v602
      %v670 = vpack.c.b16 %v605, %v604
      %v671 = vpack.c.b16 %v607, %v606
      %v672 = vpack.c.b16 %v609, %v608
      %v673 = vpack.c.b16 %v611, %v610
      %v674 = vpack.c.b16 %v613, %v612
      %v675 = vpack.c.b16 %v615, %v614
      %v676 = vpack.c.b16 %v617, %v616
      %v677 = vpack.c.b16 %v619, %v618
      %v678 = vpack.c.b16 %v621, %v620
      %v679 = vpack.c.b16 %v623, %v622
      %v680 = vpack.c.b16 %v625, %v624
      %v681 = vpack.c.b16 %v627, %v626
      %v682 = vpack.c.b16 %v629, %v628
      %v683 = vpack.c.b16 %v631, %v630
      %v684 = vpack.c.b16 %v633, %v632
      %v685 = vpack.c.b16 %v635, %v634
      %v686 = vpack.c.b16 %v637, %v636
      %v687 = vpack.c.b16 %v639, %v638
      %v688 = vpack.c.b16 %v641, %v640
      %v689 = vpack.c.b16 %v643, %v642
      %v690 = vpack.c.b16 %v645, %v644
      %v691 = vpack.c.b16 %v647, %v646
      %v692 = vpack.c.b16 %v649, %v648
      %v693 = vpack.c.b16 %v651, %v650
      %v694 = vpack.c.b16 %v653, %v652
      %v695 = vpack.c.b16 %v655, %v654
      %736 = vmatprep.subr.bf16.mxu0 0
      %737 = vmatpush1.bf16.msra.mxu0 %v656
      %738 = vmatprep.subr.bf16.mxu0 0
      %739 = vmatpush1.bf16.msra.mxu0 %v657
      %740 = vmatprep.subr.bf16.mxu0 0
      %741 = vmatpush1.bf16.msra.mxu0 %v658
      %742 = vmatprep.subr.bf16.mxu0 0
      %743 = vmatpush1.bf16.msra.mxu0 %v659
      %744 = vmatprep.subr.bf16.mxu0 0
      %745 = vmatpush1.bf16.msra.mxu0 %v660
      %746 = vmatprep.subr.bf16.mxu0 0
      %747 = vmatpush1.bf16.msra.mxu0 %v661
      %748 = vmatprep.subr.bf16.mxu0 0
      %749 = vmatpush1.bf16.msra.mxu0 %v662
      %750 = vmatprep.subr.bf16.mxu0 0
      %751 = vmatpush1.bf16.msra.mxu0 %v663
      %752 = vmatprep.subr.bf16.mxu0 0
      %753 = vmatpush1.bf16.msra.mxu0 %v664
      %754 = vmatprep.subr.bf16.mxu0 0
      %755 = vmatpush1.bf16.msra.mxu0 %v665
      %756 = vmatprep.subr.bf16.mxu0 0
      %757 = vmatpush1.bf16.msra.mxu0 %v666
      %758 = vmatprep.subr.bf16.mxu0 0
      %759 = vmatpush1.bf16.msra.mxu0 %v667
      %760 = vmatprep.subr.bf16.mxu0 0
      %761 = vmatpush1.bf16.msra.mxu0 %v668
      %762 = vmatprep.subr.bf16.mxu0 0
      %763 = vmatpush1.bf16.msra.mxu0 %v669
      %764 = vmatprep.subr.bf16.mxu0 0
      %765 = vmatpush1.bf16.msra.mxu0 %v670
      %766 = vmatprep.subr.bf16.mxu0 0
      %767 = vmatpush1.bf16.msra.mxu0 %v671
      %768 = vmatprep.mubr.bf16.mxu0 %v457
      %769 = vmatmul.mubr.bf16.gmra.mrb[0].mxu0 %v456
      %v770 = vpop.f32.mrb[0].mxu0
      %v771 = vadd.f32 0.0, %v770
      %v772 = vpop.f32.mrb[0].mxu0
      %v773 = vpop.f32.mrb[0].mxu0
      %v774 = vadd.f32 0.0, %v773
      %v775 = vpop.f32.mrb[0].mxu0
      %776 = vmatprep.mubr.bf16.mxu0 %v462
      %777 = vmatmul.mubr.bf16.gmra.mrb[0].mxu0 %v461
      %v778 = vpop.f32.mrb[0].mxu0
      %v779 = vadd.f32 0.0, %v778
      %v780 = vpop.f32.mrb[0].mxu0
      %v781 = vpop.f32.mrb[0].mxu0
      %v782 = vadd.f32 0.0, %v781
      %v783 = vpop.f32.mrb[0].mxu0
      %784 = vmatprep.mubr.bf16.mxu0 %v467
      %785 = vmatmul.mubr.bf16.gmra.mrb[0].mxu0 %v466
      %v786 = vpop.f32.mrb[0].mxu0
      %v787 = vadd.f32 0.0, %v786
      %v788 = vpop.f32.mrb[0].mxu0
      %v789 = vpop.f32.mrb[0].mxu0
      %v790 = vadd.f32 0.0, %v789
      %v791 = vpop.f32.mrb[0].mxu0
      %792 = vmatprep.mubr.bf16.mxu0 %v472
      %793 = vmatmul.mubr.bf16.gmra.mrb[0].mxu0 %v471
      %v794 = vpop.f32.mrb[0].mxu0
      %v795 = vadd.f32 0.0, %v794
      %v796 = vpop.f32.mrb[0].mxu0
      %v797 = vpop.f32.mrb[0].mxu0
      %v798 = vadd.f32 0.0, %v797
      %v799 = vpop.f32.mrb[0].mxu0
      %800 = vdwg.mxu0
      %801 = vmatprep.subr.bf16.mxu0 0
      %802 = vmatpush1.bf16.msra.mxu0 %v672
      %803 = vmatprep.subr.bf16.mxu0 0
      %804 = vmatpush1.bf16.msra.mxu0 %v673
      %805 = vmatprep.subr.bf16.mxu0 0
      %806 = vmatpush1.bf16.msra.mxu0 %v674
      %807 = vmatprep.subr.bf16.mxu0 0
      %808 = vmatpush1.bf16.msra.mxu0 %v675
      %809 = vmatprep.subr.bf16.mxu0 0
      %810 = vmatpush1.bf16.msra.mxu0 %v676
      %811 = vmatprep.subr.bf16.mxu0 0
      %812 = vmatpush1.bf16.msra.mxu0 %v677
      %813 = vmatprep.subr.bf16.mxu0 0
      %814 = vmatpush1.bf16.msra.mxu0 %v678
      %815 = vmatprep.subr.bf16.mxu0 0
      %816 = vmatpush1.bf16.msra.mxu0 %v679
      %817 = vmatprep.subr.bf16.mxu0 0
      %818 = vmatpush1.bf16.msra.mxu0 %v680
      %819 = vmatprep.subr.bf16.mxu0 0
      %820 = vmatpush1.bf16.msra.mxu0 %v681
      %821 = vmatprep.subr.bf16.mxu0 0
      %822 = vmatpush1.bf16.msra.mxu0 %v682
      %823 = vmatprep.subr.bf16.mxu0 0
      %824 = vmatpush1.bf16.msra.mxu0 %v683
      %825 = vmatprep.subr.bf16.mxu0 0
      %826 = vmatpush1.bf16.msra.mxu0 %v684
      %827 = vmatprep.subr.bf16.mxu0 0
      %828 = vmatpush1.bf16.msra.mxu0 %v685
      %829 = vmatprep.subr.bf16.mxu0 0
      %830 = vmatpush1.bf16.msra.mxu0 %v686
      %831 = vmatprep.subr.bf16.mxu0 0
      %832 = vmatpush1.bf16.msra.mxu0 %v687
      %833 = vmatprep.mubr.bf16.mxu0 %v459
      %834 = vmatmul.mubr.bf16.gmra.mrb[0].mxu0 %v458
      %v835 = vpop.f32.mrb[0].mxu0
      %v836 = vadd.f32 %v771, %v835
      %v837 = vpop.f32.mrb[0].mxu0
      %v838 = vpop.f32.mrb[0].mxu0
      %v839 = vadd.f32 %v774, %v838
      %v840 = vpop.f32.mrb[0].mxu0
      %841 = vmatprep.mubr.bf16.mxu0 %v464
      %842 = vmatmul.mubr.bf16.gmra.mrb[0].mxu0 %v463
      %v843 = vpop.f32.mrb[0].mxu0
      %v844 = vadd.f32 %v779, %v843
      %v845 = vpop.f32.mrb[0].mxu0
      %v846 = vpop.f32.mrb[0].mxu0
      %v847 = vadd.f32 %v782, %v846
      %v848 = vpop.f32.mrb[0].mxu0
      %849 = vmatprep.mubr.bf16.mxu0 %v469
      %850 = vmatmul.mubr.bf16.gmra.mrb[0].mxu0 %v468
      %v851 = vpop.f32.mrb[0].mxu0
      %v852 = vadd.f32 %v787, %v851
      %v853 = vpop.f32.mrb[0].mxu0
      %v854 = vpop.f32.mrb[0].mxu0
      %v855 = vadd.f32 %v790, %v854
      %v856 = vpop.f32.mrb[0].mxu0
      %857 = vmatprep.mubr.bf16.mxu0 %v474
      %858 = vmatmul.mubr.bf16.gmra.mrb[0].mxu0 %v473
      %v859 = vpop.f32.mrb[0].mxu0
      %v860 = vadd.f32 %v795, %v859
      %v861 = vpop.f32.mrb[0].mxu0
      %v862 = vpop.f32.mrb[0].mxu0
      %v863 = vadd.f32 %v798, %v862
      %v864 = vpop.f32.mrb[0].mxu0
      %865 = vdwg.mxu0
      %866 = vmatprep.subr.bf16.mxu0 0
      %867 = vmatpush1.bf16.msra.mxu0 %v688
      %868 = vmatprep.subr.bf16.mxu0 0
      %869 = vmatpush1.bf16.msra.mxu0 %v689
      %870 = vmatprep.subr.bf16.mxu0 0
      %871 = vmatpush1.bf16.msra.mxu0 %v690
      %872 = vmatprep.subr.bf16.mxu0 0
      %873 = vmatpush1.bf16.msra.mxu0 %v691
      %874 = vmatprep.subr.bf16.mxu0 0
      %875 = vmatpush1.bf16.msra.mxu0 %v692
      %876 = vmatprep.subr.bf16.mxu0 0
      %877 = vmatpush1.bf16.msra.mxu0 %v693
      %878 = vmatprep.subr.bf16.mxu0 0
      %879 = vmatpush1.bf16.msra.mxu0 %v694
      %880 = vmatprep.subr.bf16.mxu0 0
      %881 = vmatpush1.bf16.msra.mxu0 %v695
      %882 = vmatprep.subr.bf16.mxu0 0
      %883 = vmatpush1.bf16.msra.mxu0 0
      %884 = vmatprep.subr.bf16.mxu0 0
      %885 = vmatpush1.bf16.msra.mxu0 0
      %886 = vmatprep.subr.bf16.mxu0 0
      %887 = vmatpush1.bf16.msra.mxu0 0
      %888 = vmatprep.subr.bf16.mxu0 0
      %889 = vmatpush1.bf16.msra.mxu0 0
      %890 = vmatprep.subr.bf16.mxu0 0
      %891 = vmatpush1.bf16.msra.mxu0 0
      %892 = vmatprep.subr.bf16.mxu0 0
      %893 = vmatpush1.bf16.msra.mxu0 0
      %894 = vmatprep.subr.bf16.mxu0 0
      %895 = vmatpush1.bf16.msra.mxu0 0
      %896 = vmatprep.subr.bf16.mxu0 0
      %897 = vmatpush1.bf16.msra.mxu0 0
      %898 = vmatprep.mubr.bf16.mxu0 0
      %899 = vmatmul.mubr.bf16.gmra.mrb[0].mxu0 %v460
      %v900 = vpop.f32.mrb[0].mxu0
      %v901 = vadd.f32 %v836, %v900
      %v902 = vpop.f32.mrb[0].mxu0
      %v903 = vpop.f32.mrb[0].mxu0
      %v904 = vadd.f32 %v839, %v903
      %v905 = vpop.f32.mrb[0].mxu0
      %906 = vmatprep.mubr.bf16.mxu0 0
      %907 = vmatmul.mubr.bf16.gmra.mrb[0].mxu0 %v465
      %v908 = vpop.f32.mrb[0].mxu0
      %v909 = vadd.f32 %v844, %v908
      %v910 = vpop.f32.mrb[0].mxu0
      %v911 = vpop.f32.mrb[0].mxu0
      %v912 = vadd.f32 %v847, %v911
      %v913 = vpop.f32.mrb[0].mxu0
      %914 = vmatprep.mubr.bf16.mxu0 0
      %915 = vmatmul.mubr.bf16.gmra.mrb[0].mxu0 %v470
      %v916 = vpop.f32.mrb[0].mxu0
      %v917 = vadd.f32 %v852, %v916
      %v918 = vpop.f32.mrb[0].mxu0
      %v919 = vpop.f32.mrb[0].mxu0
      %v920 = vadd.f32 %v855, %v919
      %v921 = vpop.f32.mrb[0].mxu0
      %922 = vmatprep.mubr.bf16.mxu0 0
      %923 = vmatmul.mubr.bf16.gmra.mrb[0].mxu0 %v475
      %v924 = vpop.f32.mrb[0].mxu0
      %v925 = vadd.f32 %v860, %v924
      %v926 = vpop.f32.mrb[0].mxu0
      %v927 = vpop.f32.mrb[0].mxu0
      %v928 = vadd.f32 %v863, %v927
      %v929 = vpop.f32.mrb[0].mxu0
      %930 = vdwg.mxu0
      %v931 = vadd.f32 %v280, %v901
      %v932 = vadd.f32 %v281, %v904
      %v933 = vadd.f32 %v282, %v909
      %v934 = vadd.f32 %v283, %v912
      %v935 = vadd.f32 %v284, %v917
      %v936 = vadd.f32 %v285, %v920
      %v937 = vadd.f32 %v286, %v925
      %v938 = vadd.f32 %v287, %v928
      %939 = vst [vmem:[#allocation2] sm:$0xff] %v931
      %940 = vst [vmem:[#allocation2 + $0x8] sm:$0xff] %v932
      %941 = vst [vmem:[#allocation2 + $0x10] sm:$0xff] %v933
      %942 = vst [vmem:[#allocation2 + $0x18] sm:$0xff] %v934
      %943 = vst [vmem:[#allocation2 + $0x20] sm:$0xff] %v935
      %944 = vst [vmem:[#allocation2 + $0x28] sm:$0xff] %v936
      %945 = vst [vmem:[#allocation2 + $0x30] sm:$0xff] %v937
      %946 = vst [vmem:[#allocation2 + $0x38] sm:$0xff] %v938
      // Predicated region
      $region37: #{resnet_forward.14} parent=31 // pred_check
        %p947 = pneg %p268
      $region38: #{resnet_forward.14} parent=31 // pred_check_branch
        %949 = sbr.rel (%p947) target = $region40
      $region39: #{resnet_forward.14} parent=31 // pred_region
        %v950 = vld [vmem:[#allocation2] sm:$0xff]
        %v951 = vld [vmem:[#allocation2 + $0x8] sm:$0xff]
        %v952 = vld [vmem:[#allocation2 + $0x10] sm:$0xff]
        %v953 = vld [vmem:[#allocation2 + $0x18] sm:$0xff]
        %v954 = vld [vmem:[#allocation2 + $0x20] sm:$0xff]
        %v955 = vld [vmem:[#allocation2 + $0x28] sm:$0xff]
        %v956 = vld [vmem:[#allocation2 + $0x30] sm:$0xff]
        %v957 = vld [vmem:[#allocation2 + $0x38] sm:$0xff]
        %v958 = vld [vmem:[%s257] sm:$0x1]
        %v960 = vlaneseq
        %v961 = vshrl.u32 %v960, 7
        %v962 = vsub.s32 0, %v961
        %v963 = vrot.slane %v958, %v962
        %v965 = vadd.f32 %v950, %v963
        %v966 = vadd.f32 %v951, %v963
        %v967 = vadd.f32 %v952, %v963
        %v968 = vadd.f32 %v953, %v963
        %v969 = vadd.f32 %v954, %v963
        %v970 = vadd.f32 %v955, %v963
        %v971 = vadd.f32 %v956, %v963
        %v972 = vadd.f32 %v957, %v963
        %v973 = vmax.f32 %v965, 0.0
        %v974 = vmax.f32 %v966, 0.0
        %v975 = vmax.f32 %v967, 0.0
        %v976 = vmax.f32 %v968, 0.0
        %v977 = vmax.f32 %v969, 0.0
        %v978 = vmax.f32 %v970, 0.0
        %v979 = vmax.f32 %v971, 0.0
        %v980 = vmax.f32 %v972, 0.0
        %v981 = vpack.c.bf16 %v974, %v973
        %v982 = vpack.c.bf16 %v976, %v975
        %v983 = vpack.c.bf16 %v978, %v977
        %v984 = vpack.c.bf16 %v980, %v979
        %v989 = vunpack.c.l.b16 %v981
        %v990 = vunpack.c.h.b16 %v981
        %v991 = vunpack.c.l.b16 %v982
        %v992 = vunpack.c.h.b16 %v982
        %v993 = vunpack.c.l.b16 %v983
        %v994 = vunpack.c.h.b16 %v983
        %v995 = vunpack.c.l.b16 %v984
        %v996 = vunpack.c.h.b16 %v984
        %v997 = vpack.c.b16 %v989, %v989
        %v998 = vpack.c.b16 %v990, %v990
        %v999 = vpack.c.b16 %v991, %v991
        %v1000 = vpack.c.b16 %v992, %v992
        %v1001 = vpack.c.b16 %v993, %v993
        %v1002 = vpack.c.b16 %v994, %v994
        %v1003 = vpack.c.b16 %v995, %v995
        %v1004 = vpack.c.b16 %v996, %v996
        %1013 = vst [vmem:[%s265] sm:$0xf] %v997
        %1014 = vst [vmem:[%s265 + $0x4] sm:$0xf] %v998
        %1015 = vst [vmem:[%s265 + $0x8] sm:$0xf] %v999
        %1016 = vst [vmem:[%s265 + $0xc] sm:$0xf] %v1000
        %1017 = vst [vmem:[%s265 + $0x10] sm:$0xf] %v1001
        %1018 = vst [vmem:[%s265 + $0x14] sm:$0xf] %v1002
        %1019 = vst [vmem:[%s265 + $0x18] sm:$0xf] %v1003
        %1020 = vst [vmem:[%s265 + $0x1c] sm:$0xf] %v1004
      $region40: #{resnet_forward.14} parent=31 // pred_fallthru
        _
      %s1021 = smul.u32 8, %s19
      %p1022 = scmp.lt.s32.totalorder %s1021, 15
      %s1023 = scalar_select %p1022, %s1021, 15
      %p1024 = scmp.lt.s32.totalorder %s20, 0
      %s1025 = scalar_select %p1024, %s20, 0
      %s1026 = sadd.s32 %s1025, %s1023
      %s1027 = smul.addr %s1026, 4
      %s1028 = scalar_lea.vmem %s3, %s1027
      // Predicated region
      $region41: #{resnet_forward.14} parent=31 // pred_check
        %p1029 = pneg %p135
      $region42: #{resnet_forward.14} parent=31 // pred_check_branch
        %1031 = sbr.rel (%p1029) target = $region44
      $region43: #{resnet_forward.14} parent=31 // pred_region
        %s1032 = smul.u32 8, %s19
      $region44: #{resnet_forward.14} parent=31 // pred_fallthru
        _
    $region32: #{resnet_forward.14} parent=5 // pred_fallthru
      _
    %p1033 = scmp.le.s32.totalorder 2, %s9
    // Predicated region
    $region45: #{resnet_forward.14} parent=5 // pred_check
      %p1034 = pneg %p1033
    $region46: #{resnet_forward.14} parent=5 // pred_check_branch
      %1036 = sbr.rel (%p1034) target = $region48
    $region47: #{resnet_forward.14} parent=5 // pred_region
      %s1037 = ssub.s32 %s9, 2
      // Predicated region
      $region49: #{resnet_forward.14} parent=47 // pred_check
        %p1038 = pneg %p141
      $region50: #{resnet_forward.14} parent=47 // pred_check_branch
        %1040 = sbr.rel (%p1038) target = $region52
      $region51: #{resnet_forward.14} parent=47 // pred_region
        %s1041 = smul.u32 8, %s22
        %p1042 = scmp.lt.s32.totalorder %s1041, 15
        %s1043 = scalar_select %p1042, %s1041, 15
        %p1044 = scmp.lt.s32.totalorder %s23, 0
        %s1045 = scalar_select %p1044, %s23, 0
        %s1046 = sadd.s32 %s1045, %s1043
        %s1047 = smul.addr %s1046, 4
        %s1048 = scalar_lea.vmem %s3, %s1047
      $region52: #{resnet_forward.14} parent=47 // pred_fallthru
        _
    $region48: #{resnet_forward.14} parent=5 // pred_fallthru
      _
  $region6: #{resnet_forward.14} parent=0 // loop_footer
    %s13 = sadd.s32 1, %s9
  $region7: #{resnet_forward.14} parent=0 // loop_footer_branch
    %8 = sbr.rel target = $region3
  $region8: #{resnet_forward.14} parent=0 // loop_exit
    _

// kernel: resnet_forward.19
$region0: #{resnet_forward.19}
  #allocation0 [shape = 'u32[]', space=smem, size = 0x4, offset = 0x4, fixed_abs, tag = 'smem constant byte address 0x4 - core index']
  #allocation1 [shape = 'u32[144,128]{1,0:T(1,128)}', space=vmem, size = 0x12000, scoped, tag = 'internal scratch']
  #allocation2 [shape = 'f32[64,128]{1,0:T(8,128)}', space=vmem, size = 0x8000, scoped, tag = 'scratch operand']
  %s0 = inlined_call_operand.vmem [shape: bf16[128,128], index: 0, kind: input, shape index: {}]
  %s1 = inlined_call_operand.vmem [shape: bf16[128,128], index: 1, kind: input, shape index: {}]
  %s2 = inlined_call_operand.vmem [shape: f32[1,128], index: 2, kind: input, shape index: {}, may-alias: {2,4}]
  %s3 = inlined_call_operand.vmem [shape: f32[1,128], index: 3, kind: input, shape index: {}]
  %s4 = inlined_call_operand.vmem [shape: f32[1,128], index: 4, kind: input, shape index: {}, may-alias: {2,4}]
  %s5 = inlined_call_operand.vmem [shape: bf16[128,128], index: 5, kind: input, shape index: {}]
  %s6 = inlined_call_operand.vmem [shape: bf16[128,128], index: 6, kind: output, shape index: {}]
  %s7 = sld [smem:[#allocation0]]
  $region65: #{resnet_forward.19} parent=0
    _
  %s9 = ssub.s32 1, %s7
  %s10 = scalar_select 0, %s9, %s7
  loop: start=0, step=1, limit=4
  $region2: #{resnet_forward.19} parent=0 // loop_pre_header
    _
  $region3: #{resnet_forward.19} parent=0 // loop_header
    %s12 = sphi 0, %s16
    %p13 = scmp.ge.s32.totalorder %s12, 4
    %s19 = sphi 0, %s38
    %s20 = sphi 0, %s34
    %s21 = sphi 0, %s30
    %s22 = sphi 0, %s19
    %s23 = sphi 0, %s20
    %s24 = sphi 0, %s21
    %s25 = sphi 0, %s22
    %s26 = sphi 0, %s23
    %s27 = sphi 0, %s24
    %s43 = sphi 0, %s45
    %s46 = sphi 0, %s43
    %s47 = sphi 0, %s46
    %s63 = sphi 0, %s47
    %s71 = sphi 0, %s73
    %s74 = sphi 0, %s71
    %s75 = sphi 0, %s74
    %s91 = sphi 0, %s75
    %s97 = sphi 0, %s99
    %s100 = sphi 0, %s97
    %s101 = sphi 0, %s100
    %s117 = sphi 0, %s101
    %s123 = sphi 0, %s125
    %s126 = sphi 0, %s123
    %s127 = sphi 0, %s126
    %s143 = sphi 0, %s127
    %s149 = sphi 0, %s151
    %s152 = sphi 0, %s149
    %s153 = sphi 0, %s152
    %s169 = sphi 0, %s153
    %s177 = sphi 0, %s179
    %s180 = sphi 0, %s177
    %s181 = sphi 0, %s180
    %s197 = sphi 0, %s181
    %s205 = sphi 0, %s207
    %s208 = sphi 0, %s205
    %s209 = sphi 0, %s208
    %s225 = sphi 0, %s209
  $region4: #{resnet_forward.19} parent=0 // loop_header_branch
    %15 = sbr.rel (%p13) target = $region8
  $region5: #{resnet_forward.19} parent=0 // loop_body
    %s17 = ssub.s32 %s12, 1
    %s18 = ssub.s32 %s12, 2
    %s28 = sadd.s32 1, %s21
    %p29 = scmp.ge.s32.totalorder %s28, 1
    %s30 = scalar_select %p29, 0, %s28
    %s31 = sadd.s32 1, %s20
    %s32 = scalar_select %p29, %s31, %s20
    %p33 = scmp.ge.s32.totalorder %s32, 1
    %s34 = scalar_select %p33, 0, %s32
    %s35 = sadd.s32 1, %s19
    %s36 = scalar_select %p33, %s35, %s19
    %p37 = scmp.ge.s32.totalorder %s36, 2
    %s38 = scalar_select %p37, 0, %s36
    %s39 = ssub.s32 %s19, %s38
    %s40 = ssub.s32 %s21, %s30
    %s41 = sor.u32 %s39, %s40
    %p42 = scmp.eq.s32.totalorder %s41, 0
    %s44 = sadd.s32 %s43, 1
    %s45 = scalar_select %p42, %s43, %s44
    %p48 = pneg %p42
    %p49 = scmp.eq.s32.totalorder %s12, 1
    %p50 = por %p48, %p49
    %p51 = scmp.ne.s32.totalorder %s43, %s46
    %p52 = scmp.eq.s32.totalorder %s12, 0
    %p53 = por %p51, %p52
    %p54 = scmp.ne.s32.totalorder %s43, %s46
    %p55 = scmp.eq.s32.totalorder %s17, 1
    %p56 = por %p54, %p55
    %p57 = scmp.ne.s32.totalorder %s46, %s47
    %p58 = scmp.eq.s32.totalorder %s17, 0
    %p59 = por %p57, %p58
    %p60 = scmp.ne.s32.totalorder %s46, %s47
    %p61 = scmp.eq.s32.totalorder %s18, 1
    %p62 = por %p60, %p61
    %p64 = scmp.ne.s32.totalorder %s47, %s63
    %p65 = scmp.eq.s32.totalorder %s18, 0
    %p66 = por %p64, %p65
    %s67 = ssub.s32 %s21, %s30
    %s68 = ssub.s32 %s20, %s34
    %s69 = sor.u32 %s67, %s68
    %p70 = scmp.eq.s32.totalorder %s69, 0
    %s72 = sadd.s32 %s71, 1
    %s73 = scalar_select %p70, %s71, %s72
    %p76 = pneg %p70
    %p77 = scmp.eq.s32.totalorder %s12, 1
    %p78 = por %p76, %p77
    %p79 = scmp.ne.s32.totalorder %s71, %s74
    %p80 = scmp.eq.s32.totalorder %s12, 0
    %p81 = por %p79, %p80
    %p82 = scmp.ne.s32.totalorder %s71, %s74
    %p83 = scmp.eq.s32.totalorder %s17, 1
    %p84 = por %p82, %p83
    %p85 = scmp.ne.s32.totalorder %s74, %s75
    %p86 = scmp.eq.s32.totalorder %s17, 0
    %p87 = por %p85, %p86
    %p88 = scmp.ne.s32.totalorder %s74, %s75
    %p89 = scmp.eq.s32.totalorder %s18, 1
    %p90 = por %p88, %p89
    %p92 = scmp.ne.s32.totalorder %s75, %s91
    %p93 = scmp.eq.s32.totalorder %s18, 0
    %p94 = por %p92, %p93
    %s95 = ssub.s32 %s20, %s34
    %p96 = scmp.eq.s32.totalorder %s95, 0
    %s98 = sadd.s32 %s97, 1
    %s99 = scalar_select %p96, %s97, %s98
    %p102 = pneg %p96
    %p103 = scmp.eq.s32.totalorder %s12, 1
    %p104 = por %p102, %p103
    %p105 = scmp.ne.s32.totalorder %s97, %s100
    %p106 = scmp.eq.s32.totalorder %s12, 0
    %p107 = por %p105, %p106
    %p108 = scmp.ne.s32.totalorder %s97, %s100
    %p109 = scmp.eq.s32.totalorder %s17, 1
    %p110 = por %p108, %p109
    %p111 = scmp.ne.s32.totalorder %s100, %s101
    %p112 = scmp.eq.s32.totalorder %s17, 0
    %p113 = por %p111, %p112
    %p114 = scmp.ne.s32.totalorder %s100, %s101
    %p115 = scmp.eq.s32.totalorder %s18, 1
    %p116 = por %p114, %p115
    %p118 = scmp.ne.s32.totalorder %s101, %s117
    %p119 = scmp.eq.s32.totalorder %s18, 0
    %p120 = por %p118, %p119
    %s121 = ssub.s32 %s20, %s34
    %p122 = scmp.eq.s32.totalorder %s121, 0
    %s124 = sadd.s32 %s123, 1
    %s125 = scalar_select %p122, %s123, %s124
    %p128 = pneg %p122
    %p129 = scmp.eq.s32.totalorder %s12, 1
    %p130 = por %p128, %p129
    %p131 = scmp.ne.s32.totalorder %s123, %s126
    %p132 = scmp.eq.s32.totalorder %s12, 0
    %p133 = por %p131, %p132
    %p134 = scmp.ne.s32.totalorder %s123, %s126
    %p135 = scmp.eq.s32.totalorder %s17, 1
    %p136 = por %p134, %p135
    %p137 = scmp.ne.s32.totalorder %s126, %s127
    %p138 = scmp.eq.s32.totalorder %s17, 0
    %p139 = por %p137, %p138
    %p140 = scmp.ne.s32.totalorder %s126, %s127
    %p141 = scmp.eq.s32.totalorder %s18, 1
    %p142 = por %p140, %p141
    %p144 = scmp.ne.s32.totalorder %s127, %s143
    %p145 = scmp.eq.s32.totalorder %s18, 0
    %p146 = por %p144, %p145
    %s147 = ssub.s32 %s20, %s34
    %p148 = scmp.eq.s32.totalorder %s147, 0
    %s150 = sadd.s32 %s149, 1
    %s151 = scalar_select %p148, %s149, %s150
    %p154 = pneg %p148
    %p155 = scmp.eq.s32.totalorder %s12, 1
    %p156 = por %p154, %p155
    %p157 = scmp.ne.s32.totalorder %s149, %s152
    %p158 = scmp.eq.s32.totalorder %s12, 0
    %p159 = por %p157, %p158
    %p160 = scmp.ne.s32.totalorder %s149, %s152
    %p161 = scmp.eq.s32.totalorder %s17, 1
    %p162 = por %p160, %p161
    %p163 = scmp.ne.s32.totalorder %s152, %s153
    %p164 = scmp.eq.s32.totalorder %s17, 0
    %p165 = por %p163, %p164
    %p166 = scmp.ne.s32.totalorder %s152, %s153
    %p167 = scmp.eq.s32.totalorder %s18, 1
    %p168 = por %p166, %p167
    %p170 = scmp.ne.s32.totalorder %s153, %s169
    %p171 = scmp.eq.s32.totalorder %s18, 0
    %p172 = por %p170, %p171
    %s173 = ssub.s32 %s19, %s38
    %s174 = ssub.s32 %s20, %s34
    %s175 = sor.u32 %s173, %s174
    %p176 = scmp.eq.s32.totalorder %s175, 0
    %s178 = sadd.s32 %s177, 1
    %s179 = scalar_select %p176, %s177, %s178
    %p182 = pneg %p176
    %p183 = scmp.eq.s32.totalorder %s12, 1
    %p184 = por %p182, %p183
    %p185 = scmp.ne.s32.totalorder %s177, %s180
    %p186 = scmp.eq.s32.totalorder %s12, 0
    %p187 = por %p185, %p186
    %p188 = scmp.ne.s32.totalorder %s177, %s180
    %p189 = scmp.eq.s32.totalorder %s17, 1
    %p190 = por %p188, %p189
    %p191 = scmp.ne.s32.totalorder %s180, %s181
    %p192 = scmp.eq.s32.totalorder %s17, 0
    %p193 = por %p191, %p192
    %p194 = scmp.ne.s32.totalorder %s180, %s181
    %p195 = scmp.eq.s32.totalorder %s18, 1
    %p196 = por %p194, %p195
    %p198 = scmp.ne.s32.totalorder %s181, %s197
    %p199 = scmp.eq.s32.totalorder %s18, 0
    %p200 = por %p198, %p199
    %s201 = ssub.s32 %s19, %s38
    %s202 = ssub.s32 %s20, %s34
    %s203 = sor.u32 %s201, %s202
    %p204 = scmp.eq.s32.totalorder %s203, 0
    %s206 = sadd.s32 %s205, 1
    %s207 = scalar_select %p204, %s205, %s206
    %p210 = pneg %p204
    %p211 = scmp.eq.s32.totalorder %s12, 1
    %p212 = por %p210, %p211
    %p213 = scmp.ne.s32.totalorder %s205, %s208
    %p214 = scmp.eq.s32.totalorder %s12, 0
    %p215 = por %p213, %p214
    %p216 = scmp.ne.s32.totalorder %s205, %s208
    %p217 = scmp.eq.s32.totalorder %s17, 1
    %p218 = por %p216, %p217
    %p219 = scmp.ne.s32.totalorder %s208, %s209
    %p220 = scmp.eq.s32.totalorder %s17, 0
    %p221 = por %p219, %p220
    %p222 = scmp.ne.s32.totalorder %s208, %s209
    %p223 = scmp.eq.s32.totalorder %s18, 1
    %p224 = por %p222, %p223
    %p226 = scmp.ne.s32.totalorder %s209, %s225
    %p227 = scmp.eq.s32.totalorder %s18, 0
    %p228 = por %p226, %p227
    %p229 = scmp.le.s32.totalorder 1, %s12
    %p230 = scmp.lt.s32.totalorder %s12, 3
    %p231 = pnand %p229, %p230
    %p232 = pneg %p231
    // Predicated region
    $region9: #{resnet_forward.19} parent=5 // pred_check
      _
    $region10: #{resnet_forward.19} parent=5 // pred_check_branch
      %234 = sbr.rel (%p231) target = $region12
    $region11: #{resnet_forward.19} parent=5 // pred_region
      %s235 = ssub.s32 %s12, 1
      // Predicated region
      $region13: #{resnet_forward.19} parent=11 // pred_check
        %p236 = pneg %p87
      $region14: #{resnet_forward.19} parent=11 // pred_check_branch
        %238 = sbr.rel (%p236) target = $region16
      $region15: #{resnet_forward.19} parent=11 // pred_region
        %s239 = smul.u32 16, %s24
        %p240 = scmp.lt.s32.totalorder %s239, 15
        %s241 = scalar_select %p240, %s239, 15
        %p242 = scmp.lt.s32.totalorder %s23, 0
        %s243 = scalar_select %p242, %s23, 0
        %s244 = sadd.s32 %s243, %s241
        %s245 = smul.addr %s244, 4
        %s246 = scalar_lea.vmem %s1, %s245
        %s247 = smul.u32 16, %s24
      $region16: #{resnet_forward.19} parent=11 // pred_fallthru
        _
      // Predicated region
      $region17: #{resnet_forward.19} parent=11 // pred_check
        %p248 = pneg %p113
      $region18: #{resnet_forward.19} parent=11 // pred_check_branch
        %250 = sbr.rel (%p248) target = $region20
      $region19: #{resnet_forward.19} parent=11 // pred_region
        %p251 = scmp.lt.s32.totalorder %s23, 0
        %s252 = scalar_select %p251, %s23, 0
        %s253 = scalar_lea.vmem %s2, %s252
      $region20: #{resnet_forward.19} parent=11 // pred_fallthru
        _
      // Predicated region
      $region21: #{resnet_forward.19} parent=11 // pred_check
        %p254 = pneg %p139
      $region22: #{resnet_forward.19} parent=11 // pred_check_branch
        %256 = sbr.rel (%p254) target = $region24
      $region23: #{resnet_forward.19} parent=11 // pred_region
        %p257 = scmp.lt.s32.totalorder %s23, 0
        %s258 = scalar_select %p257, %s23, 0
        %s259 = scalar_lea.vmem %s3, %s258
      $region24: #{resnet_forward.19} parent=11 // pred_fallthru
        _
      // Predicated region
      $region25: #{resnet_forward.19} parent=11 // pred_check
        %p260 = pneg %p165
      $region26: #{resnet_forward.19} parent=11 // pred_check_branch
        %262 = sbr.rel (%p260) target = $region28
      $region27: #{resnet_forward.19} parent=11 // pred_region
        %p263 = scmp.lt.s32.totalorder %s23, 0
        %s264 = scalar_select %p263, %s23, 0
        %s265 = scalar_lea.vmem %s4, %s264
      $region28: #{resnet_forward.19} parent=11 // pred_fallthru
        _
    $region12: #{resnet_forward.19} parent=5 // pred_fallthru
      _
    %p266 = scmp.lt.s32.totalorder %s12, 2
    // Predicated region
    $region29: #{resnet_forward.19} parent=5 // pred_check
      %p267 = pneg %p266
    $region30: #{resnet_forward.19} parent=5 // pred_check_branch
      %269 = sbr.rel (%p267) target = $region32
    $region31: #{resnet_forward.19} parent=5 // pred_region
      // Predicated region
      $region33: #{resnet_forward.19} parent=31 // pred_check
        %p270 = pneg %p53
      $region34: #{resnet_forward.19} parent=31 // pred_check_branch
        %272 = sbr.rel (%p270) target = $region36
      $region35: #{resnet_forward.19} parent=31 // pred_region
        %s273 = smul.u32 8, %s19
        %p274 = scmp.lt.s32.totalorder %s273, 15
        %s275 = scalar_select %p274, %s273, 15
        %p276 = scmp.lt.s32.totalorder %s21, 0
        %s277 = scalar_select %p276, %s21, 0
        %s278 = sadd.s32 %s277, %s275
        %s279 = smul.addr %s278, 4
        %s280 = scalar_lea.vmem %s0, %s279
        %s281 = smul.u32 8, %s19
      $region36: #{resnet_forward.19} parent=31 // pred_fallthru
        _
      // Predicated region
      $region37: #{resnet_forward.19} parent=31 // pred_check
        %p282 = pneg %p187
      $region38: #{resnet_forward.19} parent=31 // pred_check_branch
        %284 = sbr.rel (%p282) target = $region40
      $region39: #{resnet_forward.19} parent=31 // pred_region
        %s285 = smul.u32 8, %s19
        %p286 = scmp.lt.s32.totalorder %s285, 15
        %s287 = scalar_select %p286, %s285, 15
        %p288 = scmp.lt.s32.totalorder %s20, 0
        %s289 = scalar_select %p288, %s20, 0
        %s290 = sadd.s32 %s289, %s287
        %s291 = smul.addr %s290, 4
        %s292 = scalar_lea.vmem %s5, %s291
        %s293 = smul.u32 8, %s19
      $region40: #{resnet_forward.19} parent=31 // pred_fallthru
        _
    $region32: #{resnet_forward.19} parent=5 // pred_fallthru
      _
    %p294 = scmp.le.s32.totalorder 1, %s12
    %p295 = scmp.lt.s32.totalorder %s12, 3
    %p296 = pnand %p294, %p295
    %p297 = pneg %p296
    // Predicated region
    $region41: #{resnet_forward.19} parent=5 // pred_check
      _
    $region42: #{resnet_forward.19} parent=5 // pred_check_branch
      %299 = sbr.rel (%p296) target = $region44
    $region43: #{resnet_forward.19} parent=5 // pred_region
      %s300 = ssub.s32 %s12, 1
      %s301 = smul.u32 8, %s22
      %p302 = scmp.lt.s32.totalorder %s301, 15
      %s303 = scalar_select %p302, %s301, 15
      %p304 = scmp.lt.s32.totalorder %s24, 0
      %s305 = scalar_select %p304, %s24, 0
      %s306 = sadd.s32 %s305, %s303
      %s307 = smul.addr %s306, 4
      %s308 = scalar_lea.vmem %s0, %s307
      %p309 = pneg %p59
      %p310 = pneg %p56
      %s311 = smul.u32 16, %s24
      %p312 = scmp.lt.s32.totalorder %s311, 15
      %s313 = scalar_select %p312, %s311, 15
      %p314 = scmp.lt.s32.totalorder %s23, 0
      %s315 = scalar_select %p314, %s23, 0
      %s316 = sadd.s32 %s315, %s313
      %s317 = smul.addr %s316, 4
      %s318 = scalar_lea.vmem %s1, %s317
      %p319 = pneg %p87
      %p320 = pneg %p84
      %p321 = scmp.lt.s32.totalorder %s23, 0
      %s322 = scalar_select %p321, %s23, 0
      %s323 = scalar_lea.vmem %s2, %s322
      %p324 = pneg %p113
      %p325 = pneg %p110
      %p326 = scmp.lt.s32.totalorder %s23, 0
      %s327 = scalar_select %p326, %s23, 0
      %s328 = scalar_lea.vmem %s3, %s327
      %p329 = pneg %p139
      %p330 = pneg %p136
      %p331 = scmp.lt.s32.totalorder %s23, 0
      %s332 = scalar_select %p331, %s23, 0
      %s333 = scalar_lea.vmem %s4, %s332
      %p334 = pneg %p165
      %p335 = pneg %p162
      %s336 = smul.u32 8, %s22
      %p337 = scmp.lt.s32.totalorder %s336, 15
      %s338 = scalar_select %p337, %s336, 15
      %p339 = scmp.lt.s32.totalorder %s23, 0
      %s340 = scalar_select %p339, %s23, 0
      %s341 = sadd.s32 %s340, %s338
      %s342 = smul.addr %s341, 4
      %s343 = scalar_lea.vmem %s5, %s342
      %p344 = pneg %p193
      %p345 = pneg %p190
      %p346 = pneg %p221
      %p347 = pneg %p218
      %s348 = smul.u32 8, %s22
      %p349 = scmp.lt.s32.totalorder %s348, 15
      %s350 = scalar_select %p349, %s348, 15
      %p351 = scmp.lt.s32.totalorder %s23, 0
      %s352 = scalar_select %p351, %s23, 0
      %s353 = sadd.s32 %s352, %s350
      %s354 = smul.addr %s353, 4
      %s355 = scalar_lea.vmem %s6, %s354
      %s356 = smul.u32 8, %s22
      %p357 = scmp.lt.s32.totalorder %s356, 15
      %s358 = scalar_select %p357, %s356, 15
      %p359 = scmp.lt.s32.totalorder %s24, 0
      %s360 = scalar_select %p359, %s24, 0
      %s361 = sadd.s32 %s360, %s358
      %s362 = smul.addr %s361, 4
      %s363 = scalar_lea.vmem %s0, %s362
      %s364 = smul.u32 8, %s22
      %s365 = smul.u32 16, %s24
      %p366 = scmp.lt.s32.totalorder %s365, 15
      %s367 = scalar_select %p366, %s365, 15
      %p368 = scmp.lt.s32.totalorder %s23, 0
      %s369 = scalar_select %p368, %s23, 0
      %s370 = sadd.s32 %s369, %s367
      %s371 = smul.addr %s370, 4
      %s372 = scalar_lea.vmem %s1, %s371
      %s373 = smul.u32 16, %s24
      %p374 = scmp.lt.s32.totalorder %s23, 0
      %s375 = scalar_select %p374, %s23, 0
      %s376 = scalar_lea.vmem %s2, %s375
      %p377 = scmp.lt.s32.totalorder %s23, 0
      %s378 = scalar_select %p377, %s23, 0
      %s379 = scalar_lea.vmem %s3, %s378
      %p380 = scmp.lt.s32.totalorder %s23, 0
      %s381 = scalar_select %p380, %s23, 0
      %s382 = scalar_lea.vmem %s4, %s381
      %s383 = smul.u32 8, %s22
      %p384 = scmp.lt.s32.totalorder %s383, 15
      %s385 = scalar_select %p384, %s383, 15
      %p386 = scmp.lt.s32.totalorder %s23, 0
      %s387 = scalar_select %p386, %s23, 0
      %s388 = sadd.s32 %s387, %s385
      %s389 = smul.addr %s388, 4
      %s390 = scalar_lea.vmem %s5, %s389
      %s391 = smul.u32 8, %s22
      %s392 = smul.u32 8, %s22
      %p393 = scmp.lt.s32.totalorder %s392, 15
      %s394 = scalar_select %p393, %s392, 15
      %p395 = scmp.lt.s32.totalorder %s23, 0
      %s396 = scalar_select %p395, %s23, 0
      %s397 = sadd.s32 %s396, %s394
      %s398 = smul.addr %s397, 4
      %s399 = scalar_lea.vmem %s6, %s398
      %s400 = smul.u32 8, %s22
      %p402 = scmp.eq.s32.totalorder %s24, 0
      // Predicated region
      $region45: #{resnet_forward.19} parent=43 // pred_check
        %p403 = pneg %p402
      $region46: #{resnet_forward.19} parent=43 // pred_check_branch
        %405 = sbr.rel (%p403) target = $region48
      $region47: #{resnet_forward.19} parent=43 // pred_region
        %406 = vst [vmem:[#allocation2] sm:$0xff] 0.0
        %407 = vst [vmem:[#allocation2 + $0x8] sm:$0xff] 0.0
        %408 = vst [vmem:[#allocation2 + $0x10] sm:$0xff] 0.0
        %409 = vst [vmem:[#allocation2 + $0x18] sm:$0xff] 0.0
        %410 = vst [vmem:[#allocation2 + $0x20] sm:$0xff] 0.0
        %411 = vst [vmem:[#allocation2 + $0x28] sm:$0xff] 0.0
        %412 = vst [vmem:[#allocation2 + $0x30] sm:$0xff] 0.0
        %413 = vst [vmem:[#allocation2 + $0x38] sm:$0xff] 0.0
      $region48: #{resnet_forward.19} parent=43 // pred_fallthru
        _
      %v414 = vld [vmem:[#allocation2] sm:$0xff]
      %v415 = vld [vmem:[#allocation2 + $0x8] sm:$0xff]
      %v416 = vld [vmem:[#allocation2 + $0x10] sm:$0xff]
      %v417 = vld [vmem:[#allocation2 + $0x18] sm:$0xff]
      %v418 = vld [vmem:[#allocation2 + $0x20] sm:$0xff]
      %v419 = vld [vmem:[#allocation2 + $0x28] sm:$0xff]
      %v420 = vld [vmem:[#allocation2 + $0x30] sm:$0xff]
      %v421 = vld [vmem:[#allocation2 + $0x38] sm:$0xff]
      %v422 = vld [vmem:[%s363] sm:$0xf]
      %v423 = vld [vmem:[%s363 + $0x4] sm:$0xf]
      %v424 = vld [vmem:[%s363 + $0x8] sm:$0xf]
      %v425 = vld [vmem:[%s363 + $0xc] sm:$0xf]
      %v426 = vld [vmem:[%s363 + $0x10] sm:$0xf]
      %v427 = vld [vmem:[%s363 + $0x14] sm:$0xf]
      %v428 = vld [vmem:[%s363 + $0x18] sm:$0xf]
      %v429 = vld [vmem:[%s363 + $0x1c] sm:$0xf]
      %v430 = vld [vmem:[%s372] sm:$0xf]
      %v431 = vld [vmem:[%s372 + $0x4] sm:$0xf]
      %v432 = vld [vmem:[%s372 + $0x8] sm:$0xf]
      %v433 = vld [vmem:[%s372 + $0xc] sm:$0xf]
      %v434 = vld [vmem:[%s372 + $0x10] sm:$0xf]
      %v435 = vld [vmem:[%s372 + $0x14] sm:$0xf]
      %v436 = vld [vmem:[%s372 + $0x18] sm:$0xf]
      %v437 = vld [vmem:[%s372 + $0x1c] sm:$0xf]
      %v438 = vld [vmem:[%s372 + $0x20] sm:$0xf]
      %v439 = vld [vmem:[%s372 + $0x24] sm:$0xf]
      %v440 = vld [vmem:[%s372 + $0x28] sm:$0xf]
      %v441 = vld [vmem:[%s372 + $0x2c] sm:$0xf]
      %v442 = vld [vmem:[%s372 + $0x30] sm:$0xf]
      %v443 = vld [vmem:[%s372 + $0x34] sm:$0xf]
      %v444 = vld [vmem:[%s372 + $0x38] sm:$0xf]
      %v445 = vld [vmem:[%s372 + $0x3c] sm:$0xf]
      %v454 = vunpack.c.l.b16 %v422
      %v455 = vunpack.c.l.b16 %v423
      %v456 = vunpack.c.l.b16 %v424
      %v457 = vunpack.c.l.b16 %v425
      %v458 = vunpack.c.l.b16 %v426
      %v459 = vunpack.c.l.b16 %v427
      %v460 = vunpack.c.l.b16 %v428
      %v461 = vunpack.c.l.b16 %v429
      %v462 = vpack.c.b16 %v455, %v454
      %v463 = vpack.c.b16 %v457, %v456
      %v464 = vpack.c.b16 %v459, %v458
      %v465 = vpack.c.b16 %v461, %v460
      %v486 = vunpack.c.l.b16 %v430
      %v487 = vunpack.c.l.b16 %v431
      %v488 = vunpack.c.l.b16 %v432
      %v489 = vunpack.c.l.b16 %v433
      %v490 = vunpack.c.l.b16 %v434
      %v491 = vunpack.c.l.b16 %v435
      %v492 = vunpack.c.l.b16 %v436
      %v493 = vunpack.c.l.b16 %v437
      %v494 = vunpack.c.l.b16 %v438
      %v495 = vunpack.c.l.b16 %v439
      %v496 = vunpack.c.l.b16 %v440
      %v497 = vunpack.c.l.b16 %v441
      %v498 = vunpack.c.l.b16 %v442
      %v499 = vunpack.c.l.b16 %v443
      %v500 = vunpack.c.l.b16 %v444
      %v501 = vunpack.c.l.b16 %v445
      %v502 = vpack.c.b16 %v487, %v486
      %v503 = vpack.c.b16 %v489, %v488
      %v504 = vpack.c.b16 %v491, %v490
      %v505 = vpack.c.b16 %v493, %v492
      %v506 = vpack.c.b16 %v495, %v494
      %v507 = vpack.c.b16 %v497, %v496
      %v508 = vpack.c.b16 %v499, %v498
      %v509 = vpack.c.b16 %v501, %v500
      %518 = vmatprep.subr.bf16.mxu0 0
      %519 = vmatpush1.bf16.msra.mxu0 %v502
      %520 = vmatprep.subr.bf16.mxu0 0
      %521 = vmatpush1.bf16.msra.mxu0 %v503
      %522 = vmatprep.subr.bf16.mxu0 0
      %523 = vmatpush1.bf16.msra.mxu0 %v504
      %524 = vmatprep.subr.bf16.mxu0 0
      %525 = vmatpush1.bf16.msra.mxu0 %v505
      %526 = vmatprep.subr.bf16.mxu0 0
      %527 = vmatpush1.bf16.msra.mxu0 %v506
      %528 = vmatprep.subr.bf16.mxu0 0
      %529 = vmatpush1.bf16.msra.mxu0 %v507
      %530 = vmatprep.subr.bf16.mxu0 0
      %531 = vmatpush1.bf16.msra.mxu0 %v508
      %532 = vmatprep.subr.bf16.mxu0 0
      %533 = vmatpush1.bf16.msra.mxu0 %v509
      %534 = vmatprep.subr.bf16.mxu0 0
      %535 = vmatpush1.bf16.msra.mxu0 0
      %536 = vmatprep.subr.bf16.mxu0 0
      %537 = vmatpush1.bf16.msra.mxu0 0
      %538 = vmatprep.subr.bf16.mxu0 0
      %539 = vmatpush1.bf16.msra.mxu0 0
      %540 = vmatprep.subr.bf16.mxu0 0
      %541 = vmatpush1.bf16.msra.mxu0 0
      %542 = vmatprep.subr.bf16.mxu0 0
      %543 = vmatpush1.bf16.msra.mxu0 0
      %544 = vmatprep.subr.bf16.mxu0 0
      %545 = vmatpush1.bf16.msra.mxu0 0
      %546 = vmatprep.subr.bf16.mxu0 0
      %547 = vmatpush1.bf16.msra.mxu0 0
      %548 = vmatprep.subr.bf16.mxu0 0
      %549 = vmatpush1.bf16.msra.mxu0 0
      %550 = vmatprep.mubr.bf16.mxu0 0
      %551 = vmatmul.mubr.bf16.gmra.mrb[0].mxu0 %v462
      %v552 = vpop.f32.mrb[0].mxu0
      %v553 = vadd.f32 0.0, %v552
      %v554 = vpop.f32.mrb[0].mxu0
      %v555 = vpop.f32.mrb[0].mxu0
      %v556 = vadd.f32 0.0, %v555
      %v557 = vpop.f32.mrb[0].mxu0
      %558 = vmatprep.mubr.bf16.mxu0 0
      %559 = vmatmul.mubr.bf16.gmra.mrb[0].mxu0 %v463
      %v560 = vpop.f32.mrb[0].mxu0
      %v561 = vadd.f32 0.0, %v560
      %v562 = vpop.f32.mrb[0].mxu0
      %v563 = vpop.f32.mrb[0].mxu0
      %v564 = vadd.f32 0.0, %v563
      %v565 = vpop.f32.mrb[0].mxu0
      %566 = vmatprep.mubr.bf16.mxu0 0
      %567 = vmatmul.mubr.bf16.gmra.mrb[0].mxu0 %v464
      %v568 = vpop.f32.mrb[0].mxu0
      %v569 = vadd.f32 0.0, %v568
      %v570 = vpop.f32.mrb[0].mxu0
      %v571 = vpop.f32.mrb[0].mxu0
      %v572 = vadd.f32 0.0, %v571
      %v573 = vpop.f32.mrb[0].mxu0
      %574 = vmatprep.mubr.bf16.mxu0 0
      %575 = vmatmul.mubr.bf16.gmra.mrb[0].mxu0 %v465
      %v576 = vpop.f32.mrb[0].mxu0
      %v577 = vadd.f32 0.0, %v576
      %v578 = vpop.f32.mrb[0].mxu0
      %v579 = vpop.f32.mrb[0].mxu0
      %v580 = vadd.f32 0.0, %v579
      %v581 = vpop.f32.mrb[0].mxu0
      %582 = vdwg.mxu0
      %v583 = vadd.f32 %v414, %v553
      %v584 = vadd.f32 %v415, %v556
      %v585 = vadd.f32 %v416, %v561
      %v586 = vadd.f32 %v417, %v564
      %v587 = vadd.f32 %v418, %v569
      %v588 = vadd.f32 %v419, %v572
      %v589 = vadd.f32 %v420, %v577
      %v590 = vadd.f32 %v421, %v580
      %591 = vst [vmem:[#allocation2] sm:$0xff] %v583
      %592 = vst [vmem:[#allocation2 + $0x8] sm:$0xff] %v584
      %593 = vst [vmem:[#allocation2 + $0x10] sm:$0xff] %v585
      %594 = vst [vmem:[#allocation2 + $0x18] sm:$0xff] %v586
      %595 = vst [vmem:[#allocation2 + $0x20] sm:$0xff] %v587
      %596 = vst [vmem:[#allocation2 + $0x28] sm:$0xff] %v588
      %597 = vst [vmem:[#allocation2 + $0x30] sm:$0xff] %v589
      %598 = vst [vmem:[#allocation2 + $0x38] sm:$0xff] %v590
      // Predicated region
      $region49: #{resnet_forward.19} parent=43 // pred_check
        %p599 = pneg %p402
      $region50: #{resnet_forward.19} parent=43 // pred_check_branch
        %601 = sbr.rel (%p599) target = $region52
      $region51: #{resnet_forward.19} parent=43 // pred_region
        %v602 = vld [vmem:[#allocation2] sm:$0xff]
        %v603 = vld [vmem:[#allocation2 + $0x8] sm:$0xff]
        %v604 = vld [vmem:[#allocation2 + $0x10] sm:$0xff]
        %v605 = vld [vmem:[#allocation2 + $0x18] sm:$0xff]
        %v606 = vld [vmem:[#allocation2 + $0x20] sm:$0xff]
        %v607 = vld [vmem:[#allocation2 + $0x28] sm:$0xff]
        %v608 = vld [vmem:[#allocation2 + $0x30] sm:$0xff]
        %v609 = vld [vmem:[#allocation2 + $0x38] sm:$0xff]
        %v610 = vld [vmem:[%s376] sm:$0x1]
        %v612 = vlaneseq
        %v613 = vshrl.u32 %v612, 7
        %v614 = vsub.s32 0, %v613
        %v615 = vrot.slane %v610, %v614
        %v617 = vadd.f32 %v602, %v615
        %v618 = vadd.f32 %v603, %v615
        %v619 = vadd.f32 %v604, %v615
        %v620 = vadd.f32 %v605, %v615
        %v621 = vadd.f32 %v606, %v615
        %v622 = vadd.f32 %v607, %v615
        %v623 = vadd.f32 %v608, %v615
        %v624 = vadd.f32 %v609, %v615
        %v625 = vmax.f32 %v617, 0.0
        %v626 = vmax.f32 %v618, 0.0
        %v627 = vmax.f32 %v619, 0.0
        %v628 = vmax.f32 %v620, 0.0
        %v629 = vmax.f32 %v621, 0.0
        %v630 = vmax.f32 %v622, 0.0
        %v631 = vmax.f32 %v623, 0.0
        %v632 = vmax.f32 %v624, 0.0
        %v633 = vld [vmem:[%s379] sm:$0x1]
        %v635 = vlaneseq
        %v636 = vshrl.u32 %v635, 7
        %v637 = vsub.s32 0, %v636
        %v638 = vrot.slane %v633, %v637
        %v640 = vmul.f32 %v625, %v638
        %v641 = vmul.f32 %v626, %v638
        %v642 = vmul.f32 %v627, %v638
        %v643 = vmul.f32 %v628, %v638
        %v644 = vmul.f32 %v629, %v638
        %v645 = vmul.f32 %v630, %v638
        %v646 = vmul.f32 %v631, %v638
        %v647 = vmul.f32 %v632, %v638
        %v648 = vld [vmem:[%s382] sm:$0x1]
        %v650 = vlaneseq
        %v651 = vshrl.u32 %v650, 7
        %v652 = vsub.s32 0, %v651
        %v653 = vrot.slane %v648, %v652
        %v655 = vadd.f32 %v640, %v653
        %v656 = vadd.f32 %v641, %v653
        %v657 = vadd.f32 %v642, %v653
        %v658 = vadd.f32 %v643, %v653
        %v659 = vadd.f32 %v644, %v653
        %v660 = vadd.f32 %v645, %v653
        %v661 = vadd.f32 %v646, %v653
        %v662 = vadd.f32 %v647, %v653
        %v663 = vld [vmem:[%s390] sm:$0xf]
        %v664 = vld [vmem:[%s390 + $0x4] sm:$0xf]
        %v665 = vld [vmem:[%s390 + $0x8] sm:$0xf]
        %v666 = vld [vmem:[%s390 + $0xc] sm:$0xf]
        %v667 = vld [vmem:[%s390 + $0x10] sm:$0xf]
        %v668 = vld [vmem:[%s390 + $0x14] sm:$0xf]
        %v669 = vld [vmem:[%s390 + $0x18] sm:$0xf]
        %v670 = vld [vmem:[%s390 + $0x1c] sm:$0xf]
        %v671 = vunpack.c.l.bf16 %v663
        %v672 = vunpack.c.l.bf16 %v664
        %v673 = vunpack.c.l.bf16 %v665
        %v674 = vunpack.c.l.bf16 %v666
        %v675 = vunpack.c.l.bf16 %v667
        %v676 = vunpack.c.l.bf16 %v668
        %v677 = vunpack.c.l.bf16 %v669
        %v678 = vunpack.c.l.bf16 %v670
        %v679 = vadd.f32 %v655, %v671
        %v680 = vadd.f32 %v656, %v672
        %v681 = vadd.f32 %v657, %v673
        %v682 = vadd.f32 %v658, %v674
        %v683 = vadd.f32 %v659, %v675
        %v684 = vadd.f32 %v660, %v676
        %v685 = vadd.f32 %v661, %v677
        %v686 = vadd.f32 %v662, %v678
        %v687 = vmax.f32 %v679, 0.0
        %v688 = vmax.f32 %v680, 0.0
        %v689 = vmax.f32 %v681, 0.0
        %v690 = vmax.f32 %v682, 0.0
        %v691 = vmax.f32 %v683, 0.0
        %v692 = vmax.f32 %v684, 0.0
        %v693 = vmax.f32 %v685, 0.0
        %v694 = vmax.f32 %v686, 0.0
        %v695 = vpack.c.bf16 %v688, %v687
        %v696 = vpack.c.bf16 %v690, %v689
        %v697 = vpack.c.bf16 %v692, %v691
        %v698 = vpack.c.bf16 %v694, %v693
        %v703 = vunpack.c.l.b16 %v695
        %v704 = vunpack.c.h.b16 %v695
        %v705 = vunpack.c.l.b16 %v696
        %v706 = vunpack.c.h.b16 %v696
        %v707 = vunpack.c.l.b16 %v697
        %v708 = vunpack.c.h.b16 %v697
        %v709 = vunpack.c.l.b16 %v698
        %v710 = vunpack.c.h.b16 %v698
        %v711 = vpack.c.b16 %v703, %v703
        %v712 = vpack.c.b16 %v704, %v704
        %v713 = vpack.c.b16 %v705, %v705
        %v714 = vpack.c.b16 %v706, %v706
        %v715 = vpack.c.b16 %v707, %v707
        %v716 = vpack.c.b16 %v708, %v708
        %v717 = vpack.c.b16 %v709, %v709
        %v718 = vpack.c.b16 %v710, %v710
        %727 = vst [vmem:[%s399] sm:$0xf] %v711
        %728 = vst [vmem:[%s399 + $0x4] sm:$0xf] %v712
        %729 = vst [vmem:[%s399 + $0x8] sm:$0xf] %v713
        %730 = vst [vmem:[%s399 + $0xc] sm:$0xf] %v714
        %731 = vst [vmem:[%s399 + $0x10] sm:$0xf] %v715
        %732 = vst [vmem:[%s399 + $0x14] sm:$0xf] %v716
        %733 = vst [vmem:[%s399 + $0x18] sm:$0xf] %v717
        %734 = vst [vmem:[%s399 + $0x1c] sm:$0xf] %v718
      $region52: #{resnet_forward.19} parent=43 // pred_fallthru
        _
      %s735 = smul.u32 8, %s22
      %p736 = scmp.lt.s32.totalorder %s735, 15
      %s737 = scalar_select %p736, %s735, 15
      %p738 = scmp.lt.s32.totalorder %s23, 0
      %s739 = scalar_select %p738, %s23, 0
      %s740 = sadd.s32 %s739, %s737
      %s741 = smul.addr %s740, 4
      %s742 = scalar_lea.vmem %s6, %s741
      // Predicated region
      $region53: #{resnet_forward.19} parent=43 // pred_check
        %p743 = pneg %p218
      $region54: #{resnet_forward.19} parent=43 // pred_check_branch
        %745 = sbr.rel (%p743) target = $region56
      $region55: #{resnet_forward.19} parent=43 // pred_region
        %s746 = smul.u32 8, %s22
      $region56: #{resnet_forward.19} parent=43 // pred_fallthru
        _
    $region44: #{resnet_forward.19} parent=5 // pred_fallthru
      _
    %p747 = scmp.le.s32.totalorder 2, %s12
    // Predicated region
    $region57: #{resnet_forward.19} parent=5 // pred_check
      %p748 = pneg %p747
    $region58: #{resnet_forward.19} parent=5 // pred_check_branch
      %750 = sbr.rel (%p748) target = $region60
    $region59: #{resnet_forward.19} parent=5 // pred_region
      %s751 = ssub.s32 %s12, 2
      // Predicated region
      $region61: #{resnet_forward.19} parent=59 // pred_check
        %p752 = pneg %p224
      $region62: #{resnet_forward.19} parent=59 // pred_check_branch
        %754 = sbr.rel (%p752) target = $region64
      $region63: #{resnet_forward.19} parent=59 // pred_region
        %s755 = smul.u32 8, %s25
        %p756 = scmp.lt.s32.totalorder %s755, 15
        %s757 = scalar_select %p756, %s755, 15
        %p758 = scmp.lt.s32.totalorder %s26, 0
        %s759 = scalar_select %p758, %s26, 0
        %s760 = sadd.s32 %s759, %s757
        %s761 = smul.addr %s760, 4
        %s762 = scalar_lea.vmem %s6, %s761
      $region64: #{resnet_forward.19} parent=59 // pred_fallthru
        _
    $region60: #{resnet_forward.19} parent=5 // pred_fallthru
      _
  $region6: #{resnet_forward.19} parent=0 // loop_footer
    %s16 = sadd.s32 1, %s12
  $region7: #{resnet_forward.19} parent=0 // loop_footer_branch
    %11 = sbr.rel target = $region3
  $region8: #{resnet_forward.19} parent=0 // loop_exit
    _

</llo_original>
